<compile_context>
chip_gen: v6e
topology: v6e:2x2x1
jax: 0.10.0
libtpu: 0.0.40
codegen_flags: <defaults>
</compile_context>

<pallas_src>
import jax
import jax.numpy as jnp
from jax import lax
from jax.experimental import pallas as pl
from jax.experimental.pallas import tpu as pltpu


_BN_EPS = 1e-5
MATMUL_DTYPE = jnp.bfloat16      # weight storage / MXU operand dtype (f32 accumulation)
_LANE = 256                      # lane width of the packed weight / vector slabs


# ----------------------------- in-kernel helpers -----------------------------

def _mm(a, b):
    """MXU matmul with f32 accumulation (operands cast to MATMUL_DTYPE)."""
    return jnp.dot(a.astype(MATMUL_DTYPE), b.astype(MATMUL_DTYPE),
                   preferred_element_type=jnp.float32)


def _upconv2(x, w0, w1, bias):
    """ConvTranspose1d(k=2, stride=2) on batch-folded rows.

    x: (BM, Cin); w0/w1: (Cin, Cout); bias: (1, Cout)
    returns (2*BM, Cout) with out[2p] = x[p]@w0 + b, out[2p+1] = x[p]@w1 + b.
    Batch blocks are contiguous, so the global interleave is per-batch correct.
    """
    bm = x.shape[0]
    bm2 = 2 * bm
    r = lax.broadcasted_iota(jnp.int32, (bm2, bm), 0)
    c = lax.broadcasted_iota(jnp.int32, (bm2, bm), 1)
    rep = ((r == 2 * c) | (r == 2 * c + 1)).astype(jnp.float32)   # row-repeat matrix
    xr = _mm(rep, x)                                              # xr[p] = x[p // 2]
    y0 = _mm(xr, w0)
    y1 = _mm(xr, w1)
    parity = lax.broadcasted_iota(jnp.int32, (bm2, 1), 0) & 1
    return jnp.where(parity == 0, y0, y1) + bias


def _conv3_im2col(x, w, bias, n_blocks, m):
    """Conv1d(k=3, padding='same') as ONE matmul on batch-folded rows.

    x: (n_blocks*m, Cin); w: (3*Cin, Cout) with taps ordered [x[p-1], x[p], x[p+1]];
    bias: (1, Cout).  Halo rows at batch-block boundaries are zero-masked.
    """
    bm, cin = x.shape
    z = jnp.zeros((1, cin), jnp.float32)
    xm1 = jnp.concatenate([z, x[:bm - 1, :]], axis=0)    # row p <- x[p-1]
    xp1 = jnp.concatenate([x[1:, :], z], axis=0)         # row p <- x[p+1]
    if n_blocks > 1:
        idx = lax.broadcasted_iota(jnp.int32, (bm, 1), 0)
        pos = (idx & (m - 1)) if (m & (m - 1)) == 0 else (idx % m)
        xm1 = jnp.where(pos == 0, 0.0, xm1)
        xp1 = jnp.where(pos == m - 1, 0.0, xp1)
    xin = jnp.concatenate([xm1, x, xp1], axis=1)         # (bm, 3*Cin) im2col
    return _mm(xin, w) + bias


def _crop_or_pad_blocks(x, n_blocks, l_src, l_tgt, fill=0.0):
    """Per-batch-block center crop / symmetric pad along rows. Static shapes."""
    if l_src == l_tgt:
        return x
    c = x.shape[1]
    out = []
    for b in range(n_blocks):
        blk = x[b * l_src:(b + 1) * l_src, :]
        if l_src > l_tgt:
            s = (l_src - l_tgt) // 2
            blk = blk[s:s + l_tgt, :]
        else:
            d = l_tgt - l_src
            lo = jnp.full((d // 2, c), fill, x.dtype)
            hi = jnp.full((d - d // 2, c), fill, x.dtype)
            blk = jnp.concatenate([lo, blk, hi], axis=0)
        out.append(blk)
    return jnp.concatenate(out, axis=0)


# ----------------------------- wrapper + kernel -------------------------------

def unet_decoder_forward(params, x1, x2, x3, x4, target_length):
    """x1..x4: (B, L, C) channels-last skip activations. Returns (B, target_length, 1)."""
    w_packed, v_packed, offs = params["w"], params["v"], params["offs"]
    B, L4, C4 = x4.shape
    _, L3, C3 = x3.shape
    _, L2, C2 = x2.shape
    _, L1, C1 = x1.shape
    assert (C4, C3, C2, C1) == (512, 256, 128, 64)

    # Fold the batch into the sublane (row) axis: (B, L, C) -> (B*L, C).
    x4f = x4.reshape(B * L4, C4)
    x3f = x3.reshape(B * L3, C3)
    x2f = x2.reshape(B * L2, C2)
    x1f = x1.reshape(B * L1, C1)

    def kernel(x4_ref, x3_ref, x2_ref, x1_ref, w_ref, v_ref, o_ref):
        def stage(x, skip_ref, skip_len, m_in, cin, cskip, cout, wu, wc1, wc2, rb, r1, r2):
            m_out = 2 * m_in
            # ConvTranspose1d(cin -> cout, k=2, s=2) + in-kernel interleave.
            w0 = w_ref[wu:wu + cin, :cout]
            w1 = w_ref[wu + cin:wu + 2 * cin, :cout]
            up = _upconv2(x, w0, w1, v_ref[rb:rb + 1, :cout])          # (B*m_out, cout)
            # crop_or_pad(skip, up) + torch.cat([up, skip], dim=channels).
            skip = _crop_or_pad_blocks(skip_ref[...], B, skip_len, m_out)
            xin = jnp.concatenate([up, skip], axis=1)                  # (B*m_out, cout+cskip)
            # UNetBlock: conv3 + (folded BN) + ReLU, conv3 + (folded BN) + ReLU.
            c1n = cout + cskip
            h = _conv3_im2col(xin, w_ref[wc1:wc1 + 3 * c1n, :cout],
                              v_ref[r1:r1 + 1, :cout], B, m_out)
            h = jnp.maximum(h, 0.0)
            h = _conv3_im2col(h, w_ref[wc2:wc2 + 3 * cout, :cout],
                              v_ref[r2:r2 + 1, :cout], B, m_out)
            h = jnp.maximum(h, 0.0)
            return h, m_out

        x = x4_ref[...]                                                 # (B*L4, 512) f32
        x, m = stage(x, x3_ref, L3, L4, 512, 256, 256,
                     offs["u1"], offs["c11"], offs["c12"], 0, 1, 2)     # (B*8, 256)
        x, m = stage(x, x2_ref, L2, m, 256, 128, 128,
                     offs["u2"], offs["c21"], offs["c22"], 3, 4, 5)     # (B*16, 128)
        x, m = stage(x, x1_ref, L1, m, 128, 64, 64,
                     offs["u3"], offs["c31"], offs["c32"], 6, 7, 8)     # (B*32, 64)

        # final_conv (64 -> 1, k=1) on the VPU/XLU + sigmoid (EUP).
        fw = v_ref[9:10, :64]                                           # (1, 64)
        fb = v_ref[10:11, 0:1]                                          # (1, 1)
        y = jnp.sum(x * fw, axis=1, keepdims=True) + fb                 # (B*m, 1)
        y = jax.nn.sigmoid(y)
        # crop / pad to target_length; 0.5 == sigmoid(0) == PyTorch's zero-pad of logits.
        y = _crop_or_pad_blocks(y, B, m, target_length, fill=0.5)
        o_ref[...] = y

    vmem_spec = pl.BlockSpec(memory_space=pltpu.MemorySpace.VMEM)
    out_flat = pl.pallas_call(
        kernel,
        out_shape=jax.ShapeDtypeStruct((B * target_length, 1), jnp.float32),
        in_specs=[vmem_spec] * 6,
        out_specs=vmem_spec,
        compiler_params=pltpu.CompilerParams(vmem_limit_bytes=32 * 1024 * 1024),
    )(x4f, x3f, x2f, x1f, w_packed, v_packed)
    return out_flat.reshape(B, target_length, 1)


# ----------------------------- parameter init + packing -----------------------

def init_params(key):
    """PyTorch-default init, eval-mode BN folding, im2col tap fusion, and packing
    into two HBM slabs:
       w: (5824, 256) bf16  -- all matmul weights (zero lane-padded to width 256)
       v: (11, 256)   f32   -- biases / BN-folded offsets / final 1x1 row + bias
    """
    ks = iter(jax.random.split(key, 32))

    def u(shape, fan_in):
        bound = 1.0 / float(fan_in) ** 0.5
        return jax.random.uniform(next(ks), shape, jnp.float32, -bound, bound)

    bn_s = 1.0 / float(1.0 + _BN_EPS) ** 0.5   # gamma=1, beta=0, mean=0, var=1

    def conv3(cin, cout):
        # PyTorch Conv1d weight (cout, cin, 3); fan_in = cin*3.  BN scale folded.
        w = u((cout, cin, 3), cin * 3)
        b = u((cout,), cin * 3)
        wf = jnp.concatenate([w[:, :, k].T for k in range(3)], axis=0)  # (3*cin, cout)
        return wf * bn_s, b * bn_s

    def upconv(cin, cout):
        # PyTorch ConvTranspose1d weight (cin, cout, 2); fan_in = cout*2.
        w = u((cin, cout, 2), cout * 2)
        b = u((cout,), cout * 2)
        return jnp.concatenate([w[:, :, 0], w[:, :, 1]], axis=0), b     # (2*cin, cout)

    u1w, u1b = upconv(512, 256)
    c11w, c11b = conv3(512, 256)     # dec1 conv1 on [up(256) | skip(256)]
    c12w, c12b = conv3(256, 256)
    u2w, u2b = upconv(256, 128)
    c21w, c21b = conv3(256, 128)
    c22w, c22b = conv3(128, 128)
    u3w, u3b = upconv(128, 64)
    c31w, c31b = conv3(128, 64)
    c32w, c32b = conv3(64, 64)
    fww = u((1, 64, 1), 64)          # final Conv1d(64 -> 1, k=1)
    fwb = u((1,), 64)

    mats = [("u1", u1w), ("c11", c11w), ("c12", c12w),
            ("u2", u2w), ("c21", c21w), ("c22", c22w),
            ("u3", u3w), ("c31", c31w), ("c32", c32w)]
    offs, rows, off = {}, [], 0
    for name, m in mats:
        offs[name] = off
        r, c = m.shape
        if c < _LANE:
            m = jnp.concatenate([m, jnp.zeros((r, _LANE - c), jnp.float32)], axis=1)
        rows.append(m)
        off += r
    w_packed = jnp.concatenate(rows, axis=0).astype(MATMUL_DTYPE)       # (5824, 256) bf16

    vec_rows = [u1b, c11b, c12b, u2b, c21b, c22b, u3b, c31b, c32b,
                fww[0, :, 0], fwb]
    v_rows = []
    for vr in vec_rows:
        vr = jnp.asarray(vr, jnp.float32).reshape(1, -1)
        v_rows.append(jnp.concatenate(
            [vr, jnp.zeros((1, _LANE - vr.shape[1]), jnp.float32)], axis=1))
    v_packed = jnp.concatenate(v_rows, axis=0)                          # (11, 256) f32

    return {"w": w_packed, "v": v_packed, "offs": offs}


# ----------------------------- main --------------------------------------------

if __name__ == "__main__":
    key = jax.random.PRNGKey(0)
    k1, k2, k3, k4, kp = jax.random.split(key, 5)

    B = 2
    target_length = 32
    # Encoder skip activations in PyTorch NCW convention (B, C, L).
    x1_ncw = jax.random.normal(k1, (B, 64, 32), jnp.float32)
    x2_ncw = jax.random.normal(k2, (B, 128, 16), jnp.float32)
    x3_ncw = jax.random.normal(k3, (B, 256, 8), jnp.float32)
    x4_ncw = jax.random.normal(k4, (B, 512, 4), jnp.float32)

    params = init_params(kp)

    # NCW -> (B, L, C) channels-last for the kernel (channels on lanes).
    x1 = jnp.transpose(x1_ncw, (0, 2, 1))
    x2 = jnp.transpose(x2_ncw, (0, 2, 1))
    x3 = jnp.transpose(x3_ncw, (0, 2, 1))
    x4 = jnp.transpose(x4_ncw, (0, 2, 1))

    out_blc = unet_decoder_forward(params, x1, x2, x3, x4, target_length)
    out = jnp.transpose(out_blc, (0, 2, 1))      # back to NCW: (B, 1, target_length)
    jax.block_until_ready(out)

    assert out.shape == (B, 1, target_length), out.shape
    assert bool(jnp.all(jnp.isfinite(out)))
    assert bool(jnp.all((out >= 0.0) & (out <= 1.0)))
    print("KERNEL_OK")
</pallas_src>

<mosaic_0001>
module attributes {stable_mosaic.version = 11 : i64} {
  func.func @kernel(%arg0: memref<8x512xf32, #tpu.memory_space<vmem>>, %arg1: memref<16x256xf32, #tpu.memory_space<vmem>>, %arg2: memref<32x128xf32, #tpu.memory_space<vmem>>, %arg3: memref<64x64xf32, #tpu.memory_space<vmem>>, %arg4: memref<5824x256xbf16, #tpu.memory_space<vmem>>, %arg5: memref<11x256xf32, #tpu.memory_space<vmem>>, %arg6: memref<64x1xf32, #tpu.memory_space<vmem>>) attributes {dimension_semantics = [], scalar_prefetch = 0 : i64, scratch_operands = 0 : i64, tpu.core_type = #tpu.core_type<tc>} {
    %c0 = arith.constant 0 : index
    %c0_0 = arith.constant 0 : index
    %0 = vector.load %arg0[%c0, %c0_0] : memref<8x512xf32, #tpu.memory_space<vmem>>, vector<8x512xf32>
    %c0_1 = arith.constant 0 : index
    %c0_2 = arith.constant 0 : index
    %1 = vector.load %arg4[%c0_1, %c0_2] : memref<5824x256xbf16, #tpu.memory_space<vmem>>, vector<512x256xbf16>
    %c512 = arith.constant 512 : index
    %c0_3 = arith.constant 0 : index
    %2 = vector.load %arg4[%c512, %c0_3] : memref<5824x256xbf16, #tpu.memory_space<vmem>>, vector<512x256xbf16>
    %c0_4 = arith.constant 0 : index
    %c0_5 = arith.constant 0 : index
    %3 = vector.load %arg5[%c0_4, %c0_5] : memref<11x256xf32, #tpu.memory_space<vmem>>, vector<1x256xf32>
    %4 = tpu.iota {dimensions = array<i32: 0>} : vector<16x8xi32>
    %5 = tpu.iota {dimensions = array<i32: 1>} : vector<16x8xi32>
    %c2_i32 = arith.constant 2 : i32
    %6 = vector.broadcast %c2_i32 : i32 to vector<16x8xi32>
    %7 = arith.muli %6, %5 : vector<16x8xi32>
    %8 = arith.cmpi eq, %4, %7 : vector<16x8xi32>
    %c2_i32_6 = arith.constant 2 : i32
    %9 = vector.broadcast %c2_i32_6 : i32 to vector<16x8xi32>
    %10 = arith.muli %9, %5 : vector<16x8xi32>
    %c1_i32 = arith.constant 1 : i32
    %11 = vector.broadcast %c1_i32 : i32 to vector<16x8xi32>
    %12 = arith.addi %10, %11 : vector<16x8xi32>
    %13 = arith.cmpi eq, %4, %12 : vector<16x8xi32>
    %14 = arith.ori %8, %13 : vector<16x8xi1>
    %15 = arith.extui %14 : vector<16x8xi1> to vector<16x8xi32>
    %16 = arith.sitofp %15 : vector<16x8xi32> to vector<16x8xf32>
    %17 = arith.truncf %16 : vector<16x8xf32> to vector<16x8xbf16>
    %18 = arith.truncf %0 : vector<8x512xf32> to vector<8x512xbf16>
    %cst = arith.constant dense<0.000000e+00> : vector<16x512xf32>
    %19 = tpu.matmul %17, %18, %cst {dimension_numbers = #tpu.dot_dimension_numbers<[1], [0], [0], [1], [0, 0, 1, 1], [], []>} : vector<16x8xbf16>, vector<8x512xbf16>, vector<16x512xf32> -> vector<16x512xf32>
    %20 = arith.truncf %19 : vector<16x512xf32> to vector<16x512xbf16>
    %cst_7 = arith.constant dense<0.000000e+00> : vector<16x256xf32>
    %21 = tpu.matmul %20, %1, %cst_7 {dimension_numbers = #tpu.dot_dimension_numbers<[1], [0], [0], [1], [0, 0, 1, 1], [], []>} : vector<16x512xbf16>, vector<512x256xbf16>, vector<16x256xf32> -> vector<16x256xf32>
    %22 = arith.truncf %19 : vector<16x512xf32> to vector<16x512xbf16>
    %cst_8 = arith.constant dense<0.000000e+00> : vector<16x256xf32>
    %23 = tpu.matmul %22, %2, %cst_8 {dimension_numbers = #tpu.dot_dimension_numbers<[1], [0], [0], [1], [0, 0, 1, 1], [], []>} : vector<16x512xbf16>, vector<512x256xbf16>, vector<16x256xf32> -> vector<16x256xf32>
    %24 = tpu.iota {dimensions = array<i32: 0>} : vector<16x1xi32>
    %c1_i32_9 = arith.constant 1 : i32
    %25 = vector.broadcast %c1_i32_9 : i32 to vector<16x1xi32>
    %26 = arith.andi %24, %25 : vector<16x1xi32>
    %c0_i32 = arith.constant 0 : i32
    %27 = vector.broadcast %c0_i32 : i32 to vector<16x1xi32>
    %28 = arith.cmpi eq, %26, %27 : vector<16x1xi32>
    %29 = vector.shape_cast %28 : vector<16x1xi1> to vector<16x1xi1>
    %30 = vector.broadcast %29 : vector<16x1xi1> to vector<16x256xi1>
    %31 = arith.select %30, %21, %23 : vector<16x256xi1>, vector<16x256xf32>
    %32 = vector.broadcast %3 : vector<1x256xf32> to vector<16x256xf32>
    %33 = arith.addf %31, %32 : vector<16x256xf32>
    %c0_10 = arith.constant 0 : index
    %c0_11 = arith.constant 0 : index
    %34 = vector.load %arg1[%c0_10, %c0_11] : memref<16x256xf32, #tpu.memory_space<vmem>>, vector<16x256xf32>
    %35 = tpu.concatenate %33, %34 in 1 : vector<16x256xf32>, vector<16x256xf32> -> vector<16x512xf32>
    %c1024 = arith.constant 1024 : index
    %c0_12 = arith.constant 0 : index
    %36 = vector.load %arg4[%c1024, %c0_12] : memref<5824x256xbf16, #tpu.memory_space<vmem>>, vector<1536x256xbf16>
    %c1 = arith.constant 1 : index
    %c0_13 = arith.constant 0 : index
    %37 = vector.load %arg5[%c1, %c0_13] : memref<11x256xf32, #tpu.memory_space<vmem>>, vector<1x256xf32>
    %cst_14 = arith.constant 0.000000e+00 : f32
    %38 = vector.broadcast %cst_14 : f32 to vector<1x512xf32>
    %39 = vector.extract_strided_slice %35 {offsets = [0, 0], sizes = [15, 512], strides = [1, 1]} : vector<16x512xf32> to vector<15x512xf32>
    %40 = tpu.concatenate %38, %39 in 0 : vector<1x512xf32>, vector<15x512xf32> -> vector<16x512xf32>
    %41 = vector.extract_strided_slice %35 {offsets = [1, 0], sizes = [15, 512], strides = [1, 1]} : vector<16x512xf32> to vector<15x512xf32>
    %42 = tpu.concatenate %41, %38 in 0 : vector<15x512xf32>, vector<1x512xf32> -> vector<16x512xf32>
    %43 = tpu.iota {dimensions = array<i32: 0>} : vector<16x1xi32>
    %c7_i32 = arith.constant 7 : i32
    %44 = vector.broadcast %c7_i32 : i32 to vector<16x1xi32>
    %45 = arith.andi %43, %44 : vector<16x1xi32>
    %c0_i32_15 = arith.constant 0 : i32
    %46 = vector.broadcast %c0_i32_15 : i32 to vector<16x1xi32>
    %47 = arith.cmpi eq, %45, %46 : vector<16x1xi32>
    %cst_16 = arith.constant 0.000000e+00 : f32
    %48 = vector.shape_cast %47 : vector<16x1xi1> to vector<16x1xi1>
    %49 = vector.broadcast %48 : vector<16x1xi1> to vector<16x512xi1>
    %50 = vector.broadcast %cst_16 : f32 to vector<16x512xf32>
    %51 = arith.select %49, %50, %40 : vector<16x512xi1>, vector<16x512xf32>
    %c7_i32_17 = arith.constant 7 : i32
    %52 = vector.broadcast %c7_i32_17 : i32 to vector<16x1xi32>
    %53 = arith.cmpi eq, %45, %52 : vector<16x1xi32>
    %cst_18 = arith.constant 0.000000e+00 : f32
    %54 = vector.shape_cast %53 : vector<16x1xi1> to vector<16x1xi1>
    %55 = vector.broadcast %54 : vector<16x1xi1> to vector<16x512xi1>
    %56 = vector.broadcast %cst_18 : f32 to vector<16x512xf32>
    %57 = arith.select %55, %56, %42 : vector<16x512xi1>, vector<16x512xf32>
    %58 = tpu.concatenate %51, %35, %57 in 1 : vector<16x512xf32>, vector<16x512xf32>, vector<16x512xf32> -> vector<16x1536xf32>
    %59 = arith.truncf %58 : vector<16x1536xf32> to vector<16x1536xbf16>
    %cst_19 = arith.constant dense<0.000000e+00> : vector<16x256xf32>
    %60 = tpu.matmul %59, %36, %cst_19 {dimension_numbers = #tpu.dot_dimension_numbers<[1], [0], [0], [1], [0, 0, 1, 1], [], []>} : vector<16x1536xbf16>, vector<1536x256xbf16>, vector<16x256xf32> -> vector<16x256xf32>
    %61 = vector.broadcast %37 : vector<1x256xf32> to vector<16x256xf32>
    %62 = arith.addf %60, %61 : vector<16x256xf32>
    %cst_20 = arith.constant 0.000000e+00 : f32
    %63 = vector.broadcast %cst_20 : f32 to vector<16x256xf32>
    %64 = arith.maximumf %62, %63 : vector<16x256xf32>
    %c2560 = arith.constant 2560 : index
    %c0_21 = arith.constant 0 : index
    %65 = vector.load %arg4[%c2560, %c0_21] : memref<5824x256xbf16, #tpu.memory_space<vmem>>, vector<768x256xbf16>
    %c2 = arith.constant 2 : index
    %c0_22 = arith.constant 0 : index
    %66 = vector.load %arg5[%c2, %c0_22] : memref<11x256xf32, #tpu.memory_space<vmem>>, vector<1x256xf32>
    %cst_23 = arith.constant 0.000000e+00 : f32
    %67 = vector.broadcast %cst_23 : f32 to vector<1x256xf32>
    %68 = vector.extract_strided_slice %64 {offsets = [0, 0], sizes = [15, 256], strides = [1, 1]} : vector<16x256xf32> to vector<15x256xf32>
    %69 = tpu.concatenate %67, %68 in 0 : vector<1x256xf32>, vector<15x256xf32> -> vector<16x256xf32>
    %70 = vector.extract_strided_slice %64 {offsets = [1, 0], sizes = [15, 256], strides = [1, 1]} : vector<16x256xf32> to vector<15x256xf32>
    %71 = tpu.concatenate %70, %67 in 0 : vector<15x256xf32>, vector<1x256xf32> -> vector<16x256xf32>
    %72 = tpu.iota {dimensions = array<i32: 0>} : vector<16x1xi32>
    %c7_i32_24 = arith.constant 7 : i32
    %73 = vector.broadcast %c7_i32_24 : i32 to vector<16x1xi32>
    %74 = arith.andi %72, %73 : vector<16x1xi32>
    %c0_i32_25 = arith.constant 0 : i32
    %75 = vector.broadcast %c0_i32_25 : i32 to vector<16x1xi32>
    %76 = arith.cmpi eq, %74, %75 : vector<16x1xi32>
    %cst_26 = arith.constant 0.000000e+00 : f32
    %77 = vector.shape_cast %76 : vector<16x1xi1> to vector<16x1xi1>
    %78 = vector.broadcast %77 : vector<16x1xi1> to vector<16x256xi1>
    %79 = vector.broadcast %cst_26 : f32 to vector<16x256xf32>
    %80 = arith.select %78, %79, %69 : vector<16x256xi1>, vector<16x256xf32>
    %c7_i32_27 = arith.constant 7 : i32
    %81 = vector.broadcast %c7_i32_27 : i32 to vector<16x1xi32>
    %82 = arith.cmpi eq, %74, %81 : vector<16x1xi32>
    %cst_28 = arith.constant 0.000000e+00 : f32
    %83 = vector.shape_cast %82 : vector<16x1xi1> to vector<16x1xi1>
    %84 = vector.broadcast %83 : vector<16x1xi1> to vector<16x256xi1>
    %85 = vector.broadcast %cst_28 : f32 to vector<16x256xf32>
    %86 = arith.select %84, %85, %71 : vector<16x256xi1>, vector<16x256xf32>
    %87 = tpu.concatenate %80, %64, %86 in 1 : vector<16x256xf32>, vector<16x256xf32>, vector<16x256xf32> -> vector<16x768xf32>
    %88 = arith.truncf %87 : vector<16x768xf32> to vector<16x768xbf16>
    %cst_29 = arith.constant dense<0.000000e+00> : vector<16x256xf32>
    %89 = tpu.matmul %88, %65, %cst_29 {dimension_numbers = #tpu.dot_dimension_numbers<[1], [0], [0], [1], [0, 0, 1, 1], [], []>} : vector<16x768xbf16>, vector<768x256xbf16>, vector<16x256xf32> -> vector<16x256xf32>
    %90 = vector.broadcast %66 : vector<1x256xf32> to vector<16x256xf32>
    %91 = arith.addf %89, %90 : vector<16x256xf32>
    %cst_30 = arith.constant 0.000000e+00 : f32
    %92 = vector.broadcast %cst_30 : f32 to vector<16x256xf32>
    %93 = arith.maximumf %91, %92 : vector<16x256xf32>
    %c3328 = arith.constant 3328 : index
    %c0_31 = arith.constant 0 : index
    %94 = vector.load %arg4[%c3328, %c0_31] : memref<5824x256xbf16, #tpu.memory_space<vmem>>, vector<256x128xbf16>
    %c3584 = arith.constant 3584 : index
    %c0_32 = arith.constant 0 : index
    %95 = vector.load %arg4[%c3584, %c0_32] : memref<5824x256xbf16, #tpu.memory_space<vmem>>, vector<256x128xbf16>
    %c3 = arith.constant 3 : index
    %c0_33 = arith.constant 0 : index
    %96 = vector.load %arg5[%c3, %c0_33] : memref<11x256xf32, #tpu.memory_space<vmem>>, vector<1x128xf32>
    %97 = tpu.iota {dimensions = array<i32: 0>} : vector<32x16xi32>
    %98 = tpu.iota {dimensions = array<i32: 1>} : vector<32x16xi32>
    %c2_i32_34 = arith.constant 2 : i32
    %99 = vector.broadcast %c2_i32_34 : i32 to vector<32x16xi32>
    %100 = arith.muli %99, %98 : vector<32x16xi32>
    %101 = arith.cmpi eq, %97, %100 : vector<32x16xi32>
    %c2_i32_35 = arith.constant 2 : i32
    %102 = vector.broadcast %c2_i32_35 : i32 to vector<32x16xi32>
    %103 = arith.muli %102, %98 : vector<32x16xi32>
    %c1_i32_36 = arith.constant 1 : i32
    %104 = vector.broadcast %c1_i32_36 : i32 to vector<32x16xi32>
    %105 = arith.addi %103, %104 : vector<32x16xi32>
    %106 = arith.cmpi eq, %97, %105 : vector<32x16xi32>
    %107 = arith.ori %101, %106 : vector<32x16xi1>
    %108 = arith.extui %107 : vector<32x16xi1> to vector<32x16xi32>
    %109 = arith.sitofp %108 : vector<32x16xi32> to vector<32x16xf32>
    %110 = arith.truncf %109 : vector<32x16xf32> to vector<32x16xbf16>
    %111 = arith.truncf %93 : vector<16x256xf32> to vector<16x256xbf16>
    %cst_37 = arith.constant dense<0.000000e+00> : vector<32x256xf32>
    %112 = tpu.matmul %110, %111, %cst_37 {dimension_numbers = #tpu.dot_dimension_numbers<[1], [0], [0], [1], [0, 0, 1, 1], [], []>} : vector<32x16xbf16>, vector<16x256xbf16>, vector<32x256xf32> -> vector<32x256xf32>
    %113 = arith.truncf %112 : vector<32x256xf32> to vector<32x256xbf16>
    %cst_38 = arith.constant dense<0.000000e+00> : vector<32x128xf32>
    %114 = tpu.matmul %113, %94, %cst_38 {dimension_numbers = #tpu.dot_dimension_numbers<[1], [0], [0], [1], [0, 0, 1, 1], [], []>} : vector<32x256xbf16>, vector<256x128xbf16>, vector<32x128xf32> -> vector<32x128xf32>
    %115 = arith.truncf %112 : vector<32x256xf32> to vector<32x256xbf16>
    %cst_39 = arith.constant dense<0.000000e+00> : vector<32x128xf32>
    %116 = tpu.matmul %115, %95, %cst_39 {dimension_numbers = #tpu.dot_dimension_numbers<[1], [0], [0], [1], [0, 0, 1, 1], [], []>} : vector<32x256xbf16>, vector<256x128xbf16>, vector<32x128xf32> -> vector<32x128xf32>
    %117 = tpu.iota {dimensions = array<i32: 0>} : vector<32x1xi32>
    %c1_i32_40 = arith.constant 1 : i32
    %118 = vector.broadcast %c1_i32_40 : i32 to vector<32x1xi32>
    %119 = arith.andi %117, %118 : vector<32x1xi32>
    %c0_i32_41 = arith.constant 0 : i32
    %120 = vector.broadcast %c0_i32_41 : i32 to vector<32x1xi32>
    %121 = arith.cmpi eq, %119, %120 : vector<32x1xi32>
    %122 = vector.shape_cast %121 : vector<32x1xi1> to vector<32x1xi1>
    %123 = vector.broadcast %122 : vector<32x1xi1> to vector<32x128xi1>
    %124 = arith.select %123, %114, %116 : vector<32x128xi1>, vector<32x128xf32>
    %125 = vector.broadcast %96 : vector<1x128xf32> to vector<32x128xf32>
    %126 = arith.addf %124, %125 : vector<32x128xf32>
    %c0_42 = arith.constant 0 : index
    %c0_43 = arith.constant 0 : index
    %127 = vector.load %arg2[%c0_42, %c0_43] : memref<32x128xf32, #tpu.memory_space<vmem>>, vector<32x128xf32>
    %128 = tpu.concatenate %126, %127 in 1 : vector<32x128xf32>, vector<32x128xf32> -> vector<32x256xf32>
    %c3840 = arith.constant 3840 : index
    %c0_44 = arith.constant 0 : index
    %129 = vector.load %arg4[%c3840, %c0_44] : memref<5824x256xbf16, #tpu.memory_space<vmem>>, vector<768x128xbf16>
    %c4 = arith.constant 4 : index
    %c0_45 = arith.constant 0 : index
    %130 = vector.load %arg5[%c4, %c0_45] : memref<11x256xf32, #tpu.memory_space<vmem>>, vector<1x128xf32>
    %cst_46 = arith.constant 0.000000e+00 : f32
    %131 = vector.broadcast %cst_46 : f32 to vector<1x256xf32>
    %132 = vector.extract_strided_slice %128 {offsets = [0, 0], sizes = [31, 256], strides = [1, 1]} : vector<32x256xf32> to vector<31x256xf32>
    %133 = tpu.concatenate %131, %132 in 0 : vector<1x256xf32>, vector<31x256xf32> -> vector<32x256xf32>
    %134 = vector.extract_strided_slice %128 {offsets = [1, 0], sizes = [31, 256], strides = [1, 1]} : vector<32x256xf32> to vector<31x256xf32>
    %135 = tpu.concatenate %134, %131 in 0 : vector<31x256xf32>, vector<1x256xf32> -> vector<32x256xf32>
    %136 = tpu.iota {dimensions = array<i32: 0>} : vector<32x1xi32>
    %c15_i32 = arith.constant 15 : i32
    %137 = vector.broadcast %c15_i32 : i32 to vector<32x1xi32>
    %138 = arith.andi %136, %137 : vector<32x1xi32>
    %c0_i32_47 = arith.constant 0 : i32
    %139 = vector.broadcast %c0_i32_47 : i32 to vector<32x1xi32>
    %140 = arith.cmpi eq, %138, %139 : vector<32x1xi32>
    %cst_48 = arith.constant 0.000000e+00 : f32
    %141 = vector.shape_cast %140 : vector<32x1xi1> to vector<32x1xi1>
    %142 = vector.broadcast %141 : vector<32x1xi1> to vector<32x256xi1>
    %143 = vector.broadcast %cst_48 : f32 to vector<32x256xf32>
    %144 = arith.select %142, %143, %133 : vector<32x256xi1>, vector<32x256xf32>
    %c15_i32_49 = arith.constant 15 : i32
    %145 = vector.broadcast %c15_i32_49 : i32 to vector<32x1xi32>
    %146 = arith.cmpi eq, %138, %145 : vector<32x1xi32>
    %cst_50 = arith.constant 0.000000e+00 : f32
    %147 = vector.shape_cast %146 : vector<32x1xi1> to vector<32x1xi1>
    %148 = vector.broadcast %147 : vector<32x1xi1> to vector<32x256xi1>
    %149 = vector.broadcast %cst_50 : f32 to vector<32x256xf32>
    %150 = arith.select %148, %149, %135 : vector<32x256xi1>, vector<32x256xf32>
    %151 = tpu.concatenate %144, %128, %150 in 1 : vector<32x256xf32>, vector<32x256xf32>, vector<32x256xf32> -> vector<32x768xf32>
    %152 = arith.truncf %151 : vector<32x768xf32> to vector<32x768xbf16>
    %cst_51 = arith.constant dense<0.000000e+00> : vector<32x128xf32>
    %153 = tpu.matmul %152, %129, %cst_51 {dimension_numbers = #tpu.dot_dimension_numbers<[1], [0], [0], [1], [0, 0, 1, 1], [], []>} : vector<32x768xbf16>, vector<768x128xbf16>, vector<32x128xf32> -> vector<32x128xf32>
    %154 = vector.broadcast %130 : vector<1x128xf32> to vector<32x128xf32>
    %155 = arith.addf %153, %154 : vector<32x128xf32>
    %cst_52 = arith.constant 0.000000e+00 : f32
    %156 = vector.broadcast %cst_52 : f32 to vector<32x128xf32>
    %157 = arith.maximumf %155, %156 : vector<32x128xf32>
    %c4608 = arith.constant 4608 : index
    %c0_53 = arith.constant 0 : index
    %158 = vector.load %arg4[%c4608, %c0_53] : memref<5824x256xbf16, #tpu.memory_space<vmem>>, vector<384x128xbf16>
    %c5 = arith.constant 5 : index
    %c0_54 = arith.constant 0 : index
    %159 = vector.load %arg5[%c5, %c0_54] : memref<11x256xf32, #tpu.memory_space<vmem>>, vector<1x128xf32>
    %cst_55 = arith.constant 0.000000e+00 : f32
    %160 = vector.broadcast %cst_55 : f32 to vector<1x128xf32>
    %161 = vector.extract_strided_slice %157 {offsets = [0, 0], sizes = [31, 128], strides = [1, 1]} : vector<32x128xf32> to vector<31x128xf32>
    %162 = tpu.concatenate %160, %161 in 0 : vector<1x128xf32>, vector<31x128xf32> -> vector<32x128xf32>
    %163 = vector.extract_strided_slice %157 {offsets = [1, 0], sizes = [31, 128], strides = [1, 1]} : vector<32x128xf32> to vector<31x128xf32>
    %164 = tpu.concatenate %163, %160 in 0 : vector<31x128xf32>, vector<1x128xf32> -> vector<32x128xf32>
    %165 = tpu.iota {dimensions = array<i32: 0>} : vector<32x1xi32>
    %c15_i32_56 = arith.constant 15 : i32
    %166 = vector.broadcast %c15_i32_56 : i32 to vector<32x1xi32>
    %167 = arith.andi %165, %166 : vector<32x1xi32>
    %c0_i32_57 = arith.constant 0 : i32
    %168 = vector.broadcast %c0_i32_57 : i32 to vector<32x1xi32>
    %169 = arith.cmpi eq, %167, %168 : vector<32x1xi32>
    %cst_58 = arith.constant 0.000000e+00 : f32
    %170 = vector.shape_cast %169 : vector<32x1xi1> to vector<32x1xi1>
    %171 = vector.broadcast %170 : vector<32x1xi1> to vector<32x128xi1>
    %172 = vector.broadcast %cst_58 : f32 to vector<32x128xf32>
    %173 = arith.select %171, %172, %162 : vector<32x128xi1>, vector<32x128xf32>
    %c15_i32_59 = arith.constant 15 : i32
    %174 = vector.broadcast %c15_i32_59 : i32 to vector<32x1xi32>
    %175 = arith.cmpi eq, %167, %174 : vector<32x1xi32>
    %cst_60 = arith.constant 0.000000e+00 : f32
    %176 = vector.shape_cast %175 : vector<32x1xi1> to vector<32x1xi1>
    %177 = vector.broadcast %176 : vector<32x1xi1> to vector<32x128xi1>
    %178 = vector.broadcast %cst_60 : f32 to vector<32x128xf32>
    %179 = arith.select %177, %178, %164 : vector<32x128xi1>, vector<32x128xf32>
    %180 = tpu.concatenate %173, %157, %179 in 1 : vector<32x128xf32>, vector<32x128xf32>, vector<32x128xf32> -> vector<32x384xf32>
    %181 = arith.truncf %180 : vector<32x384xf32> to vector<32x384xbf16>
    %cst_61 = arith.constant dense<0.000000e+00> : vector<32x128xf32>
    %182 = tpu.matmul %181, %158, %cst_61 {dimension_numbers = #tpu.dot_dimension_numbers<[1], [0], [0], [1], [0, 0, 1, 1], [], []>} : vector<32x384xbf16>, vector<384x128xbf16>, vector<32x128xf32> -> vector<32x128xf32>
    %183 = vector.broadcast %159 : vector<1x128xf32> to vector<32x128xf32>
    %184 = arith.addf %182, %183 : vector<32x128xf32>
    %cst_62 = arith.constant 0.000000e+00 : f32
    %185 = vector.broadcast %cst_62 : f32 to vector<32x128xf32>
    %186 = arith.maximumf %184, %185 : vector<32x128xf32>
    %c4992 = arith.constant 4992 : index
    %c0_63 = arith.constant 0 : index
    %187 = vector.load %arg4[%c4992, %c0_63] : memref<5824x256xbf16, #tpu.memory_space<vmem>>, vector<128x64xbf16>
    %c5120 = arith.constant 5120 : index
    %c0_64 = arith.constant 0 : index
    %188 = vector.load %arg4[%c5120, %c0_64] : memref<5824x256xbf16, #tpu.memory_space<vmem>>, vector<128x64xbf16>
    %c6 = arith.constant 6 : index
    %c0_65 = arith.constant 0 : index
    %189 = vector.load %arg5[%c6, %c0_65] : memref<11x256xf32, #tpu.memory_space<vmem>>, vector<1x64xf32>
    %190 = tpu.iota {dimensions = array<i32: 0>} : vector<64x32xi32>
    %191 = tpu.iota {dimensions = array<i32: 1>} : vector<64x32xi32>
    %c2_i32_66 = arith.constant 2 : i32
    %192 = vector.broadcast %c2_i32_66 : i32 to vector<64x32xi32>
    %193 = arith.muli %192, %191 : vector<64x32xi32>
    %194 = arith.cmpi eq, %190, %193 : vector<64x32xi32>
    %c2_i32_67 = arith.constant 2 : i32
    %195 = vector.broadcast %c2_i32_67 : i32 to vector<64x32xi32>
    %196 = arith.muli %195, %191 : vector<64x32xi32>
    %c1_i32_68 = arith.constant 1 : i32
    %197 = vector.broadcast %c1_i32_68 : i32 to vector<64x32xi32>
    %198 = arith.addi %196, %197 : vector<64x32xi32>
    %199 = arith.cmpi eq, %190, %198 : vector<64x32xi32>
    %200 = arith.ori %194, %199 : vector<64x32xi1>
    %201 = arith.extui %200 : vector<64x32xi1> to vector<64x32xi32>
    %202 = arith.sitofp %201 : vector<64x32xi32> to vector<64x32xf32>
    %203 = arith.truncf %202 : vector<64x32xf32> to vector<64x32xbf16>
    %204 = arith.truncf %186 : vector<32x128xf32> to vector<32x128xbf16>
    %cst_69 = arith.constant dense<0.000000e+00> : vector<64x128xf32>
    %205 = tpu.matmul %203, %204, %cst_69 {dimension_numbers = #tpu.dot_dimension_numbers<[1], [0], [0], [1], [0, 0, 1, 1], [], []>} : vector<64x32xbf16>, vector<32x128xbf16>, vector<64x128xf32> -> vector<64x128xf32>
    %206 = arith.truncf %205 : vector<64x128xf32> to vector<64x128xbf16>
    %cst_70 = arith.constant dense<0.000000e+00> : vector<64x64xf32>
    %207 = tpu.matmul %206, %187, %cst_70 {dimension_numbers = #tpu.dot_dimension_numbers<[1], [0], [0], [1], [0, 0, 1, 1], [], []>} : vector<64x128xbf16>, vector<128x64xbf16>, vector<64x64xf32> -> vector<64x64xf32>
    %208 = arith.truncf %205 : vector<64x128xf32> to vector<64x128xbf16>
    %cst_71 = arith.constant dense<0.000000e+00> : vector<64x64xf32>
    %209 = tpu.matmul %208, %188, %cst_71 {dimension_numbers = #tpu.dot_dimension_numbers<[1], [0], [0], [1], [0, 0, 1, 1], [], []>} : vector<64x128xbf16>, vector<128x64xbf16>, vector<64x64xf32> -> vector<64x64xf32>
    %210 = tpu.iota {dimensions = array<i32: 0>} : vector<64x1xi32>
    %c1_i32_72 = arith.constant 1 : i32
    %211 = vector.broadcast %c1_i32_72 : i32 to vector<64x1xi32>
    %212 = arith.andi %210, %211 : vector<64x1xi32>
    %c0_i32_73 = arith.constant 0 : i32
    %213 = vector.broadcast %c0_i32_73 : i32 to vector<64x1xi32>
    %214 = arith.cmpi eq, %212, %213 : vector<64x1xi32>
    %215 = vector.shape_cast %214 : vector<64x1xi1> to vector<64x1xi1>
    %216 = vector.broadcast %215 : vector<64x1xi1> to vector<64x64xi1>
    %217 = arith.select %216, %207, %209 : vector<64x64xi1>, vector<64x64xf32>
    %218 = vector.broadcast %189 : vector<1x64xf32> to vector<64x64xf32>
    %219 = arith.addf %217, %218 : vector<64x64xf32>
    %c0_74 = arith.constant 0 : index
    %c0_75 = arith.constant 0 : index
    %220 = vector.load %arg3[%c0_74, %c0_75] : memref<64x64xf32, #tpu.memory_space<vmem>>, vector<64x64xf32>
    %221 = tpu.concatenate %219, %220 in 1 : vector<64x64xf32>, vector<64x64xf32> -> vector<64x128xf32>
    %c5248 = arith.constant 5248 : index
    %c0_76 = arith.constant 0 : index
    %222 = vector.load %arg4[%c5248, %c0_76] : memref<5824x256xbf16, #tpu.memory_space<vmem>>, vector<384x64xbf16>
    %c7 = arith.constant 7 : index
    %c0_77 = arith.constant 0 : index
    %223 = vector.load %arg5[%c7, %c0_77] : memref<11x256xf32, #tpu.memory_space<vmem>>, vector<1x64xf32>
    %cst_78 = arith.constant 0.000000e+00 : f32
    %224 = vector.broadcast %cst_78 : f32 to vector<1x128xf32>
    %225 = vector.extract_strided_slice %221 {offsets = [0, 0], sizes = [63, 128], strides = [1, 1]} : vector<64x128xf32> to vector<63x128xf32>
    %226 = tpu.concatenate %224, %225 in 0 : vector<1x128xf32>, vector<63x128xf32> -> vector<64x128xf32>
    %227 = vector.extract_strided_slice %221 {offsets = [1, 0], sizes = [63, 128], strides = [1, 1]} : vector<64x128xf32> to vector<63x128xf32>
    %228 = tpu.concatenate %227, %224 in 0 : vector<63x128xf32>, vector<1x128xf32> -> vector<64x128xf32>
    %229 = tpu.iota {dimensions = array<i32: 0>} : vector<64x1xi32>
    %c31_i32 = arith.constant 31 : i32
    %230 = vector.broadcast %c31_i32 : i32 to vector<64x1xi32>
    %231 = arith.andi %229, %230 : vector<64x1xi32>
    %c0_i32_79 = arith.constant 0 : i32
    %232 = vector.broadcast %c0_i32_79 : i32 to vector<64x1xi32>
    %233 = arith.cmpi eq, %231, %232 : vector<64x1xi32>
    %cst_80 = arith.constant 0.000000e+00 : f32
    %234 = vector.shape_cast %233 : vector<64x1xi1> to vector<64x1xi1>
    %235 = vector.broadcast %234 : vector<64x1xi1> to vector<64x128xi1>
    %236 = vector.broadcast %cst_80 : f32 to vector<64x128xf32>
    %237 = arith.select %235, %236, %226 : vector<64x128xi1>, vector<64x128xf32>
    %c31_i32_81 = arith.constant 31 : i32
    %238 = vector.broadcast %c31_i32_81 : i32 to vector<64x1xi32>
    %239 = arith.cmpi eq, %231, %238 : vector<64x1xi32>
    %cst_82 = arith.constant 0.000000e+00 : f32
    %240 = vector.shape_cast %239 : vector<64x1xi1> to vector<64x1xi1>
    %241 = vector.broadcast %240 : vector<64x1xi1> to vector<64x128xi1>
    %242 = vector.broadcast %cst_82 : f32 to vector<64x128xf32>
    %243 = arith.select %241, %242, %228 : vector<64x128xi1>, vector<64x128xf32>
    %244 = tpu.concatenate %237, %221, %243 in 1 : vector<64x128xf32>, vector<64x128xf32>, vector<64x128xf32> -> vector<64x384xf32>
    %245 = arith.truncf %244 : vector<64x384xf32> to vector<64x384xbf16>
    %cst_83 = arith.constant dense<0.000000e+00> : vector<64x64xf32>
    %246 = tpu.matmul %245, %222, %cst_83 {dimension_numbers = #tpu.dot_dimension_numbers<[1], [0], [0], [1], [0, 0, 1, 1], [], []>} : vector<64x384xbf16>, vector<384x64xbf16>, vector<64x64xf32> -> vector<64x64xf32>
    %247 = vector.broadcast %223 : vector<1x64xf32> to vector<64x64xf32>
    %248 = arith.addf %246, %247 : vector<64x64xf32>
    %cst_84 = arith.constant 0.000000e+00 : f32
    %249 = vector.broadcast %cst_84 : f32 to vector<64x64xf32>
    %250 = arith.maximumf %248, %249 : vector<64x64xf32>
    %c5632 = arith.constant 5632 : index
    %c0_85 = arith.constant 0 : index
    %251 = vector.load %arg4[%c5632, %c0_85] : memref<5824x256xbf16, #tpu.memory_space<vmem>>, vector<192x64xbf16>
    %c8 = arith.constant 8 : index
    %c0_86 = arith.constant 0 : index
    %252 = vector.load %arg5[%c8, %c0_86] : memref<11x256xf32, #tpu.memory_space<vmem>>, vector<1x64xf32>
    %cst_87 = arith.constant 0.000000e+00 : f32
    %253 = vector.broadcast %cst_87 : f32 to vector<1x64xf32>
    %254 = vector.extract_strided_slice %250 {offsets = [0, 0], sizes = [63, 64], strides = [1, 1]} : vector<64x64xf32> to vector<63x64xf32>
    %255 = tpu.concatenate %253, %254 in 0 : vector<1x64xf32>, vector<63x64xf32> -> vector<64x64xf32>
    %256 = vector.extract_strided_slice %250 {offsets = [1, 0], sizes = [63, 64], strides = [1, 1]} : vector<64x64xf32> to vector<63x64xf32>
    %257 = tpu.concatenate %256, %253 in 0 : vector<63x64xf32>, vector<1x64xf32> -> vector<64x64xf32>
    %258 = tpu.iota {dimensions = array<i32: 0>} : vector<64x1xi32>
    %c31_i32_88 = arith.constant 31 : i32
    %259 = vector.broadcast %c31_i32_88 : i32 to vector<64x1xi32>
    %260 = arith.andi %258, %259 : vector<64x1xi32>
    %c0_i32_89 = arith.constant 0 : i32
    %261 = vector.broadcast %c0_i32_89 : i32 to vector<64x1xi32>
    %262 = arith.cmpi eq, %260, %261 : vector<64x1xi32>
    %cst_90 = arith.constant 0.000000e+00 : f32
    %263 = vector.shape_cast %262 : vector<64x1xi1> to vector<64x1xi1>
    %264 = vector.broadcast %263 : vector<64x1xi1> to vector<64x64xi1>
    %265 = vector.broadcast %cst_90 : f32 to vector<64x64xf32>
    %266 = arith.select %264, %265, %255 : vector<64x64xi1>, vector<64x64xf32>
    %c31_i32_91 = arith.constant 31 : i32
    %267 = vector.broadcast %c31_i32_91 : i32 to vector<64x1xi32>
    %268 = arith.cmpi eq, %260, %267 : vector<64x1xi32>
    %cst_92 = arith.constant 0.000000e+00 : f32
    %269 = vector.shape_cast %268 : vector<64x1xi1> to vector<64x1xi1>
    %270 = vector.broadcast %269 : vector<64x1xi1> to vector<64x64xi1>
    %271 = vector.broadcast %cst_92 : f32 to vector<64x64xf32>
    %272 = arith.select %270, %271, %257 : vector<64x64xi1>, vector<64x64xf32>
    %273 = tpu.concatenate %266, %250, %272 in 1 : vector<64x64xf32>, vector<64x64xf32>, vector<64x64xf32> -> vector<64x192xf32>
    %274 = arith.truncf %273 : vector<64x192xf32> to vector<64x192xbf16>
    %cst_93 = arith.constant dense<0.000000e+00> : vector<64x64xf32>
    %275 = tpu.matmul %274, %251, %cst_93 {dimension_numbers = #tpu.dot_dimension_numbers<[1], [0], [0], [1], [0, 0, 1, 1], [], []>} : vector<64x192xbf16>, vector<192x64xbf16>, vector<64x64xf32> -> vector<64x64xf32>
    %276 = vector.broadcast %252 : vector<1x64xf32> to vector<64x64xf32>
    %277 = arith.addf %275, %276 : vector<64x64xf32>
    %cst_94 = arith.constant 0.000000e+00 : f32
    %278 = vector.broadcast %cst_94 : f32 to vector<64x64xf32>
    %279 = arith.maximumf %277, %278 : vector<64x64xf32>
    %c9 = arith.constant 9 : index
    %c0_95 = arith.constant 0 : index
    %280 = vector.load %arg5[%c9, %c0_95] : memref<11x256xf32, #tpu.memory_space<vmem>>, vector<1x64xf32>
    %c10 = arith.constant 10 : index
    %c0_96 = arith.constant 0 : index
    %281 = vector.load %arg5[%c10, %c0_96] : memref<11x256xf32, #tpu.memory_space<vmem>>, vector<1x1xf32>
    %282 = vector.broadcast %280 : vector<1x64xf32> to vector<64x64xf32>
    %283 = arith.mulf %279, %282 : vector<64x64xf32>
    %cst_97 = arith.constant dense<0.000000e+00> : vector<64xf32>
    %284 = vector.multi_reduction <add>, %283, %cst_97 [1] : vector<64x64xf32> to vector<64xf32>
    %285 = vector.shape_cast %284 : vector<64xf32> to vector<64x1xf32>
    %286 = vector.broadcast %281 : vector<1x1xf32> to vector<64x1xf32>
    %287 = arith.addf %285, %286 : vector<64x1xf32>
    %288 = arith.negf %287 : vector<64x1xf32>
    %289 = math.exp %288 : vector<64x1xf32>
    %cst_98 = arith.constant 1.000000e+00 : f32
    %290 = vector.broadcast %cst_98 : f32 to vector<64x1xf32>
    %291 = arith.addf %290, %289 : vector<64x1xf32>
    %292 = arith.divf %290, %291 : vector<64x1xf32>
    %c0_99 = arith.constant 0 : index
    %c0_100 = arith.constant 0 : index
    %293 = vector.load %arg6[%c0_99, %c0_100] : memref<64x1xf32, #tpu.memory_space<vmem>>, vector<64x1xf32>
    tpu.vector_store %arg6[%c0_99, %c0_100], %292 {strides = array<i32>} : memref<64x1xf32, #tpu.memory_space<vmem>>, vector<64x1xf32>,
    return
  }
}

</mosaic_0001>

<llo_original>
// kernel: tpu_custom_call.1
$region0: #{tpu_custom_call.1}
  #allocation0 [shape = 'u32[]', space=smem, size = 0x4, offset = 0x4, fixed_abs, tag = 'smem constant byte address 0x4 - core index']
  #allocation1 [shape = 'u32[144,128]{1,0:T(1,128)}', space=vmem, size = 0x12000, scoped, tag = 'internal scratch']
  %s0 = inlined_call_operand.hbm [shape: f32[8,512], index: 0, kind: input, shape index: {}]
  %s1 = inlined_call_operand.hbm [shape: f32[16,256], index: 1, kind: input, shape index: {}]
  %s2 = inlined_call_operand.hbm [shape: f32[32,128], index: 2, kind: input, shape index: {}]
  %s3 = inlined_call_operand.hbm [shape: f32[64,64], index: 3, kind: input, shape index: {}]
  %s4 = inlined_call_operand.hbm [shape: bf16[5824,256], index: 4, kind: input, shape index: {}]
  %s5 = inlined_call_operand.hbm [shape: f32[11,256], index: 5, kind: input, shape index: {}]
  %s6 = inlined_call_operand.vmem [shape: f32[64,1], index: 6, kind: output, shape index: {}]
  %s7 = sld [smem:[#allocation0]]
  $region58: #{tpu_custom_call.1} parent=0
    _
  %s9 = ssub.s32 1, %s7
  %s10 = scalar_select 0, %s9, %s7
  $region1: #{tpu_custom_call.1} parent=0
    #allocation2 [shape = 'u8[16384]{0}', space=vmem, size = 0x4000, scoped, tag = 'input window, operand 0, single buffered']
    #allocation3 [shape = 's32[1]{0}', space=sflag, size = 0x4, scoped, tag = 'scoped memory for tpu_custom_call.1']
    #allocation4 [shape = 'u8[16384]{0}', space=vmem, size = 0x4000, scoped, tag = 'input window, operand 1, single buffered']
    #allocation5 [shape = 's32[1]{0}', space=sflag, size = 0x4, scoped, tag = 'scoped memory for tpu_custom_call.1']
    #allocation6 [shape = 'u8[16384]{0}', space=vmem, size = 0x4000, scoped, tag = 'input window, operand 2, single buffered']
    #allocation7 [shape = 'u8[32768]{0}', space=vmem, size = 0x8000, scoped, tag = 'input window, operand 3, single buffered']
    #allocation8 [shape = 's32[1]{0}', space=sflag, size = 0x4, scoped, tag = 'scoped memory for tpu_custom_call.1']
    #allocation9 [shape = 'u8[2981888]{0}', space=vmem, size = 0x2d8000, scoped, tag = 'input window, operand 4, single buffered']
    #allocation10 [shape = 'u8[16384]{0}', space=vmem, size = 0x4000, scoped, tag = 'input window, operand 5, single buffered']
    #allocation11 [shape = 's32[1]{0}', space=sflag, size = 0x4, scoped, tag = 'scoped memory for tpu_custom_call.1']
    %11 = vsyncpa [#allocation3], 0
    %12 = vsyncpa [#allocation5], 0
    %13 = vsyncpa [#allocation8], 0
    %14 = vsyncpa [#allocation11], 0
    // Predicated region
    $region2: #{tpu_custom_call.1} parent=1 // pred_check
      _
    $region3: #{tpu_custom_call.1} parent=1 // pred_check_branch
      %16 = sbr.rel (0) target = $region5
    $region4: #{tpu_custom_call.1} parent=1 // pred_region
      %s18 = ssub.s32 512, 512
      %19 = vsyncadd [#allocation3], %s18
      %s21 = sshll.u32 [#allocation2], 4
      %s22 = int_to_ptr.vmem [resolvable:$true] %s21
      %24 = dma.hbm_to_vmem [thread:$0]  %s0, 512, %s22, [#allocation3]
    $region5: #{tpu_custom_call.1} parent=1 // pred_fallthru
      _
    // Predicated region
    $region6: #{tpu_custom_call.1} parent=1 // pred_check
      _
    $region7: #{tpu_custom_call.1} parent=1 // pred_check_branch
      %26 = sbr.rel (0) target = $region9
    $region8: #{tpu_custom_call.1} parent=1 // pred_region
      %s28 = ssub.s32 512, 512
      %29 = vsyncadd [#allocation5], %s28
      %s30 = sshll.u32 [#allocation4], 4
      %s31 = int_to_ptr.vmem [resolvable:$true] %s30
      %36 = dma.hbm_to_vmem [thread:$0]  %s1, 512, %s31, [#allocation5], 256, 256, 16
    $region9: #{tpu_custom_call.1} parent=1 // pred_fallthru
      _
    // Predicated region
    $region10: #{tpu_custom_call.1} parent=1 // pred_check
      _
    $region11: #{tpu_custom_call.1} parent=1 // pred_check_branch
      %38 = sbr.rel (0) target = $region13
    $region12: #{tpu_custom_call.1} parent=1 // pred_region
      %s40 = ssub.s32 512, 512
      %41 = vsyncadd [#allocation5], %s40
      %s42 = sshll.u32 [#allocation6], 4
      %s43 = int_to_ptr.vmem [resolvable:$true] %s42
      %48 = dma.hbm_to_vmem [thread:$0]  %s2, 512, %s43, [#allocation5], 128, 128, 8
    $region13: #{tpu_custom_call.1} parent=1 // pred_fallthru
      _
    // Predicated region
    $region14: #{tpu_custom_call.1} parent=1 // pred_check
      _
    $region15: #{tpu_custom_call.1} parent=1 // pred_check_branch
      %50 = sbr.rel (0) target = $region17
    $region16: #{tpu_custom_call.1} parent=1 // pred_region
      %s52 = ssub.s32 1024, 1024
      %53 = vsyncadd [#allocation8], %s52
      %s54 = sshll.u32 [#allocation7], 4
      %s55 = int_to_ptr.vmem [resolvable:$true] %s54
      %60 = dma.hbm_to_vmem [thread:$0]  %s3, 1024, %s55, [#allocation8], 128, 128, 8
    $region17: #{tpu_custom_call.1} parent=1 // pred_fallthru
      _
    // Predicated region
    $region18: #{tpu_custom_call.1} parent=1 // pred_check
      _
    $region19: #{tpu_custom_call.1} parent=1 // pred_check_branch
      %62 = sbr.rel (0) target = $region21
    $region20: #{tpu_custom_call.1} parent=1 // pred_region
      %s64 = ssub.s32 93184, 93184
      %65 = vsyncadd [#allocation8], %s64
      %s66 = sshll.u32 [#allocation9], 4
      %s67 = int_to_ptr.vmem [resolvable:$true] %s66
      %72 = dma.hbm_to_vmem [thread:$0]  %s4, 93184, %s67, [#allocation8], 128, 128, 8
    $region21: #{tpu_custom_call.1} parent=1 // pred_fallthru
      _
    // Predicated region
    $region22: #{tpu_custom_call.1} parent=1 // pred_check
      _
    $region23: #{tpu_custom_call.1} parent=1 // pred_check_branch
      %74 = sbr.rel (0) target = $region25
    $region24: #{tpu_custom_call.1} parent=1 // pred_region
      %s76 = ssub.s32 512, 512
      %77 = vsyncadd [#allocation11], %s76
      %s78 = sshll.u32 [#allocation10], 4
      %s79 = int_to_ptr.vmem [resolvable:$true] %s78
      %84 = dma.hbm_to_vmem [thread:$0]  %s5, 512, %s79, [#allocation11], 256, 256, 16
    $region25: #{tpu_custom_call.1} parent=1 // pred_fallthru
      _
    // Predicated region
    $region26: #{tpu_custom_call.1} parent=1 // pred_check
      _
    $region27: #{tpu_custom_call.1} parent=1 // pred_check_branch
      %86 = sbr.rel (0) target = $region29
    $region28: #{tpu_custom_call.1} parent=1 // pred_region
      %87 = dma.done [#allocation3], 512
    $region29: #{tpu_custom_call.1} parent=1 // pred_fallthru
      _
    // Predicated region
    $region30: #{tpu_custom_call.1} parent=1 // pred_check
      _
    $region31: #{tpu_custom_call.1} parent=1 // pred_check_branch
      %89 = sbr.rel (0) target = $region33
    $region32: #{tpu_custom_call.1} parent=1 // pred_region
      %90 = dma.done [#allocation5], 512
    $region33: #{tpu_custom_call.1} parent=1 // pred_fallthru
      _
    // Predicated region
    $region34: #{tpu_custom_call.1} parent=1 // pred_check
      _
    $region35: #{tpu_custom_call.1} parent=1 // pred_check_branch
      %92 = sbr.rel (0) target = $region37
    $region36: #{tpu_custom_call.1} parent=1 // pred_region
      %93 = dma.done [#allocation5], 512
    $region37: #{tpu_custom_call.1} parent=1 // pred_fallthru
      _
    // Predicated region
    $region38: #{tpu_custom_call.1} parent=1 // pred_check
      _
    $region39: #{tpu_custom_call.1} parent=1 // pred_check_branch
      %95 = sbr.rel (0) target = $region41
    $region40: #{tpu_custom_call.1} parent=1 // pred_region
      %96 = dma.done [#allocation8], 1024
    $region41: #{tpu_custom_call.1} parent=1 // pred_fallthru
      _
    // Predicated region
    $region42: #{tpu_custom_call.1} parent=1 // pred_check
      _
    $region43: #{tpu_custom_call.1} parent=1 // pred_check_branch
      %98 = sbr.rel (0) target = $region45
    $region44: #{tpu_custom_call.1} parent=1 // pred_region
      %99 = dma.done [#allocation8], 93184
    $region45: #{tpu_custom_call.1} parent=1 // pred_fallthru
      _
    // Predicated region
    $region46: #{tpu_custom_call.1} parent=1 // pred_check
      _
    $region47: #{tpu_custom_call.1} parent=1 // pred_check_branch
      %101 = sbr.rel (0) target = $region49
    $region48: #{tpu_custom_call.1} parent=1 // pred_region
      %102 = dma.done [#allocation11], 512
    $region49: #{tpu_custom_call.1} parent=1 // pred_fallthru
      _
    %v104 = vld [vmem:[#allocation2] sm:$0xff]
    %v105 = vld [vmem:[#allocation2 + $0x8] sm:$0xff]
    %v106 = vld [vmem:[#allocation2 + $0x10] sm:$0xff]
    %v107 = vld [vmem:[#allocation2 + $0x18] sm:$0xff]
    %v108 = vld [vmem:[#allocation9] sm:$0xff]
    %v109 = vld [vmem:[#allocation9 + $0x8] sm:$0xff]
    %v110 = vld [vmem:[#allocation9 + $0x10] sm:$0xff]
    %v111 = vld [vmem:[#allocation9 + $0x18] sm:$0xff]
    %v112 = vld [vmem:[#allocation9 + $0x20] sm:$0xff]
    %v113 = vld [vmem:[#allocation9 + $0x28] sm:$0xff]
    %v114 = vld [vmem:[#allocation9 + $0x30] sm:$0xff]
    %v115 = vld [vmem:[#allocation9 + $0x38] sm:$0xff]
    %v116 = vld [vmem:[#allocation9 + $0x40] sm:$0xff]
    %v117 = vld [vmem:[#allocation9 + $0x48] sm:$0xff]
    %v118 = vld [vmem:[#allocation9 + $0x50] sm:$0xff]
    %v119 = vld [vmem:[#allocation9 + $0x58] sm:$0xff]
    %v120 = vld [vmem:[#allocation9 + $0x60] sm:$0xff]
    %v121 = vld [vmem:[#allocation9 + $0x68] sm:$0xff]
    %v122 = vld [vmem:[#allocation9 + $0x70] sm:$0xff]
    %v123 = vld [vmem:[#allocation9 + $0x78] sm:$0xff]
    %v124 = vld [vmem:[#allocation9 + $0x80] sm:$0xff]
    %v125 = vld [vmem:[#allocation9 + $0x88] sm:$0xff]
    %v126 = vld [vmem:[#allocation9 + $0x90] sm:$0xff]
    %v127 = vld [vmem:[#allocation9 + $0x98] sm:$0xff]
    %v128 = vld [vmem:[#allocation9 + $0xa0] sm:$0xff]
    %v129 = vld [vmem:[#allocation9 + $0xa8] sm:$0xff]
    %v130 = vld [vmem:[#allocation9 + $0xb0] sm:$0xff]
    %v131 = vld [vmem:[#allocation9 + $0xb8] sm:$0xff]
    %v132 = vld [vmem:[#allocation9 + $0xc0] sm:$0xff]
    %v133 = vld [vmem:[#allocation9 + $0xc8] sm:$0xff]
    %v134 = vld [vmem:[#allocation9 + $0xd0] sm:$0xff]
    %v135 = vld [vmem:[#allocation9 + $0xd8] sm:$0xff]
    %v136 = vld [vmem:[#allocation9 + $0xe0] sm:$0xff]
    %v137 = vld [vmem:[#allocation9 + $0xe8] sm:$0xff]
    %v138 = vld [vmem:[#allocation9 + $0xf0] sm:$0xff]
    %v139 = vld [vmem:[#allocation9 + $0xf8] sm:$0xff]
    %v140 = vld [vmem:[#allocation9 + $0x100] sm:$0xff]
    %v141 = vld [vmem:[#allocation9 + $0x108] sm:$0xff]
    %v142 = vld [vmem:[#allocation9 + $0x110] sm:$0xff]
    %v143 = vld [vmem:[#allocation9 + $0x118] sm:$0xff]
    %v144 = vld [vmem:[#allocation9 + $0x120] sm:$0xff]
    %v145 = vld [vmem:[#allocation9 + $0x128] sm:$0xff]
    %v146 = vld [vmem:[#allocation9 + $0x130] sm:$0xff]
    %v147 = vld [vmem:[#allocation9 + $0x138] sm:$0xff]
    %v148 = vld [vmem:[#allocation9 + $0x140] sm:$0xff]
    %v149 = vld [vmem:[#allocation9 + $0x148] sm:$0xff]
    %v150 = vld [vmem:[#allocation9 + $0x150] sm:$0xff]
    %v151 = vld [vmem:[#allocation9 + $0x158] sm:$0xff]
    %v152 = vld [vmem:[#allocation9 + $0x160] sm:$0xff]
    %v153 = vld [vmem:[#allocation9 + $0x168] sm:$0xff]
    %v154 = vld [vmem:[#allocation9 + $0x170] sm:$0xff]
    %v155 = vld [vmem:[#allocation9 + $0x178] sm:$0xff]
    %v156 = vld [vmem:[#allocation9 + $0x180] sm:$0xff]
    %v157 = vld [vmem:[#allocation9 + $0x188] sm:$0xff]
    %v158 = vld [vmem:[#allocation9 + $0x190] sm:$0xff]
    %v159 = vld [vmem:[#allocation9 + $0x198] sm:$0xff]
    %v160 = vld [vmem:[#allocation9 + $0x1a0] sm:$0xff]
    %v161 = vld [vmem:[#allocation9 + $0x1a8] sm:$0xff]
    %v162 = vld [vmem:[#allocation9 + $0x1b0] sm:$0xff]
    %v163 = vld [vmem:[#allocation9 + $0x1b8] sm:$0xff]
    %v164 = vld [vmem:[#allocation9 + $0x1c0] sm:$0xff]
    %v165 = vld [vmem:[#allocation9 + $0x1c8] sm:$0xff]
    %v166 = vld [vmem:[#allocation9 + $0x1d0] sm:$0xff]
    %v167 = vld [vmem:[#allocation9 + $0x1d8] sm:$0xff]
    %v168 = vld [vmem:[#allocation9 + $0x1e0] sm:$0xff]
    %v169 = vld [vmem:[#allocation9 + $0x1e8] sm:$0xff]
    %v170 = vld [vmem:[#allocation9 + $0x1f0] sm:$0xff]
    %v171 = vld [vmem:[#allocation9 + $0x1f8] sm:$0xff]
    %v172 = vld [vmem:[#allocation9 + $0x200] sm:$0xff]
    %v173 = vld [vmem:[#allocation9 + $0x208] sm:$0xff]
    %v174 = vld [vmem:[#allocation9 + $0x210] sm:$0xff]
    %v175 = vld [vmem:[#allocation9 + $0x218] sm:$0xff]
    %v176 = vld [vmem:[#allocation9 + $0x220] sm:$0xff]
    %v177 = vld [vmem:[#allocation9 + $0x228] sm:$0xff]
    %v178 = vld [vmem:[#allocation9 + $0x230] sm:$0xff]
    %v179 = vld [vmem:[#allocation9 + $0x238] sm:$0xff]
    %v180 = vld [vmem:[#allocation9 + $0x240] sm:$0xff]
    %v181 = vld [vmem:[#allocation9 + $0x248] sm:$0xff]
    %v182 = vld [vmem:[#allocation9 + $0x250] sm:$0xff]
    %v183 = vld [vmem:[#allocation9 + $0x258] sm:$0xff]
    %v184 = vld [vmem:[#allocation9 + $0x260] sm:$0xff]
    %v185 = vld [vmem:[#allocation9 + $0x268] sm:$0xff]
    %v186 = vld [vmem:[#allocation9 + $0x270] sm:$0xff]
    %v187 = vld [vmem:[#allocation9 + $0x278] sm:$0xff]
    %v188 = vld [vmem:[#allocation9 + $0x280] sm:$0xff]
    %v189 = vld [vmem:[#allocation9 + $0x288] sm:$0xff]
    %v190 = vld [vmem:[#allocation9 + $0x290] sm:$0xff]
    %v191 = vld [vmem:[#allocation9 + $0x298] sm:$0xff]
    %v192 = vld [vmem:[#allocation9 + $0x2a0] sm:$0xff]
    %v193 = vld [vmem:[#allocation9 + $0x2a8] sm:$0xff]
    %v194 = vld [vmem:[#allocation9 + $0x2b0] sm:$0xff]
    %v195 = vld [vmem:[#allocation9 + $0x2b8] sm:$0xff]
    %v196 = vld [vmem:[#allocation9 + $0x2c0] sm:$0xff]
    %v197 = vld [vmem:[#allocation9 + $0x2c8] sm:$0xff]
    %v198 = vld [vmem:[#allocation9 + $0x2d0] sm:$0xff]
    %v199 = vld [vmem:[#allocation9 + $0x2d8] sm:$0xff]
    %v200 = vld [vmem:[#allocation9 + $0x2e0] sm:$0xff]
    %v201 = vld [vmem:[#allocation9 + $0x2e8] sm:$0xff]
    %v202 = vld [vmem:[#allocation9 + $0x2f0] sm:$0xff]
    %v203 = vld [vmem:[#allocation9 + $0x2f8] sm:$0xff]
    %v204 = vld [vmem:[#allocation9 + $0x300] sm:$0xff]
    %v205 = vld [vmem:[#allocation9 + $0x308] sm:$0xff]
    %v206 = vld [vmem:[#allocation9 + $0x310] sm:$0xff]
    %v207 = vld [vmem:[#allocation9 + $0x318] sm:$0xff]
    %v208 = vld [vmem:[#allocation9 + $0x320] sm:$0xff]
    %v209 = vld [vmem:[#allocation9 + $0x328] sm:$0xff]
    %v210 = vld [vmem:[#allocation9 + $0x330] sm:$0xff]
    %v211 = vld [vmem:[#allocation9 + $0x338] sm:$0xff]
    %v212 = vld [vmem:[#allocation9 + $0x340] sm:$0xff]
    %v213 = vld [vmem:[#allocation9 + $0x348] sm:$0xff]
    %v214 = vld [vmem:[#allocation9 + $0x350] sm:$0xff]
    %v215 = vld [vmem:[#allocation9 + $0x358] sm:$0xff]
    %v216 = vld [vmem:[#allocation9 + $0x360] sm:$0xff]
    %v217 = vld [vmem:[#allocation9 + $0x368] sm:$0xff]
    %v218 = vld [vmem:[#allocation9 + $0x370] sm:$0xff]
    %v219 = vld [vmem:[#allocation9 + $0x378] sm:$0xff]
    %v220 = vld [vmem:[#allocation9 + $0x380] sm:$0xff]
    %v221 = vld [vmem:[#allocation9 + $0x388] sm:$0xff]
    %v222 = vld [vmem:[#allocation9 + $0x390] sm:$0xff]
    %v223 = vld [vmem:[#allocation9 + $0x398] sm:$0xff]
    %v224 = vld [vmem:[#allocation9 + $0x3a0] sm:$0xff]
    %v225 = vld [vmem:[#allocation9 + $0x3a8] sm:$0xff]
    %v226 = vld [vmem:[#allocation9 + $0x3b0] sm:$0xff]
    %v227 = vld [vmem:[#allocation9 + $0x3b8] sm:$0xff]
    %v228 = vld [vmem:[#allocation9 + $0x3c0] sm:$0xff]
    %v229 = vld [vmem:[#allocation9 + $0x3c8] sm:$0xff]
    %v230 = vld [vmem:[#allocation9 + $0x3d0] sm:$0xff]
    %v231 = vld [vmem:[#allocation9 + $0x3d8] sm:$0xff]
    %v232 = vld [vmem:[#allocation9 + $0x3e0] sm:$0xff]
    %v233 = vld [vmem:[#allocation9 + $0x3e8] sm:$0xff]
    %v234 = vld [vmem:[#allocation9 + $0x3f0] sm:$0xff]
    %v235 = vld [vmem:[#allocation9 + $0x3f8] sm:$0xff]
    %v236 = vld [vmem:[#allocation10] ss:$8 sm:$0x3]
    %v237 = vlaneseq
    %v238 = vshrl.u32 %v237, 7
    %v239 = vadd.s32 %v238, 8
    %v240 = vlaneseq
    %v241 = vand.u32 %v240, 127
    %v242 = vmul.u32 %v241, 2
    %vm243 = vcmp.eq.s32.totalorder %v238, %v242
    %vm244 = vcmp.eq.s32.totalorder %v239, %v242
    %v245 = vadd.s32 %v242, 1
    %vm246 = vcmp.eq.s32.totalorder %v238, %v245
    %vm247 = vcmp.eq.s32.totalorder %v239, %v245
    %vm248 = vmor %vm243, %vm246
    %vm249 = vmor %vm244, %vm247
    %v250 = vsel %vm248, 1, 0
    %v251 = vsel %vm249, 1, 0
    %v252 = vcvt.s32.f32 %v250
    %v253 = vcvt.s32.f32 %v251
    %v254 = vpack.c.bf16 %v253, %v252
    %v255 = vpack.c.bf16 %v104, %v104
    %v256 = vpack.c.bf16 %v105, %v105
    %v257 = vpack.c.bf16 %v106, %v106
    %v258 = vpack.c.bf16 %v107, %v107
    %vm259 = vcmask 64512
    %v261 = vsel %vm259, %v254, 0
    %vm263 = vcmask 1043456
    %v265 = vsel %vm263, %v255, 0
    %v268 = vsel %vm263, %v256, 0
    %v271 = vsel %vm263, %v257, 0
    %v274 = vsel %vm263, %v258, 0
    %276 = vmatprep.subr.bf16.mxu0 0
    %277 = vmatpush1.bf16.msra.mxu0 0
    %278 = vmatprep.subr.bf16.mxu0 0
    %279 = vmatpush1.bf16.msra.mxu0 0
    %280 = vmatprep.subr.bf16.mxu0 0
    %281 = vmatpush1.bf16.msra.mxu0 0
    %282 = vmatprep.subr.bf16.mxu0 0
    %283 = vmatpush1.bf16.msra.mxu0 0
    %284 = vmatprep.subr.bf16.mxu0 0
    %285 = vmatpush1.bf16.msra.mxu0 0
    %286 = vmatprep.subr.bf16.mxu0 0
    %287 = vmatpush1.bf16.msra.mxu0 0
    %288 = vmatprep.subr.bf16.mxu0 0
    %289 = vmatpush1.bf16.msra.mxu0 0
    %290 = vmatprep.subr.bf16.mxu0 %v268
    %291 = vmatpush1.bf16.msra.mxu0 %v265
    %292 = vmatprep.subr.bf16.mxu0 0
    %293 = vmatpush2.bf16.msra.mxu0 0
    %294 = vmatprep.subr.bf16.mxu0 0
    %295 = vmatpush2.bf16.msra.mxu0 0
    %296 = vmatprep.subr.bf16.mxu0 0
    %297 = vmatpush2.bf16.msra.mxu0 0
    %298 = vmatprep.subr.bf16.mxu0 0
    %299 = vmatpush2.bf16.msra.mxu0 0
    %300 = vmatprep.subr.bf16.mxu0 0
    %301 = vmatpush2.bf16.msra.mxu0 0
    %302 = vmatprep.subr.bf16.mxu0 0
    %303 = vmatpush2.bf16.msra.mxu0 0
    %304 = vmatprep.subr.bf16.mxu0 0
    %305 = vmatpush2.bf16.msra.mxu0 0
    %306 = vmatprep.subr.bf16.mxu0 0
    %307 = vmatpush2.bf16.msra.mxu0 0
    %308 = vmatprep.mubr.bf16.mxu0 0
    %309 = vmatmul.mubr.bf16.gmra.mxu0 %v261
    %v310 = vpop.f32.mrf.mxu0
    %v311 = vadd.f32 0.0, %v310
    %v312 = vpop.f32.mrf.mxu0
    %v313 = vadd.f32 0.0, %v312
    %v314 = vpop.f32.mrf.mxu0
    %v315 = vadd.f32 0.0, %v314
    %v316 = vpop.f32.mrf.mxu0
    %v317 = vadd.f32 0.0, %v316
    %318 = vdwg.mxu0
    %319 = vmatprep.subr.bf16.mxu0 0
    %320 = vmatpush1.bf16.msra.mxu0 0
    %321 = vmatprep.subr.bf16.mxu0 0
    %322 = vmatpush1.bf16.msra.mxu0 0
    %323 = vmatprep.subr.bf16.mxu0 0
    %324 = vmatpush1.bf16.msra.mxu0 0
    %325 = vmatprep.subr.bf16.mxu0 0
    %326 = vmatpush1.bf16.msra.mxu0 0
    %327 = vmatprep.subr.bf16.mxu0 0
    %328 = vmatpush1.bf16.msra.mxu0 0
    %329 = vmatprep.subr.bf16.mxu0 0
    %330 = vmatpush1.bf16.msra.mxu0 0
    %331 = vmatprep.subr.bf16.mxu0 0
    %332 = vmatpush1.bf16.msra.mxu0 0
    %333 = vmatprep.subr.bf16.mxu0 %v274
    %334 = vmatpush1.bf16.msra.mxu0 %v271
    %335 = vmatprep.subr.bf16.mxu0 0
    %336 = vmatpush2.bf16.msra.mxu0 0
    %337 = vmatprep.subr.bf16.mxu0 0
    %338 = vmatpush2.bf16.msra.mxu0 0
    %339 = vmatprep.subr.bf16.mxu0 0
    %340 = vmatpush2.bf16.msra.mxu0 0
    %341 = vmatprep.subr.bf16.mxu0 0
    %342 = vmatpush2.bf16.msra.mxu0 0
    %343 = vmatprep.subr.bf16.mxu0 0
    %344 = vmatpush2.bf16.msra.mxu0 0
    %345 = vmatprep.subr.bf16.mxu0 0
    %346 = vmatpush2.bf16.msra.mxu0 0
    %347 = vmatprep.subr.bf16.mxu0 0
    %348 = vmatpush2.bf16.msra.mxu0 0
    %349 = vmatprep.subr.bf16.mxu0 0
    %350 = vmatpush2.bf16.msra.mxu0 0
    %351 = vmatprep.mubr.bf16.mxu0 0
    %352 = vmatmul.mubr.bf16.gmra.mxu0 %v261
    %v353 = vpop.f32.mrf.mxu0
    %v354 = vadd.f32 0.0, %v353
    %v355 = vpop.f32.mrf.mxu0
    %v356 = vadd.f32 0.0, %v355
    %v357 = vpop.f32.mrf.mxu0
    %v358 = vadd.f32 0.0, %v357
    %v359 = vpop.f32.mrf.mxu0
    %v360 = vadd.f32 0.0, %v359
    %361 = vdwg.mxu0
    %v362 = vpack.c.bf16 %v315, %v311
    %v363 = vpack.c.bf16 %v317, %v313
    %v364 = vpack.c.bf16 %v358, %v354
    %v365 = vpack.c.bf16 %v360, %v356
    %v430 = vunpack.c.l.b16 %v108
    %v431 = vunpack.c.h.b16 %v108
    %v432 = vunpack.c.l.b16 %v109
    %v433 = vunpack.c.h.b16 %v109
    %v434 = vunpack.c.l.b16 %v110
    %v435 = vunpack.c.h.b16 %v110
    %v436 = vunpack.c.l.b16 %v111
    %v437 = vunpack.c.h.b16 %v111
    %v438 = vunpack.c.l.b16 %v112
    %v439 = vunpack.c.h.b16 %v112
    %v440 = vunpack.c.l.b16 %v113
    %v441 = vunpack.c.h.b16 %v113
    %v442 = vunpack.c.l.b16 %v114
    %v443 = vunpack.c.h.b16 %v114
    %v444 = vunpack.c.l.b16 %v115
    %v445 = vunpack.c.h.b16 %v115
    %v446 = vunpack.c.l.b16 %v116
    %v447 = vunpack.c.h.b16 %v116
    %v448 = vunpack.c.l.b16 %v117
    %v449 = vunpack.c.h.b16 %v117
    %v450 = vunpack.c.l.b16 %v118
    %v451 = vunpack.c.h.b16 %v118
    %v452 = vunpack.c.l.b16 %v119
    %v453 = vunpack.c.h.b16 %v119
    %v454 = vunpack.c.l.b16 %v120
    %v455 = vunpack.c.h.b16 %v120
    %v456 = vunpack.c.l.b16 %v121
    %v457 = vunpack.c.h.b16 %v121
    %v458 = vunpack.c.l.b16 %v122
    %v459 = vunpack.c.h.b16 %v122
    %v460 = vunpack.c.l.b16 %v123
    %v461 = vunpack.c.h.b16 %v123
    %v462 = vunpack.c.l.b16 %v124
    %v463 = vunpack.c.h.b16 %v124
    %v464 = vunpack.c.l.b16 %v125
    %v465 = vunpack.c.h.b16 %v125
    %v466 = vunpack.c.l.b16 %v126
    %v467 = vunpack.c.h.b16 %v126
    %v468 = vunpack.c.l.b16 %v127
    %v469 = vunpack.c.h.b16 %v127
    %v470 = vunpack.c.l.b16 %v128
    %v471 = vunpack.c.h.b16 %v128
    %v472 = vunpack.c.l.b16 %v129
    %v473 = vunpack.c.h.b16 %v129
    %v474 = vunpack.c.l.b16 %v130
    %v475 = vunpack.c.h.b16 %v130
    %v476 = vunpack.c.l.b16 %v131
    %v477 = vunpack.c.h.b16 %v131
    %v478 = vunpack.c.l.b16 %v132
    %v479 = vunpack.c.h.b16 %v132
    %v480 = vunpack.c.l.b16 %v133
    %v481 = vunpack.c.h.b16 %v133
    %v482 = vunpack.c.l.b16 %v134
    %v483 = vunpack.c.h.b16 %v134
    %v484 = vunpack.c.l.b16 %v135
    %v485 = vunpack.c.h.b16 %v135
    %v486 = vunpack.c.l.b16 %v136
    %v487 = vunpack.c.h.b16 %v136
    %v488 = vunpack.c.l.b16 %v137
    %v489 = vunpack.c.h.b16 %v137
    %v490 = vunpack.c.l.b16 %v138
    %v491 = vunpack.c.h.b16 %v138
    %v492 = vunpack.c.l.b16 %v139
    %v493 = vunpack.c.h.b16 %v139
    %v494 = vunpack.c.l.b16 %v140
    %v495 = vunpack.c.h.b16 %v140
    %v496 = vunpack.c.l.b16 %v141
    %v497 = vunpack.c.h.b16 %v141
    %v498 = vunpack.c.l.b16 %v142
    %v499 = vunpack.c.h.b16 %v142
    %v500 = vunpack.c.l.b16 %v143
    %v501 = vunpack.c.h.b16 %v143
    %v502 = vunpack.c.l.b16 %v144
    %v503 = vunpack.c.h.b16 %v144
    %v504 = vunpack.c.l.b16 %v145
    %v505 = vunpack.c.h.b16 %v145
    %v506 = vunpack.c.l.b16 %v146
    %v507 = vunpack.c.h.b16 %v146
    %v508 = vunpack.c.l.b16 %v147
    %v509 = vunpack.c.h.b16 %v147
    %v510 = vunpack.c.l.b16 %v148
    %v511 = vunpack.c.h.b16 %v148
    %v512 = vunpack.c.l.b16 %v149
    %v513 = vunpack.c.h.b16 %v149
    %v514 = vunpack.c.l.b16 %v150
    %v515 = vunpack.c.h.b16 %v150
    %v516 = vunpack.c.l.b16 %v151
    %v517 = vunpack.c.h.b16 %v151
    %v518 = vunpack.c.l.b16 %v152
    %v519 = vunpack.c.h.b16 %v152
    %v520 = vunpack.c.l.b16 %v153
    %v521 = vunpack.c.h.b16 %v153
    %v522 = vunpack.c.l.b16 %v154
    %v523 = vunpack.c.h.b16 %v154
    %v524 = vunpack.c.l.b16 %v155
    %v525 = vunpack.c.h.b16 %v155
    %v526 = vunpack.c.l.b16 %v156
    %v527 = vunpack.c.h.b16 %v156
    %v528 = vunpack.c.l.b16 %v157
    %v529 = vunpack.c.h.b16 %v157
    %v530 = vunpack.c.l.b16 %v158
    %v531 = vunpack.c.h.b16 %v158
    %v532 = vunpack.c.l.b16 %v159
    %v533 = vunpack.c.h.b16 %v159
    %v534 = vunpack.c.l.b16 %v160
    %v535 = vunpack.c.h.b16 %v160
    %v536 = vunpack.c.l.b16 %v161
    %v537 = vunpack.c.h.b16 %v161
    %v538 = vunpack.c.l.b16 %v162
    %v539 = vunpack.c.h.b16 %v162
    %v540 = vunpack.c.l.b16 %v163
    %v541 = vunpack.c.h.b16 %v163
    %v542 = vunpack.c.l.b16 %v164
    %v543 = vunpack.c.h.b16 %v164
    %v544 = vunpack.c.l.b16 %v165
    %v545 = vunpack.c.h.b16 %v165
    %v546 = vunpack.c.l.b16 %v166
    %v547 = vunpack.c.h.b16 %v166
    %v548 = vunpack.c.l.b16 %v167
    %v549 = vunpack.c.h.b16 %v167
    %v550 = vunpack.c.l.b16 %v168
    %v551 = vunpack.c.h.b16 %v168
    %v552 = vunpack.c.l.b16 %v169
    %v553 = vunpack.c.h.b16 %v169
    %v554 = vunpack.c.l.b16 %v170
    %v555 = vunpack.c.h.b16 %v170
    %v556 = vunpack.c.l.b16 %v171
    %v557 = vunpack.c.h.b16 %v171
    %v558 = vpack.c.b16 %v432, %v430
    %v559 = vpack.c.b16 %v433, %v431
    %v560 = vpack.c.b16 %v436, %v434
    %v561 = vpack.c.b16 %v437, %v435
    %v562 = vpack.c.b16 %v440, %v438
    %v563 = vpack.c.b16 %v441, %v439
    %v564 = vpack.c.b16 %v444, %v442
    %v565 = vpack.c.b16 %v445, %v443
    %v566 = vpack.c.b16 %v448, %v446
    %v567 = vpack.c.b16 %v449, %v447
    %v568 = vpack.c.b16 %v452, %v450
    %v569 = vpack.c.b16 %v453, %v451
    %v570 = vpack.c.b16 %v456, %v454
    %v571 = vpack.c.b16 %v457, %v455
    %v572 = vpack.c.b16 %v460, %v458
    %v573 = vpack.c.b16 %v461, %v459
    %v574 = vpack.c.b16 %v464, %v462
    %v575 = vpack.c.b16 %v465, %v463
    %v576 = vpack.c.b16 %v468, %v466
    %v577 = vpack.c.b16 %v469, %v467
    %v578 = vpack.c.b16 %v472, %v470
    %v579 = vpack.c.b16 %v473, %v471
    %v580 = vpack.c.b16 %v476, %v474
    %v581 = vpack.c.b16 %v477, %v475
    %v582 = vpack.c.b16 %v480, %v478
    %v583 = vpack.c.b16 %v481, %v479
    %v584 = vpack.c.b16 %v484, %v482
    %v585 = vpack.c.b16 %v485, %v483
    %v586 = vpack.c.b16 %v488, %v486
    %v587 = vpack.c.b16 %v489, %v487
    %v588 = vpack.c.b16 %v492, %v490
    %v589 = vpack.c.b16 %v493, %v491
    %v590 = vpack.c.b16 %v496, %v494
    %v591 = vpack.c.b16 %v497, %v495
    %v592 = vpack.c.b16 %v500, %v498
    %v593 = vpack.c.b16 %v501, %v499
    %v594 = vpack.c.b16 %v504, %v502
    %v595 = vpack.c.b16 %v505, %v503
    %v596 = vpack.c.b16 %v508, %v506
    %v597 = vpack.c.b16 %v509, %v507
    %v598 = vpack.c.b16 %v512, %v510
    %v599 = vpack.c.b16 %v513, %v511
    %v600 = vpack.c.b16 %v516, %v514
    %v601 = vpack.c.b16 %v517, %v515
    %v602 = vpack.c.b16 %v520, %v518
    %v603 = vpack.c.b16 %v521, %v519
    %v604 = vpack.c.b16 %v524, %v522
    %v605 = vpack.c.b16 %v525, %v523
    %v606 = vpack.c.b16 %v528, %v526
    %v607 = vpack.c.b16 %v529, %v527
    %v608 = vpack.c.b16 %v532, %v530
    %v609 = vpack.c.b16 %v533, %v531
    %v610 = vpack.c.b16 %v536, %v534
    %v611 = vpack.c.b16 %v537, %v535
    %v612 = vpack.c.b16 %v540, %v538
    %v613 = vpack.c.b16 %v541, %v539
    %v614 = vpack.c.b16 %v544, %v542
    %v615 = vpack.c.b16 %v545, %v543
    %v616 = vpack.c.b16 %v548, %v546
    %v617 = vpack.c.b16 %v549, %v547
    %v618 = vpack.c.b16 %v552, %v550
    %v619 = vpack.c.b16 %v553, %v551
    %v620 = vpack.c.b16 %v556, %v554
    %v621 = vpack.c.b16 %v557, %v555
    %686 = vmatprep.subr.bf16.mxu0 %v573
    %687 = vmatpush1.bf16.msra.mxu0 %v572
    %688 = vmatprep.subr.bf16.mxu0 %v571
    %689 = vmatpush1.bf16.msra.mxu0 %v570
    %690 = vmatprep.subr.bf16.mxu0 %v569
    %691 = vmatpush1.bf16.msra.mxu0 %v568
    %692 = vmatprep.subr.bf16.mxu0 %v567
    %693 = vmatpush1.bf16.msra.mxu0 %v566
    %694 = vmatprep.subr.bf16.mxu0 %v565
    %695 = vmatpush1.bf16.msra.mxu0 %v564
    %696 = vmatprep.subr.bf16.mxu0 %v563
    %697 = vmatpush1.bf16.msra.mxu0 %v562
    %698 = vmatprep.subr.bf16.mxu0 %v561
    %699 = vmatpush1.bf16.msra.mxu0 %v560
    %700 = vmatprep.subr.bf16.mxu0 %v559
    %701 = vmatpush1.bf16.msra.mxu0 %v558
    %702 = vmatprep.subr.bf16.mxu0 %v589
    %703 = vmatpush2.bf16.msra.mxu0 %v588
    %704 = vmatprep.subr.bf16.mxu0 %v587
    %705 = vmatpush2.bf16.msra.mxu0 %v586
    %706 = vmatprep.subr.bf16.mxu0 %v585
    %707 = vmatpush2.bf16.msra.mxu0 %v584
    %708 = vmatprep.subr.bf16.mxu0 %v583
    %709 = vmatpush2.bf16.msra.mxu0 %v582
    %710 = vmatprep.subr.bf16.mxu0 %v581
    %711 = vmatpush2.bf16.msra.mxu0 %v580
    %712 = vmatprep.subr.bf16.mxu0 %v579
    %713 = vmatpush2.bf16.msra.mxu0 %v578
    %714 = vmatprep.subr.bf16.mxu0 %v577
    %715 = vmatpush2.bf16.msra.mxu0 %v576
    %716 = vmatprep.subr.bf16.mxu0 %v575
    %717 = vmatpush2.bf16.msra.mxu0 %v574
    %718 = vmatprep.mubr.bf16.mxu0 %v363
    %719 = vmatmul.mubr.bf16.gmra.mxu0 %v362
    %v720 = vpop.f32.mrf.mxu0
    %v721 = vadd.f32 0.0, %v720
    %v722 = vpop.f32.mrf.mxu0
    %v723 = vadd.f32 0.0, %v722
    %v724 = vpop.f32.mrf.mxu0
    %v725 = vadd.f32 0.0, %v724
    %v726 = vpop.f32.mrf.mxu0
    %v727 = vadd.f32 0.0, %v726
    %728 = vdwg.mxu0
    %729 = vmatprep.subr.bf16.mxu0 %v605
    %730 = vmatpush1.bf16.msra.mxu0 %v604
    %731 = vmatprep.subr.bf16.mxu0 %v603
    %732 = vmatpush1.bf16.msra.mxu0 %v602
    %733 = vmatprep.subr.bf16.mxu0 %v601
    %734 = vmatpush1.bf16.msra.mxu0 %v600
    %735 = vmatprep.subr.bf16.mxu0 %v599
    %736 = vmatpush1.bf16.msra.mxu0 %v598
    %737 = vmatprep.subr.bf16.mxu0 %v597
    %738 = vmatpush1.bf16.msra.mxu0 %v596
    %739 = vmatprep.subr.bf16.mxu0 %v595
    %740 = vmatpush1.bf16.msra.mxu0 %v594
    %741 = vmatprep.subr.bf16.mxu0 %v593
    %742 = vmatpush1.bf16.msra.mxu0 %v592
    %743 = vmatprep.subr.bf16.mxu0 %v591
    %744 = vmatpush1.bf16.msra.mxu0 %v590
    %745 = vmatprep.subr.bf16.mxu0 %v621
    %746 = vmatpush2.bf16.msra.mxu0 %v620
    %747 = vmatprep.subr.bf16.mxu0 %v619
    %748 = vmatpush2.bf16.msra.mxu0 %v618
    %749 = vmatprep.subr.bf16.mxu0 %v617
    %750 = vmatpush2.bf16.msra.mxu0 %v616
    %751 = vmatprep.subr.bf16.mxu0 %v615
    %752 = vmatpush2.bf16.msra.mxu0 %v614
    %753 = vmatprep.subr.bf16.mxu0 %v613
    %754 = vmatpush2.bf16.msra.mxu0 %v612
    %755 = vmatprep.subr.bf16.mxu0 %v611
    %756 = vmatpush2.bf16.msra.mxu0 %v610
    %757 = vmatprep.subr.bf16.mxu0 %v609
    %758 = vmatpush2.bf16.msra.mxu0 %v608
    %759 = vmatprep.subr.bf16.mxu0 %v607
    %760 = vmatpush2.bf16.msra.mxu0 %v606
    %761 = vmatprep.mubr.bf16.mxu0 %v365
    %762 = vmatmul.mubr.bf16.gmra.mxu0 %v364
    %v763 = vpop.f32.mrf.mxu0
    %v764 = vadd.f32 %v721, %v763
    %v765 = vpop.f32.mrf.mxu0
    %v766 = vadd.f32 %v723, %v765
    %v767 = vpop.f32.mrf.mxu0
    %v768 = vadd.f32 %v725, %v767
    %v769 = vpop.f32.mrf.mxu0
    %v770 = vadd.f32 %v727, %v769
    %771 = vdwg.mxu0
    %v836 = vunpack.c.l.b16 %v172
    %v837 = vunpack.c.h.b16 %v172
    %v838 = vunpack.c.l.b16 %v173
    %v839 = vunpack.c.h.b16 %v173
    %v840 = vunpack.c.l.b16 %v174
    %v841 = vunpack.c.h.b16 %v174
    %v842 = vunpack.c.l.b16 %v175
    %v843 = vunpack.c.h.b16 %v175
    %v844 = vunpack.c.l.b16 %v176
    %v845 = vunpack.c.h.b16 %v176
    %v846 = vunpack.c.l.b16 %v177
    %v847 = vunpack.c.h.b16 %v177
    %v848 = vunpack.c.l.b16 %v178
    %v849 = vunpack.c.h.b16 %v178
    %v850 = vunpack.c.l.b16 %v179
    %v851 = vunpack.c.h.b16 %v179
    %v852 = vunpack.c.l.b16 %v180
    %v853 = vunpack.c.h.b16 %v180
    %v854 = vunpack.c.l.b16 %v181
    %v855 = vunpack.c.h.b16 %v181
    %v856 = vunpack.c.l.b16 %v182
    %v857 = vunpack.c.h.b16 %v182
    %v858 = vunpack.c.l.b16 %v183
    %v859 = vunpack.c.h.b16 %v183
    %v860 = vunpack.c.l.b16 %v184
    %v861 = vunpack.c.h.b16 %v184
    %v862 = vunpack.c.l.b16 %v185
    %v863 = vunpack.c.h.b16 %v185
    %v864 = vunpack.c.l.b16 %v186
    %v865 = vunpack.c.h.b16 %v186
    %v866 = vunpack.c.l.b16 %v187
    %v867 = vunpack.c.h.b16 %v187
    %v868 = vunpack.c.l.b16 %v188
    %v869 = vunpack.c.h.b16 %v188
    %v870 = vunpack.c.l.b16 %v189
    %v871 = vunpack.c.h.b16 %v189
    %v872 = vunpack.c.l.b16 %v190
    %v873 = vunpack.c.h.b16 %v190
    %v874 = vunpack.c.l.b16 %v191
    %v875 = vunpack.c.h.b16 %v191
    %v876 = vunpack.c.l.b16 %v192
    %v877 = vunpack.c.h.b16 %v192
    %v878 = vunpack.c.l.b16 %v193
    %v879 = vunpack.c.h.b16 %v193
    %v880 = vunpack.c.l.b16 %v194
    %v881 = vunpack.c.h.b16 %v194
    %v882 = vunpack.c.l.b16 %v195
    %v883 = vunpack.c.h.b16 %v195
    %v884 = vunpack.c.l.b16 %v196
    %v885 = vunpack.c.h.b16 %v196
    %v886 = vunpack.c.l.b16 %v197
    %v887 = vunpack.c.h.b16 %v197
    %v888 = vunpack.c.l.b16 %v198
    %v889 = vunpack.c.h.b16 %v198
    %v890 = vunpack.c.l.b16 %v199
    %v891 = vunpack.c.h.b16 %v199
    %v892 = vunpack.c.l.b16 %v200
    %v893 = vunpack.c.h.b16 %v200
    %v894 = vunpack.c.l.b16 %v201
    %v895 = vunpack.c.h.b16 %v201
    %v896 = vunpack.c.l.b16 %v202
    %v897 = vunpack.c.h.b16 %v202
    %v898 = vunpack.c.l.b16 %v203
    %v899 = vunpack.c.h.b16 %v203
    %v900 = vunpack.c.l.b16 %v204
    %v901 = vunpack.c.h.b16 %v204
    %v902 = vunpack.c.l.b16 %v205
    %v903 = vunpack.c.h.b16 %v205
    %v904 = vunpack.c.l.b16 %v206
    %v905 = vunpack.c.h.b16 %v206
    %v906 = vunpack.c.l.b16 %v207
    %v907 = vunpack.c.h.b16 %v207
    %v908 = vunpack.c.l.b16 %v208
    %v909 = vunpack.c.h.b16 %v208
    %v910 = vunpack.c.l.b16 %v209
    %v911 = vunpack.c.h.b16 %v209
    %v912 = vunpack.c.l.b16 %v210
    %v913 = vunpack.c.h.b16 %v210
    %v914 = vunpack.c.l.b16 %v211
    %v915 = vunpack.c.h.b16 %v211
    %v916 = vunpack.c.l.b16 %v212
    %v917 = vunpack.c.h.b16 %v212
    %v918 = vunpack.c.l.b16 %v213
    %v919 = vunpack.c.h.b16 %v213
    %v920 = vunpack.c.l.b16 %v214
    %v921 = vunpack.c.h.b16 %v214
    %v922 = vunpack.c.l.b16 %v215
    %v923 = vunpack.c.h.b16 %v215
    %v924 = vunpack.c.l.b16 %v216
    %v925 = vunpack.c.h.b16 %v216
    %v926 = vunpack.c.l.b16 %v217
    %v927 = vunpack.c.h.b16 %v217
    %v928 = vunpack.c.l.b16 %v218
    %v929 = vunpack.c.h.b16 %v218
    %v930 = vunpack.c.l.b16 %v219
    %v931 = vunpack.c.h.b16 %v219
    %v932 = vunpack.c.l.b16 %v220
    %v933 = vunpack.c.h.b16 %v220
    %v934 = vunpack.c.l.b16 %v221
    %v935 = vunpack.c.h.b16 %v221
    %v936 = vunpack.c.l.b16 %v222
    %v937 = vunpack.c.h.b16 %v222
    %v938 = vunpack.c.l.b16 %v223
    %v939 = vunpack.c.h.b16 %v223
    %v940 = vunpack.c.l.b16 %v224
    %v941 = vunpack.c.h.b16 %v224
    %v942 = vunpack.c.l.b16 %v225
    %v943 = vunpack.c.h.b16 %v225
    %v944 = vunpack.c.l.b16 %v226
    %v945 = vunpack.c.h.b16 %v226
    %v946 = vunpack.c.l.b16 %v227
    %v947 = vunpack.c.h.b16 %v227
    %v948 = vunpack.c.l.b16 %v228
    %v949 = vunpack.c.h.b16 %v228
    %v950 = vunpack.c.l.b16 %v229
    %v951 = vunpack.c.h.b16 %v229
    %v952 = vunpack.c.l.b16 %v230
    %v953 = vunpack.c.h.b16 %v230
    %v954 = vunpack.c.l.b16 %v231
    %v955 = vunpack.c.h.b16 %v231
    %v956 = vunpack.c.l.b16 %v232
    %v957 = vunpack.c.h.b16 %v232
    %v958 = vunpack.c.l.b16 %v233
    %v959 = vunpack.c.h.b16 %v233
    %v960 = vunpack.c.l.b16 %v234
    %v961 = vunpack.c.h.b16 %v234
    %v962 = vunpack.c.l.b16 %v235
    %v963 = vunpack.c.h.b16 %v235
    %v964 = vpack.c.b16 %v838, %v836
    %v965 = vpack.c.b16 %v839, %v837
    %v966 = vpack.c.b16 %v842, %v840
    %v967 = vpack.c.b16 %v843, %v841
    %v968 = vpack.c.b16 %v846, %v844
    %v969 = vpack.c.b16 %v847, %v845
    %v970 = vpack.c.b16 %v850, %v848
    %v971 = vpack.c.b16 %v851, %v849
    %v972 = vpack.c.b16 %v854, %v852
    %v973 = vpack.c.b16 %v855, %v853
    %v974 = vpack.c.b16 %v858, %v856
    %v975 = vpack.c.b16 %v859, %v857
    %v976 = vpack.c.b16 %v862, %v860
    %v977 = vpack.c.b16 %v863, %v861
    %v978 = vpack.c.b16 %v866, %v864
    %v979 = vpack.c.b16 %v867, %v865
    %v980 = vpack.c.b16 %v870, %v868
    %v981 = vpack.c.b16 %v871, %v869
    %v982 = vpack.c.b16 %v874, %v872
    %v983 = vpack.c.b16 %v875, %v873
    %v984 = vpack.c.b16 %v878, %v876
    %v985 = vpack.c.b16 %v879, %v877
    %v986 = vpack.c.b16 %v882, %v880
    %v987 = vpack.c.b16 %v883, %v881
    %v988 = vpack.c.b16 %v886, %v884
    %v989 = vpack.c.b16 %v887, %v885
    %v990 = vpack.c.b16 %v890, %v888
    %v991 = vpack.c.b16 %v891, %v889
    %v992 = vpack.c.b16 %v894, %v892
    %v993 = vpack.c.b16 %v895, %v893
    %v994 = vpack.c.b16 %v898, %v896
    %v995 = vpack.c.b16 %v899, %v897
    %v996 = vpack.c.b16 %v902, %v900
    %v997 = vpack.c.b16 %v903, %v901
    %v998 = vpack.c.b16 %v906, %v904
    %v999 = vpack.c.b16 %v907, %v905
    %v1000 = vpack.c.b16 %v910, %v908
    %v1001 = vpack.c.b16 %v911, %v909
    %v1002 = vpack.c.b16 %v914, %v912
    %v1003 = vpack.c.b16 %v915, %v913
    %v1004 = vpack.c.b16 %v918, %v916
    %v1005 = vpack.c.b16 %v919, %v917
    %v1006 = vpack.c.b16 %v922, %v920
    %v1007 = vpack.c.b16 %v923, %v921
    %v1008 = vpack.c.b16 %v926, %v924
    %v1009 = vpack.c.b16 %v927, %v925
    %v1010 = vpack.c.b16 %v930, %v928
    %v1011 = vpack.c.b16 %v931, %v929
    %v1012 = vpack.c.b16 %v934, %v932
    %v1013 = vpack.c.b16 %v935, %v933
    %v1014 = vpack.c.b16 %v938, %v936
    %v1015 = vpack.c.b16 %v939, %v937
    %v1016 = vpack.c.b16 %v942, %v940
    %v1017 = vpack.c.b16 %v943, %v941
    %v1018 = vpack.c.b16 %v946, %v944
    %v1019 = vpack.c.b16 %v947, %v945
    %v1020 = vpack.c.b16 %v950, %v948
    %v1021 = vpack.c.b16 %v951, %v949
    %v1022 = vpack.c.b16 %v954, %v952
    %v1023 = vpack.c.b16 %v955, %v953
    %v1024 = vpack.c.b16 %v958, %v956
    %v1025 = vpack.c.b16 %v959, %v957
    %v1026 = vpack.c.b16 %v962, %v960
    %v1027 = vpack.c.b16 %v963, %v961
    %1092 = vmatprep.subr.bf16.mxu0 %v979
    %1093 = vmatpush1.bf16.msra.mxu0 %v978
    %1094 = vmatprep.subr.bf16.mxu0 %v977
    %1095 = vmatpush1.bf16.msra.mxu0 %v976
    %1096 = vmatprep.subr.bf16.mxu0 %v975
    %1097 = vmatpush1.bf16.msra.mxu0 %v974
    %1098 = vmatprep.subr.bf16.mxu0 %v973
    %1099 = vmatpush1.bf16.msra.mxu0 %v972
    %1100 = vmatprep.subr.bf16.mxu0 %v971
    %1101 = vmatpush1.bf16.msra.mxu0 %v970
    %1102 = vmatprep.subr.bf16.mxu0 %v969
    %1103 = vmatpush1.bf16.msra.mxu0 %v968
    %1104 = vmatprep.subr.bf16.mxu0 %v967
    %1105 = vmatpush1.bf16.msra.mxu0 %v966
    %1106 = vmatprep.subr.bf16.mxu0 %v965
    %1107 = vmatpush1.bf16.msra.mxu0 %v964
    %1108 = vmatprep.subr.bf16.mxu0 %v995
    %1109 = vmatpush2.bf16.msra.mxu0 %v994
    %1110 = vmatprep.subr.bf16.mxu0 %v993
    %1111 = vmatpush2.bf16.msra.mxu0 %v992
    %1112 = vmatprep.subr.bf16.mxu0 %v991
    %1113 = vmatpush2.bf16.msra.mxu0 %v990
    %1114 = vmatprep.subr.bf16.mxu0 %v989
    %1115 = vmatpush2.bf16.msra.mxu0 %v988
    %1116 = vmatprep.subr.bf16.mxu0 %v987
    %1117 = vmatpush2.bf16.msra.mxu0 %v986
    %1118 = vmatprep.subr.bf16.mxu0 %v985
    %1119 = vmatpush2.bf16.msra.mxu0 %v984
    %1120 = vmatprep.subr.bf16.mxu0 %v983
    %1121 = vmatpush2.bf16.msra.mxu0 %v982
    %1122 = vmatprep.subr.bf16.mxu0 %v981
    %1123 = vmatpush2.bf16.msra.mxu0 %v980
    %1124 = vmatprep.mubr.bf16.mxu0 %v363
    %1125 = vmatmul.mubr.bf16.gmra.mxu0 %v362
    %v1126 = vpop.f32.mrf.mxu0
    %v1127 = vadd.f32 0.0, %v1126
    %v1128 = vpop.f32.mrf.mxu0
    %v1129 = vadd.f32 0.0, %v1128
    %v1130 = vpop.f32.mrf.mxu0
    %v1131 = vadd.f32 0.0, %v1130
    %v1132 = vpop.f32.mrf.mxu0
    %v1133 = vadd.f32 0.0, %v1132
    %1134 = vdwg.mxu0
    %1135 = vmatprep.subr.bf16.mxu0 %v1011
    %1136 = vmatpush1.bf16.msra.mxu0 %v1010
    %1137 = vmatprep.subr.bf16.mxu0 %v1009
    %1138 = vmatpush1.bf16.msra.mxu0 %v1008
    %1139 = vmatprep.subr.bf16.mxu0 %v1007
    %1140 = vmatpush1.bf16.msra.mxu0 %v1006
    %1141 = vmatprep.subr.bf16.mxu0 %v1005
    %1142 = vmatpush1.bf16.msra.mxu0 %v1004
    %1143 = vmatprep.subr.bf16.mxu0 %v1003
    %1144 = vmatpush1.bf16.msra.mxu0 %v1002
    %1145 = vmatprep.subr.bf16.mxu0 %v1001
    %1146 = vmatpush1.bf16.msra.mxu0 %v1000
    %1147 = vmatprep.subr.bf16.mxu0 %v999
    %1148 = vmatpush1.bf16.msra.mxu0 %v998
    %1149 = vmatprep.subr.bf16.mxu0 %v997
    %1150 = vmatpush1.bf16.msra.mxu0 %v996
    %1151 = vmatprep.subr.bf16.mxu0 %v1027
    %1152 = vmatpush2.bf16.msra.mxu0 %v1026
    %1153 = vmatprep.subr.bf16.mxu0 %v1025
    %1154 = vmatpush2.bf16.msra.mxu0 %v1024
    %1155 = vmatprep.subr.bf16.mxu0 %v1023
    %1156 = vmatpush2.bf16.msra.mxu0 %v1022
    %1157 = vmatprep.subr.bf16.mxu0 %v1021
    %1158 = vmatpush2.bf16.msra.mxu0 %v1020
    %1159 = vmatprep.subr.bf16.mxu0 %v1019
    %1160 = vmatpush2.bf16.msra.mxu0 %v1018
    %1161 = vmatprep.subr.bf16.mxu0 %v1017
    %1162 = vmatpush2.bf16.msra.mxu0 %v1016
    %1163 = vmatprep.subr.bf16.mxu0 %v1015
    %1164 = vmatpush2.bf16.msra.mxu0 %v1014
    %1165 = vmatprep.subr.bf16.mxu0 %v1013
    %1166 = vmatpush2.bf16.msra.mxu0 %v1012
    %1167 = vmatprep.mubr.bf16.mxu0 %v365
    %1168 = vmatmul.mubr.bf16.gmra.mxu0 %v364
    %v1169 = vpop.f32.mrf.mxu0
    %v1170 = vadd.f32 %v1127, %v1169
    %v1171 = vpop.f32.mrf.mxu0
    %v1172 = vadd.f32 %v1129, %v1171
    %v1173 = vpop.f32.mrf.mxu0
    %v1174 = vadd.f32 %v1131, %v1173
    %v1175 = vpop.f32.mrf.mxu0
    %v1176 = vadd.f32 %v1133, %v1175
    %1177 = vdwg.mxu0
    %v1178 = vand.u32 %v238, 1
    %v1179 = vand.u32 %v239, 1
    %vm1180 = vcmp.eq.s32.totalorder %v1178, 0
    %vm1181 = vcmp.eq.s32.totalorder %v1179, 0
    %v1182 = vsel %vm1180, 1, 0
    %v1183 = vsel %vm1181, 1, 0
    %vm1184 = vcmp.eq.s32.totalorder %v1182, 1
    %vm1185 = vcmp.eq.s32.totalorder %v1183, 1
    %v1186 = vsel %vm1184, %v764, %v1170
    %v1187 = vsel %vm1184, %v766, %v1172
    %v1188 = vsel %vm1185, %v768, %v1174
    %v1189 = vsel %vm1185, %v770, %v1176
    %v1191 = vlaneseq
    %v1192 = vshrl.u32 %v1191, 7
    %v1193 = vsub.s32 0, %v1192
    %v1194 = vrot.slane %v236, %v1193
    %v1195 = vlaneseq
    %v1196 = vshrl.u32 %v1195, 7
    %v1197 = vsub.s32 1, %v1196
    %v1198 = vrot.slane %v236, %v1197
    %v1201 = vadd.f32 %v1186, %v1194
    %v1202 = vadd.f32 %v1187, %v1198
    %v1203 = vadd.f32 %v1188, %v1194
    %v1204 = vadd.f32 %v1189, %v1198
    %v1205 = vld [vmem:[#allocation4] sm:$0xff]
    %v1206 = vld [vmem:[#allocation4 + $0x8] sm:$0xff]
    %v1207 = vld [vmem:[#allocation4 + $0x10] sm:$0xff]
    %v1208 = vld [vmem:[#allocation4 + $0x18] sm:$0xff]
    %v1209 = vld [vmem:[#allocation9 + $0x400] sm:$0xff]
    %v1210 = vld [vmem:[#allocation9 + $0x408] sm:$0xff]
    %v1211 = vld [vmem:[#allocation9 + $0x410] sm:$0xff]
    %v1212 = vld [vmem:[#allocation9 + $0x418] sm:$0xff]
    %v1213 = vld [vmem:[#allocation9 + $0x420] sm:$0xff]
    %v1214 = vld [vmem:[#allocation9 + $0x428] sm:$0xff]
    %v1215 = vld [vmem:[#allocation9 + $0x430] sm:$0xff]
    %v1216 = vld [vmem:[#allocation9 + $0x438] sm:$0xff]
    %v1217 = vld [vmem:[#allocation9 + $0x440] sm:$0xff]
    %v1218 = vld [vmem:[#allocation9 + $0x448] sm:$0xff]
    %v1219 = vld [vmem:[#allocation9 + $0x450] sm:$0xff]
    %v1220 = vld [vmem:[#allocation9 + $0x458] sm:$0xff]
    %v1221 = vld [vmem:[#allocation9 + $0x460] sm:$0xff]
    %v1222 = vld [vmem:[#allocation9 + $0x468] sm:$0xff]
    %v1223 = vld [vmem:[#allocation9 + $0x470] sm:$0xff]
    %v1224 = vld [vmem:[#allocation9 + $0x478] sm:$0xff]
    %v1225 = vld [vmem:[#allocation9 + $0x480] sm:$0xff]
    %v1226 = vld [vmem:[#allocation9 + $0x488] sm:$0xff]
    %v1227 = vld [vmem:[#allocation9 + $0x490] sm:$0xff]
    %v1228 = vld [vmem:[#allocation9 + $0x498] sm:$0xff]
    %v1229 = vld [vmem:[#allocation9 + $0x4a0] sm:$0xff]
    %v1230 = vld [vmem:[#allocation9 + $0x4a8] sm:$0xff]
    %v1231 = vld [vmem:[#allocation9 + $0x4b0] sm:$0xff]
    %v1232 = vld [vmem:[#allocation9 + $0x4b8] sm:$0xff]
    %v1233 = vld [vmem:[#allocation9 + $0x4c0] sm:$0xff]
    %v1234 = vld [vmem:[#allocation9 + $0x4c8] sm:$0xff]
    %v1235 = vld [vmem:[#allocation9 + $0x4d0] sm:$0xff]
    %v1236 = vld [vmem:[#allocation9 + $0x4d8] sm:$0xff]
    %v1237 = vld [vmem:[#allocation9 + $0x4e0] sm:$0xff]
    %v1238 = vld [vmem:[#allocation9 + $0x4e8] sm:$0xff]
    %v1239 = vld [vmem:[#allocation9 + $0x4f0] sm:$0xff]
    %v1240 = vld [vmem:[#allocation9 + $0x4f8] sm:$0xff]
    %v1241 = vld [vmem:[#allocation9 + $0x500] sm:$0xff]
    %v1242 = vld [vmem:[#allocation9 + $0x508] sm:$0xff]
    %v1243 = vld [vmem:[#allocation9 + $0x510] sm:$0xff]
    %v1244 = vld [vmem:[#allocation9 + $0x518] sm:$0xff]
    %v1245 = vld [vmem:[#allocation9 + $0x520] sm:$0xff]
    %v1246 = vld [vmem:[#allocation9 + $0x528] sm:$0xff]
    %v1247 = vld [vmem:[#allocation9 + $0x530] sm:$0xff]
    %v1248 = vld [vmem:[#allocation9 + $0x538] sm:$0xff]
    %v1249 = vld [vmem:[#allocation9 + $0x540] sm:$0xff]
    %v1250 = vld [vmem:[#allocation9 + $0x548] sm:$0xff]
    %v1251 = vld [vmem:[#allocation9 + $0x550] sm:$0xff]
    %v1252 = vld [vmem:[#allocation9 + $0x558] sm:$0xff]
    %v1253 = vld [vmem:[#allocation9 + $0x560] sm:$0xff]
    %v1254 = vld [vmem:[#allocation9 + $0x568] sm:$0xff]
    %v1255 = vld [vmem:[#allocation9 + $0x570] sm:$0xff]
    %v1256 = vld [vmem:[#allocation9 + $0x578] sm:$0xff]
    %v1257 = vld [vmem:[#allocation9 + $0x580] sm:$0xff]
    %v1258 = vld [vmem:[#allocation9 + $0x588] sm:$0xff]
    %v1259 = vld [vmem:[#allocation9 + $0x590] sm:$0xff]
    %v1260 = vld [vmem:[#allocation9 + $0x598] sm:$0xff]
    %v1261 = vld [vmem:[#allocation9 + $0x5a0] sm:$0xff]
    %v1262 = vld [vmem:[#allocation9 + $0x5a8] sm:$0xff]
    %v1263 = vld [vmem:[#allocation9 + $0x5b0] sm:$0xff]
    %v1264 = vld [vmem:[#allocation9 + $0x5b8] sm:$0xff]
    %v1265 = vld [vmem:[#allocation9 + $0x5c0] sm:$0xff]
    %v1266 = vld [vmem:[#allocation9 + $0x5c8] sm:$0xff]
    %v1267 = vld [vmem:[#allocation9 + $0x5d0] sm:$0xff]
    %v1268 = vld [vmem:[#allocation9 + $0x5d8] sm:$0xff]
    %v1269 = vld [vmem:[#allocation9 + $0x5e0] sm:$0xff]
    %v1270 = vld [vmem:[#allocation9 + $0x5e8] sm:$0xff]
    %v1271 = vld [vmem:[#allocation9 + $0x5f0] sm:$0xff]
    %v1272 = vld [vmem:[#allocation9 + $0x5f8] sm:$0xff]
    %v1273 = vld [vmem:[#allocation9 + $0x600] sm:$0xff]
    %v1274 = vld [vmem:[#allocation9 + $0x608] sm:$0xff]
    %v1275 = vld [vmem:[#allocation9 + $0x610] sm:$0xff]
    %v1276 = vld [vmem:[#allocation9 + $0x618] sm:$0xff]
    %v1277 = vld [vmem:[#allocation9 + $0x620] sm:$0xff]
    %v1278 = vld [vmem:[#allocation9 + $0x628] sm:$0xff]
    %v1279 = vld [vmem:[#allocation9 + $0x630] sm:$0xff]
    %v1280 = vld [vmem:[#allocation9 + $0x638] sm:$0xff]
    %v1281 = vld [vmem:[#allocation9 + $0x640] sm:$0xff]
    %v1282 = vld [vmem:[#allocation9 + $0x648] sm:$0xff]
    %v1283 = vld [vmem:[#allocation9 + $0x650] sm:$0xff]
    %v1284 = vld [vmem:[#allocation9 + $0x658] sm:$0xff]
    %v1285 = vld [vmem:[#allocation9 + $0x660] sm:$0xff]
    %v1286 = vld [vmem:[#allocation9 + $0x668] sm:$0xff]
    %v1287 = vld [vmem:[#allocation9 + $0x670] sm:$0xff]
    %v1288 = vld [vmem:[#allocation9 + $0x678] sm:$0xff]
    %v1289 = vld [vmem:[#allocation9 + $0x680] sm:$0xff]
    %v1290 = vld [vmem:[#allocation9 + $0x688] sm:$0xff]
    %v1291 = vld [vmem:[#allocation9 + $0x690] sm:$0xff]
    %v1292 = vld [vmem:[#allocation9 + $0x698] sm:$0xff]
    %v1293 = vld [vmem:[#allocation9 + $0x6a0] sm:$0xff]
    %v1294 = vld [vmem:[#allocation9 + $0x6a8] sm:$0xff]
    %v1295 = vld [vmem:[#allocation9 + $0x6b0] sm:$0xff]
    %v1296 = vld [vmem:[#allocation9 + $0x6b8] sm:$0xff]
    %v1297 = vld [vmem:[#allocation9 + $0x6c0] sm:$0xff]
    %v1298 = vld [vmem:[#allocation9 + $0x6c8] sm:$0xff]
    %v1299 = vld [vmem:[#allocation9 + $0x6d0] sm:$0xff]
    %v1300 = vld [vmem:[#allocation9 + $0x6d8] sm:$0xff]
    %v1301 = vld [vmem:[#allocation9 + $0x6e0] sm:$0xff]
    %v1302 = vld [vmem:[#allocation9 + $0x6e8] sm:$0xff]
    %v1303 = vld [vmem:[#allocation9 + $0x6f0] sm:$0xff]
    %v1304 = vld [vmem:[#allocation9 + $0x6f8] sm:$0xff]
    %v1305 = vld [vmem:[#allocation9 + $0x700] sm:$0xff]
    %v1306 = vld [vmem:[#allocation9 + $0x708] sm:$0xff]
    %v1307 = vld [vmem:[#allocation9 + $0x710] sm:$0xff]
    %v1308 = vld [vmem:[#allocation9 + $0x718] sm:$0xff]
    %v1309 = vld [vmem:[#allocation9 + $0x720] sm:$0xff]
    %v1310 = vld [vmem:[#allocation9 + $0x728] sm:$0xff]
    %v1311 = vld [vmem:[#allocation9 + $0x730] sm:$0xff]
    %v1312 = vld [vmem:[#allocation9 + $0x738] sm:$0xff]
    %v1313 = vld [vmem:[#allocation9 + $0x740] sm:$0xff]
    %v1314 = vld [vmem:[#allocation9 + $0x748] sm:$0xff]
    %v1315 = vld [vmem:[#allocation9 + $0x750] sm:$0xff]
    %v1316 = vld [vmem:[#allocation9 + $0x758] sm:$0xff]
    %v1317 = vld [vmem:[#allocation9 + $0x760] sm:$0xff]
    %v1318 = vld [vmem:[#allocation9 + $0x768] sm:$0xff]
    %v1319 = vld [vmem:[#allocation9 + $0x770] sm:$0xff]
    %v1320 = vld [vmem:[#allocation9 + $0x778] sm:$0xff]
    %v1321 = vld [vmem:[#allocation9 + $0x780] sm:$0xff]
    %v1322 = vld [vmem:[#allocation9 + $0x788] sm:$0xff]
    %v1323 = vld [vmem:[#allocation9 + $0x790] sm:$0xff]
    %v1324 = vld [vmem:[#allocation9 + $0x798] sm:$0xff]
    %v1325 = vld [vmem:[#allocation9 + $0x7a0] sm:$0xff]
    %v1326 = vld [vmem:[#allocation9 + $0x7a8] sm:$0xff]
    %v1327 = vld [vmem:[#allocation9 + $0x7b0] sm:$0xff]
    %v1328 = vld [vmem:[#allocation9 + $0x7b8] sm:$0xff]
    %v1329 = vld [vmem:[#allocation9 + $0x7c0] sm:$0xff]
    %v1330 = vld [vmem:[#allocation9 + $0x7c8] sm:$0xff]
    %v1331 = vld [vmem:[#allocation9 + $0x7d0] sm:$0xff]
    %v1332 = vld [vmem:[#allocation9 + $0x7d8] sm:$0xff]
    %v1333 = vld [vmem:[#allocation9 + $0x7e0] sm:$0xff]
    %v1334 = vld [vmem:[#allocation9 + $0x7e8] sm:$0xff]
    %v1335 = vld [vmem:[#allocation9 + $0x7f0] sm:$0xff]
    %v1336 = vld [vmem:[#allocation9 + $0x7f8] sm:$0xff]
    %v1337 = vld [vmem:[#allocation9 + $0x800] sm:$0xff]
    %v1338 = vld [vmem:[#allocation9 + $0x808] sm:$0xff]
    %v1339 = vld [vmem:[#allocation9 + $0x810] sm:$0xff]
    %v1340 = vld [vmem:[#allocation9 + $0x818] sm:$0xff]
    %v1341 = vld [vmem:[#allocation9 + $0x820] sm:$0xff]
    %v1342 = vld [vmem:[#allocation9 + $0x828] sm:$0xff]
    %v1343 = vld [vmem:[#allocation9 + $0x830] sm:$0xff]
    %v1344 = vld [vmem:[#allocation9 + $0x838] sm:$0xff]
    %v1345 = vld [vmem:[#allocation9 + $0x840] sm:$0xff]
    %v1346 = vld [vmem:[#allocation9 + $0x848] sm:$0xff]
    %v1347 = vld [vmem:[#allocation9 + $0x850] sm:$0xff]
    %v1348 = vld [vmem:[#allocation9 + $0x858] sm:$0xff]
    %v1349 = vld [vmem:[#allocation9 + $0x860] sm:$0xff]
    %v1350 = vld [vmem:[#allocation9 + $0x868] sm:$0xff]
    %v1351 = vld [vmem:[#allocation9 + $0x870] sm:$0xff]
    %v1352 = vld [vmem:[#allocation9 + $0x878] sm:$0xff]
    %v1353 = vld [vmem:[#allocation9 + $0x880] sm:$0xff]
    %v1354 = vld [vmem:[#allocation9 + $0x888] sm:$0xff]
    %v1355 = vld [vmem:[#allocation9 + $0x890] sm:$0xff]
    %v1356 = vld [vmem:[#allocation9 + $0x898] sm:$0xff]
    %v1357 = vld [vmem:[#allocation9 + $0x8a0] sm:$0xff]
    %v1358 = vld [vmem:[#allocation9 + $0x8a8] sm:$0xff]
    %v1359 = vld [vmem:[#allocation9 + $0x8b0] sm:$0xff]
    %v1360 = vld [vmem:[#allocation9 + $0x8b8] sm:$0xff]
    %v1361 = vld [vmem:[#allocation9 + $0x8c0] sm:$0xff]
    %v1362 = vld [vmem:[#allocation9 + $0x8c8] sm:$0xff]
    %v1363 = vld [vmem:[#allocation9 + $0x8d0] sm:$0xff]
    %v1364 = vld [vmem:[#allocation9 + $0x8d8] sm:$0xff]
    %v1365 = vld [vmem:[#allocation9 + $0x8e0] sm:$0xff]
    %v1366 = vld [vmem:[#allocation9 + $0x8e8] sm:$0xff]
    %v1367 = vld [vmem:[#allocation9 + $0x8f0] sm:$0xff]
    %v1368 = vld [vmem:[#allocation9 + $0x8f8] sm:$0xff]
    %v1369 = vld [vmem:[#allocation9 + $0x900] sm:$0xff]
    %v1370 = vld [vmem:[#allocation9 + $0x908] sm:$0xff]
    %v1371 = vld [vmem:[#allocation9 + $0x910] sm:$0xff]
    %v1372 = vld [vmem:[#allocation9 + $0x918] sm:$0xff]
    %v1373 = vld [vmem:[#allocation9 + $0x920] sm:$0xff]
    %v1374 = vld [vmem:[#allocation9 + $0x928] sm:$0xff]
    %v1375 = vld [vmem:[#allocation9 + $0x930] sm:$0xff]
    %v1376 = vld [vmem:[#allocation9 + $0x938] sm:$0xff]
    %v1377 = vld [vmem:[#allocation9 + $0x940] sm:$0xff]
    %v1378 = vld [vmem:[#allocation9 + $0x948] sm:$0xff]
    %v1379 = vld [vmem:[#allocation9 + $0x950] sm:$0xff]
    %v1380 = vld [vmem:[#allocation9 + $0x958] sm:$0xff]
    %v1381 = vld [vmem:[#allocation9 + $0x960] sm:$0xff]
    %v1382 = vld [vmem:[#allocation9 + $0x968] sm:$0xff]
    %v1383 = vld [vmem:[#allocation9 + $0x970] sm:$0xff]
    %v1384 = vld [vmem:[#allocation9 + $0x978] sm:$0xff]
    %v1385 = vld [vmem:[#allocation9 + $0x980] sm:$0xff]
    %v1386 = vld [vmem:[#allocation9 + $0x988] sm:$0xff]
    %v1387 = vld [vmem:[#allocation9 + $0x990] sm:$0xff]
    %v1388 = vld [vmem:[#allocation9 + $0x998] sm:$0xff]
    %v1389 = vld [vmem:[#allocation9 + $0x9a0] sm:$0xff]
    %v1390 = vld [vmem:[#allocation9 + $0x9a8] sm:$0xff]
    %v1391 = vld [vmem:[#allocation9 + $0x9b0] sm:$0xff]
    %v1392 = vld [vmem:[#allocation9 + $0x9b8] sm:$0xff]
    %v1393 = vld [vmem:[#allocation9 + $0x9c0] sm:$0xff]
    %v1394 = vld [vmem:[#allocation9 + $0x9c8] sm:$0xff]
    %v1395 = vld [vmem:[#allocation9 + $0x9d0] sm:$0xff]
    %v1396 = vld [vmem:[#allocation9 + $0x9d8] sm:$0xff]
    %v1397 = vld [vmem:[#allocation9 + $0x9e0] sm:$0xff]
    %v1398 = vld [vmem:[#allocation9 + $0x9e8] sm:$0xff]
    %v1399 = vld [vmem:[#allocation9 + $0x9f0] sm:$0xff]
    %v1400 = vld [vmem:[#allocation9 + $0x9f8] sm:$0xff]
    %s1401 = scalar_lea.vmem [#allocation10], 1
    %v1402 = vld [vmem:[%s1401] ss:$8 sm:$0x3]
    %vm1411 = vcmask 1040384
    %v1412 = vrot.slane %v1201, 7
    %v1413 = vrot.slane %v1202, 7
    %v1414 = vrot.slane %v1205, 7
    %v1415 = vrot.slane %v1206, 7
    %v1416 = vrot.slane %v1203, 7
    %v1417 = vsel %vm1411, %v1412, %v1416
    %v1418 = vrot.slane %v1204, 7
    %v1419 = vsel %vm1411, %v1413, %v1418
    %v1420 = vrot.slane %v1207, 7
    %v1421 = vsel %vm1411, %v1414, %v1420
    %v1422 = vrot.slane %v1208, 7
    %v1423 = vsel %vm1411, %v1415, %v1422
    %v1432 = vsel %vm1411, 0.0, %v1412
    %v1433 = vsel %vm1411, 0.0, %v1413
    %v1434 = vsel %vm1411, 0.0, %v1414
    %v1435 = vsel %vm1411, 0.0, %v1415
    %vm1436 = vcmask 1046528
    %v1437 = vrot.slane %v1201, 1
    %v1438 = vrot.slane %v1203, 1
    %v1439 = vsel %vm1436, %v1437, %v1438
    %v1440 = vrot.slane %v1202, 1
    %v1441 = vrot.slane %v1204, 1
    %v1442 = vsel %vm1436, %v1440, %v1441
    %v1443 = vrot.slane %v1205, 1
    %v1444 = vrot.slane %v1207, 1
    %v1445 = vsel %vm1436, %v1443, %v1444
    %v1446 = vrot.slane %v1206, 1
    %v1447 = vrot.slane %v1208, 1
    %v1448 = vsel %vm1436, %v1446, %v1447
    %v1457 = vsel %vm1436, %v1438, 0.0
    %v1458 = vsel %vm1436, %v1441, 0.0
    %v1459 = vsel %vm1436, %v1444, 0.0
    %v1460 = vsel %vm1436, %v1447, 0.0
    %v1461 = vand.u32 %v238, 7
    %v1462 = vand.u32 %v239, 7
    %vm1463 = vcmp.eq.s32.totalorder %v1461, 0
    %vm1464 = vcmp.eq.s32.totalorder %v1462, 0
    %v1465 = vsel %vm1463, 1, 0
    %v1466 = vsel %vm1464, 1, 0
    %vm1467 = vcmp.eq.s32.totalorder %v1465, 1
    %vm1468 = vcmp.eq.s32.totalorder %v1466, 1
    %v1469 = vsel %vm1467, 0.0, %v1432
    %v1470 = vsel %vm1467, 0.0, %v1433
    %v1471 = vsel %vm1467, 0.0, %v1434
    %v1472 = vsel %vm1467, 0.0, %v1435
    %v1473 = vsel %vm1468, 0.0, %v1417
    %v1474 = vsel %vm1468, 0.0, %v1419
    %v1475 = vsel %vm1468, 0.0, %v1421
    %v1476 = vsel %vm1468, 0.0, %v1423
    %vm1477 = vcmp.eq.s32.totalorder %v1461, 7
    %vm1478 = vcmp.eq.s32.totalorder %v1462, 7
    %v1479 = vsel %vm1477, 1, 0
    %v1480 = vsel %vm1478, 1, 0
    %vm1481 = vcmp.eq.s32.totalorder %v1479, 1
    %vm1482 = vcmp.eq.s32.totalorder %v1480, 1
    %v1483 = vsel %vm1481, 0.0, %v1439
    %v1484 = vsel %vm1481, 0.0, %v1442
    %v1485 = vsel %vm1481, 0.0, %v1445
    %v1486 = vsel %vm1481, 0.0, %v1448
    %v1487 = vsel %vm1482, 0.0, %v1457
    %v1488 = vsel %vm1482, 0.0, %v1458
    %v1489 = vsel %vm1482, 0.0, %v1459
    %v1490 = vsel %vm1482, 0.0, %v1460
    %v1491 = vpack.c.bf16 %v1473, %v1469
    %v1492 = vpack.c.bf16 %v1474, %v1470
    %v1493 = vpack.c.bf16 %v1475, %v1471
    %v1494 = vpack.c.bf16 %v1476, %v1472
    %v1495 = vpack.c.bf16 %v1203, %v1201
    %v1496 = vpack.c.bf16 %v1204, %v1202
    %v1497 = vpack.c.bf16 %v1207, %v1205
    %v1498 = vpack.c.bf16 %v1208, %v1206
    %v1499 = vpack.c.bf16 %v1487, %v1483
    %v1500 = vpack.c.bf16 %v1488, %v1484
    %v1501 = vpack.c.bf16 %v1489, %v1485
    %v1502 = vpack.c.bf16 %v1490, %v1486
    %v1504 = vlaneseq
    %v1505 = vshrl.u32 %v1504, 7
    %v1506 = vsub.s32 0, %v1505
    %v1507 = vrot.slane %v1402, %v1506
    %v1508 = vlaneseq
    %v1509 = vshrl.u32 %v1508, 7
    %v1510 = vsub.s32 1, %v1509
    %v1511 = vrot.slane %v1402, %v1510
    %v1706 = vunpack.c.l.b16 %v1209
    %v1707 = vunpack.c.h.b16 %v1209
    %v1708 = vunpack.c.l.b16 %v1210
    %v1709 = vunpack.c.h.b16 %v1210
    %v1710 = vunpack.c.l.b16 %v1211
    %v1711 = vunpack.c.h.b16 %v1211
    %v1712 = vunpack.c.l.b16 %v1212
    %v1713 = vunpack.c.h.b16 %v1212
    %v1714 = vunpack.c.l.b16 %v1213
    %v1715 = vunpack.c.h.b16 %v1213
    %v1716 = vunpack.c.l.b16 %v1214
    %v1717 = vunpack.c.h.b16 %v1214
    %v1718 = vunpack.c.l.b16 %v1215
    %v1719 = vunpack.c.h.b16 %v1215
    %v1720 = vunpack.c.l.b16 %v1216
    %v1721 = vunpack.c.h.b16 %v1216
    %v1722 = vunpack.c.l.b16 %v1217
    %v1723 = vunpack.c.h.b16 %v1217
    %v1724 = vunpack.c.l.b16 %v1218
    %v1725 = vunpack.c.h.b16 %v1218
    %v1726 = vunpack.c.l.b16 %v1219
    %v1727 = vunpack.c.h.b16 %v1219
    %v1728 = vunpack.c.l.b16 %v1220
    %v1729 = vunpack.c.h.b16 %v1220
    %v1730 = vunpack.c.l.b16 %v1221
    %v1731 = vunpack.c.h.b16 %v1221
    %v1732 = vunpack.c.l.b16 %v1222
    %v1733 = vunpack.c.h.b16 %v1222
    %v1734 = vunpack.c.l.b16 %v1223
    %v1735 = vunpack.c.h.b16 %v1223
    %v1736 = vunpack.c.l.b16 %v1224
    %v1737 = vunpack.c.h.b16 %v1224
    %v1738 = vunpack.c.l.b16 %v1225
    %v1739 = vunpack.c.h.b16 %v1225
    %v1740 = vunpack.c.l.b16 %v1226
    %v1741 = vunpack.c.h.b16 %v1226
    %v1742 = vunpack.c.l.b16 %v1227
    %v1743 = vunpack.c.h.b16 %v1227
    %v1744 = vunpack.c.l.b16 %v1228
    %v1745 = vunpack.c.h.b16 %v1228
    %v1746 = vunpack.c.l.b16 %v1229
    %v1747 = vunpack.c.h.b16 %v1229
    %v1748 = vunpack.c.l.b16 %v1230
    %v1749 = vunpack.c.h.b16 %v1230
    %v1750 = vunpack.c.l.b16 %v1231
    %v1751 = vunpack.c.h.b16 %v1231
    %v1752 = vunpack.c.l.b16 %v1232
    %v1753 = vunpack.c.h.b16 %v1232
    %v1754 = vunpack.c.l.b16 %v1233
    %v1755 = vunpack.c.h.b16 %v1233
    %v1756 = vunpack.c.l.b16 %v1234
    %v1757 = vunpack.c.h.b16 %v1234
    %v1758 = vunpack.c.l.b16 %v1235
    %v1759 = vunpack.c.h.b16 %v1235
    %v1760 = vunpack.c.l.b16 %v1236
    %v1761 = vunpack.c.h.b16 %v1236
    %v1762 = vunpack.c.l.b16 %v1237
    %v1763 = vunpack.c.h.b16 %v1237
    %v1764 = vunpack.c.l.b16 %v1238
    %v1765 = vunpack.c.h.b16 %v1238
    %v1766 = vunpack.c.l.b16 %v1239
    %v1767 = vunpack.c.h.b16 %v1239
    %v1768 = vunpack.c.l.b16 %v1240
    %v1769 = vunpack.c.h.b16 %v1240
    %v1770 = vunpack.c.l.b16 %v1241
    %v1771 = vunpack.c.h.b16 %v1241
    %v1772 = vunpack.c.l.b16 %v1242
    %v1773 = vunpack.c.h.b16 %v1242
    %v1774 = vunpack.c.l.b16 %v1243
    %v1775 = vunpack.c.h.b16 %v1243
    %v1776 = vunpack.c.l.b16 %v1244
    %v1777 = vunpack.c.h.b16 %v1244
    %v1778 = vunpack.c.l.b16 %v1245
    %v1779 = vunpack.c.h.b16 %v1245
    %v1780 = vunpack.c.l.b16 %v1246
    %v1781 = vunpack.c.h.b16 %v1246
    %v1782 = vunpack.c.l.b16 %v1247
    %v1783 = vunpack.c.h.b16 %v1247
    %v1784 = vunpack.c.l.b16 %v1248
    %v1785 = vunpack.c.h.b16 %v1248
    %v1786 = vunpack.c.l.b16 %v1249
    %v1787 = vunpack.c.h.b16 %v1249
    %v1788 = vunpack.c.l.b16 %v1250
    %v1789 = vunpack.c.h.b16 %v1250
    %v1790 = vunpack.c.l.b16 %v1251
    %v1791 = vunpack.c.h.b16 %v1251
    %v1792 = vunpack.c.l.b16 %v1252
    %v1793 = vunpack.c.h.b16 %v1252
    %v1794 = vunpack.c.l.b16 %v1253
    %v1795 = vunpack.c.h.b16 %v1253
    %v1796 = vunpack.c.l.b16 %v1254
    %v1797 = vunpack.c.h.b16 %v1254
    %v1798 = vunpack.c.l.b16 %v1255
    %v1799 = vunpack.c.h.b16 %v1255
    %v1800 = vunpack.c.l.b16 %v1256
    %v1801 = vunpack.c.h.b16 %v1256
    %v1802 = vunpack.c.l.b16 %v1257
    %v1803 = vunpack.c.h.b16 %v1257
    %v1804 = vunpack.c.l.b16 %v1258
    %v1805 = vunpack.c.h.b16 %v1258
    %v1806 = vunpack.c.l.b16 %v1259
    %v1807 = vunpack.c.h.b16 %v1259
    %v1808 = vunpack.c.l.b16 %v1260
    %v1809 = vunpack.c.h.b16 %v1260
    %v1810 = vunpack.c.l.b16 %v1261
    %v1811 = vunpack.c.h.b16 %v1261
    %v1812 = vunpack.c.l.b16 %v1262
    %v1813 = vunpack.c.h.b16 %v1262
    %v1814 = vunpack.c.l.b16 %v1263
    %v1815 = vunpack.c.h.b16 %v1263
    %v1816 = vunpack.c.l.b16 %v1264
    %v1817 = vunpack.c.h.b16 %v1264
    %v1818 = vunpack.c.l.b16 %v1265
    %v1819 = vunpack.c.h.b16 %v1265
    %v1820 = vunpack.c.l.b16 %v1266
    %v1821 = vunpack.c.h.b16 %v1266
    %v1822 = vunpack.c.l.b16 %v1267
    %v1823 = vunpack.c.h.b16 %v1267
    %v1824 = vunpack.c.l.b16 %v1268
    %v1825 = vunpack.c.h.b16 %v1268
    %v1826 = vunpack.c.l.b16 %v1269
    %v1827 = vunpack.c.h.b16 %v1269
    %v1828 = vunpack.c.l.b16 %v1270
    %v1829 = vunpack.c.h.b16 %v1270
    %v1830 = vunpack.c.l.b16 %v1271
    %v1831 = vunpack.c.h.b16 %v1271
    %v1832 = vunpack.c.l.b16 %v1272
    %v1833 = vunpack.c.h.b16 %v1272
    %v1834 = vunpack.c.l.b16 %v1273
    %v1835 = vunpack.c.h.b16 %v1273
    %v1836 = vunpack.c.l.b16 %v1274
    %v1837 = vunpack.c.h.b16 %v1274
    %v1838 = vunpack.c.l.b16 %v1275
    %v1839 = vunpack.c.h.b16 %v1275
    %v1840 = vunpack.c.l.b16 %v1276
    %v1841 = vunpack.c.h.b16 %v1276
    %v1842 = vunpack.c.l.b16 %v1277
    %v1843 = vunpack.c.h.b16 %v1277
    %v1844 = vunpack.c.l.b16 %v1278
    %v1845 = vunpack.c.h.b16 %v1278
    %v1846 = vunpack.c.l.b16 %v1279
    %v1847 = vunpack.c.h.b16 %v1279
    %v1848 = vunpack.c.l.b16 %v1280
    %v1849 = vunpack.c.h.b16 %v1280
    %v1850 = vunpack.c.l.b16 %v1281
    %v1851 = vunpack.c.h.b16 %v1281
    %v1852 = vunpack.c.l.b16 %v1282
    %v1853 = vunpack.c.h.b16 %v1282
    %v1854 = vunpack.c.l.b16 %v1283
    %v1855 = vunpack.c.h.b16 %v1283
    %v1856 = vunpack.c.l.b16 %v1284
    %v1857 = vunpack.c.h.b16 %v1284
    %v1858 = vunpack.c.l.b16 %v1285
    %v1859 = vunpack.c.h.b16 %v1285
    %v1860 = vunpack.c.l.b16 %v1286
    %v1861 = vunpack.c.h.b16 %v1286
    %v1862 = vunpack.c.l.b16 %v1287
    %v1863 = vunpack.c.h.b16 %v1287
    %v1864 = vunpack.c.l.b16 %v1288
    %v1865 = vunpack.c.h.b16 %v1288
    %v1866 = vunpack.c.l.b16 %v1289
    %v1867 = vunpack.c.h.b16 %v1289
    %v1868 = vunpack.c.l.b16 %v1290
    %v1869 = vunpack.c.h.b16 %v1290
    %v1870 = vunpack.c.l.b16 %v1291
    %v1871 = vunpack.c.h.b16 %v1291
    %v1872 = vunpack.c.l.b16 %v1292
    %v1873 = vunpack.c.h.b16 %v1292
    %v1874 = vunpack.c.l.b16 %v1293
    %v1875 = vunpack.c.h.b16 %v1293
    %v1876 = vunpack.c.l.b16 %v1294
    %v1877 = vunpack.c.h.b16 %v1294
    %v1878 = vunpack.c.l.b16 %v1295
    %v1879 = vunpack.c.h.b16 %v1295
    %v1880 = vunpack.c.l.b16 %v1296
    %v1881 = vunpack.c.h.b16 %v1296
    %v1882 = vunpack.c.l.b16 %v1297
    %v1883 = vunpack.c.h.b16 %v1297
    %v1884 = vunpack.c.l.b16 %v1298
    %v1885 = vunpack.c.h.b16 %v1298
    %v1886 = vunpack.c.l.b16 %v1299
    %v1887 = vunpack.c.h.b16 %v1299
    %v1888 = vunpack.c.l.b16 %v1300
    %v1889 = vunpack.c.h.b16 %v1300
    %v1890 = vunpack.c.l.b16 %v1301
    %v1891 = vunpack.c.h.b16 %v1301
    %v1892 = vunpack.c.l.b16 %v1302
    %v1893 = vunpack.c.h.b16 %v1302
    %v1894 = vunpack.c.l.b16 %v1303
    %v1895 = vunpack.c.h.b16 %v1303
    %v1896 = vunpack.c.l.b16 %v1304
    %v1897 = vunpack.c.h.b16 %v1304
    %v1898 = vunpack.c.l.b16 %v1305
    %v1899 = vunpack.c.h.b16 %v1305
    %v1900 = vunpack.c.l.b16 %v1306
    %v1901 = vunpack.c.h.b16 %v1306
    %v1902 = vunpack.c.l.b16 %v1307
    %v1903 = vunpack.c.h.b16 %v1307
    %v1904 = vunpack.c.l.b16 %v1308
    %v1905 = vunpack.c.h.b16 %v1308
    %v1906 = vunpack.c.l.b16 %v1309
    %v1907 = vunpack.c.h.b16 %v1309
    %v1908 = vunpack.c.l.b16 %v1310
    %v1909 = vunpack.c.h.b16 %v1310
    %v1910 = vunpack.c.l.b16 %v1311
    %v1911 = vunpack.c.h.b16 %v1311
    %v1912 = vunpack.c.l.b16 %v1312
    %v1913 = vunpack.c.h.b16 %v1312
    %v1914 = vunpack.c.l.b16 %v1313
    %v1915 = vunpack.c.h.b16 %v1313
    %v1916 = vunpack.c.l.b16 %v1314
    %v1917 = vunpack.c.h.b16 %v1314
    %v1918 = vunpack.c.l.b16 %v1315
    %v1919 = vunpack.c.h.b16 %v1315
    %v1920 = vunpack.c.l.b16 %v1316
    %v1921 = vunpack.c.h.b16 %v1316
    %v1922 = vunpack.c.l.b16 %v1317
    %v1923 = vunpack.c.h.b16 %v1317
    %v1924 = vunpack.c.l.b16 %v1318
    %v1925 = vunpack.c.h.b16 %v1318
    %v1926 = vunpack.c.l.b16 %v1319
    %v1927 = vunpack.c.h.b16 %v1319
    %v1928 = vunpack.c.l.b16 %v1320
    %v1929 = vunpack.c.h.b16 %v1320
    %v1930 = vunpack.c.l.b16 %v1321
    %v1931 = vunpack.c.h.b16 %v1321
    %v1932 = vunpack.c.l.b16 %v1322
    %v1933 = vunpack.c.h.b16 %v1322
    %v1934 = vunpack.c.l.b16 %v1323
    %v1935 = vunpack.c.h.b16 %v1323
    %v1936 = vunpack.c.l.b16 %v1324
    %v1937 = vunpack.c.h.b16 %v1324
    %v1938 = vunpack.c.l.b16 %v1325
    %v1939 = vunpack.c.h.b16 %v1325
    %v1940 = vunpack.c.l.b16 %v1326
    %v1941 = vunpack.c.h.b16 %v1326
    %v1942 = vunpack.c.l.b16 %v1327
    %v1943 = vunpack.c.h.b16 %v1327
    %v1944 = vunpack.c.l.b16 %v1328
    %v1945 = vunpack.c.h.b16 %v1328
    %v1946 = vunpack.c.l.b16 %v1329
    %v1947 = vunpack.c.h.b16 %v1329
    %v1948 = vunpack.c.l.b16 %v1330
    %v1949 = vunpack.c.h.b16 %v1330
    %v1950 = vunpack.c.l.b16 %v1331
    %v1951 = vunpack.c.h.b16 %v1331
    %v1952 = vunpack.c.l.b16 %v1332
    %v1953 = vunpack.c.h.b16 %v1332
    %v1954 = vunpack.c.l.b16 %v1333
    %v1955 = vunpack.c.h.b16 %v1333
    %v1956 = vunpack.c.l.b16 %v1334
    %v1957 = vunpack.c.h.b16 %v1334
    %v1958 = vunpack.c.l.b16 %v1335
    %v1959 = vunpack.c.h.b16 %v1335
    %v1960 = vunpack.c.l.b16 %v1336
    %v1961 = vunpack.c.h.b16 %v1336
    %v1962 = vunpack.c.l.b16 %v1337
    %v1963 = vunpack.c.h.b16 %v1337
    %v1964 = vunpack.c.l.b16 %v1338
    %v1965 = vunpack.c.h.b16 %v1338
    %v1966 = vunpack.c.l.b16 %v1339
    %v1967 = vunpack.c.h.b16 %v1339
    %v1968 = vunpack.c.l.b16 %v1340
    %v1969 = vunpack.c.h.b16 %v1340
    %v1970 = vunpack.c.l.b16 %v1341
    %v1971 = vunpack.c.h.b16 %v1341
    %v1972 = vunpack.c.l.b16 %v1342
    %v1973 = vunpack.c.h.b16 %v1342
    %v1974 = vunpack.c.l.b16 %v1343
    %v1975 = vunpack.c.h.b16 %v1343
    %v1976 = vunpack.c.l.b16 %v1344
    %v1977 = vunpack.c.h.b16 %v1344
    %v1978 = vunpack.c.l.b16 %v1345
    %v1979 = vunpack.c.h.b16 %v1345
    %v1980 = vunpack.c.l.b16 %v1346
    %v1981 = vunpack.c.h.b16 %v1346
    %v1982 = vunpack.c.l.b16 %v1347
    %v1983 = vunpack.c.h.b16 %v1347
    %v1984 = vunpack.c.l.b16 %v1348
    %v1985 = vunpack.c.h.b16 %v1348
    %v1986 = vunpack.c.l.b16 %v1349
    %v1987 = vunpack.c.h.b16 %v1349
    %v1988 = vunpack.c.l.b16 %v1350
    %v1989 = vunpack.c.h.b16 %v1350
    %v1990 = vunpack.c.l.b16 %v1351
    %v1991 = vunpack.c.h.b16 %v1351
    %v1992 = vunpack.c.l.b16 %v1352
    %v1993 = vunpack.c.h.b16 %v1352
    %v1994 = vunpack.c.l.b16 %v1353
    %v1995 = vunpack.c.h.b16 %v1353
    %v1996 = vunpack.c.l.b16 %v1354
    %v1997 = vunpack.c.h.b16 %v1354
    %v1998 = vunpack.c.l.b16 %v1355
    %v1999 = vunpack.c.h.b16 %v1355
    %v2000 = vunpack.c.l.b16 %v1356
    %v2001 = vunpack.c.h.b16 %v1356
    %v2002 = vunpack.c.l.b16 %v1357
    %v2003 = vunpack.c.h.b16 %v1357
    %v2004 = vunpack.c.l.b16 %v1358
    %v2005 = vunpack.c.h.b16 %v1358
    %v2006 = vunpack.c.l.b16 %v1359
    %v2007 = vunpack.c.h.b16 %v1359
    %v2008 = vunpack.c.l.b16 %v1360
    %v2009 = vunpack.c.h.b16 %v1360
    %v2010 = vunpack.c.l.b16 %v1361
    %v2011 = vunpack.c.h.b16 %v1361
    %v2012 = vunpack.c.l.b16 %v1362
    %v2013 = vunpack.c.h.b16 %v1362
    %v2014 = vunpack.c.l.b16 %v1363
    %v2015 = vunpack.c.h.b16 %v1363
    %v2016 = vunpack.c.l.b16 %v1364
    %v2017 = vunpack.c.h.b16 %v1364
    %v2018 = vunpack.c.l.b16 %v1365
    %v2019 = vunpack.c.h.b16 %v1365
    %v2020 = vunpack.c.l.b16 %v1366
    %v2021 = vunpack.c.h.b16 %v1366
    %v2022 = vunpack.c.l.b16 %v1367
    %v2023 = vunpack.c.h.b16 %v1367
    %v2024 = vunpack.c.l.b16 %v1368
    %v2025 = vunpack.c.h.b16 %v1368
    %v2026 = vunpack.c.l.b16 %v1369
    %v2027 = vunpack.c.h.b16 %v1369
    %v2028 = vunpack.c.l.b16 %v1370
    %v2029 = vunpack.c.h.b16 %v1370
    %v2030 = vunpack.c.l.b16 %v1371
    %v2031 = vunpack.c.h.b16 %v1371
    %v2032 = vunpack.c.l.b16 %v1372
    %v2033 = vunpack.c.h.b16 %v1372
    %v2034 = vunpack.c.l.b16 %v1373
    %v2035 = vunpack.c.h.b16 %v1373
    %v2036 = vunpack.c.l.b16 %v1374
    %v2037 = vunpack.c.h.b16 %v1374
    %v2038 = vunpack.c.l.b16 %v1375
    %v2039 = vunpack.c.h.b16 %v1375
    %v2040 = vunpack.c.l.b16 %v1376
    %v2041 = vunpack.c.h.b16 %v1376
    %v2042 = vunpack.c.l.b16 %v1377
    %v2043 = vunpack.c.h.b16 %v1377
    %v2044 = vunpack.c.l.b16 %v1378
    %v2045 = vunpack.c.h.b16 %v1378
    %v2046 = vunpack.c.l.b16 %v1379
    %v2047 = vunpack.c.h.b16 %v1379
    %v2048 = vunpack.c.l.b16 %v1380
    %v2049 = vunpack.c.h.b16 %v1380
    %v2050 = vunpack.c.l.b16 %v1381
    %v2051 = vunpack.c.h.b16 %v1381
    %v2052 = vunpack.c.l.b16 %v1382
    %v2053 = vunpack.c.h.b16 %v1382
    %v2054 = vunpack.c.l.b16 %v1383
    %v2055 = vunpack.c.h.b16 %v1383
    %v2056 = vunpack.c.l.b16 %v1384
    %v2057 = vunpack.c.h.b16 %v1384
    %v2058 = vunpack.c.l.b16 %v1385
    %v2059 = vunpack.c.h.b16 %v1385
    %v2060 = vunpack.c.l.b16 %v1386
    %v2061 = vunpack.c.h.b16 %v1386
    %v2062 = vunpack.c.l.b16 %v1387
    %v2063 = vunpack.c.h.b16 %v1387
    %v2064 = vunpack.c.l.b16 %v1388
    %v2065 = vunpack.c.h.b16 %v1388
    %v2066 = vunpack.c.l.b16 %v1389
    %v2067 = vunpack.c.h.b16 %v1389
    %v2068 = vunpack.c.l.b16 %v1390
    %v2069 = vunpack.c.h.b16 %v1390
    %v2070 = vunpack.c.l.b16 %v1391
    %v2071 = vunpack.c.h.b16 %v1391
    %v2072 = vunpack.c.l.b16 %v1392
    %v2073 = vunpack.c.h.b16 %v1392
    %v2074 = vunpack.c.l.b16 %v1393
    %v2075 = vunpack.c.h.b16 %v1393
    %v2076 = vunpack.c.l.b16 %v1394
    %v2077 = vunpack.c.h.b16 %v1394
    %v2078 = vunpack.c.l.b16 %v1395
    %v2079 = vunpack.c.h.b16 %v1395
    %v2080 = vunpack.c.l.b16 %v1396
    %v2081 = vunpack.c.h.b16 %v1396
    %v2082 = vunpack.c.l.b16 %v1397
    %v2083 = vunpack.c.h.b16 %v1397
    %v2084 = vunpack.c.l.b16 %v1398
    %v2085 = vunpack.c.h.b16 %v1398
    %v2086 = vunpack.c.l.b16 %v1399
    %v2087 = vunpack.c.h.b16 %v1399
    %v2088 = vunpack.c.l.b16 %v1400
    %v2089 = vunpack.c.h.b16 %v1400
    %v2090 = vpack.c.b16 %v1708, %v1706
    %v2091 = vpack.c.b16 %v1709, %v1707
    %v2092 = vpack.c.b16 %v1712, %v1710
    %v2093 = vpack.c.b16 %v1713, %v1711
    %v2094 = vpack.c.b16 %v1716, %v1714
    %v2095 = vpack.c.b16 %v1717, %v1715
    %v2096 = vpack.c.b16 %v1720, %v1718
    %v2097 = vpack.c.b16 %v1721, %v1719
    %v2098 = vpack.c.b16 %v1724, %v1722
    %v2099 = vpack.c.b16 %v1725, %v1723
    %v2100 = vpack.c.b16 %v1728, %v1726
    %v2101 = vpack.c.b16 %v1729, %v1727
    %v2102 = vpack.c.b16 %v1732, %v1730
    %v2103 = vpack.c.b16 %v1733, %v1731
    %v2104 = vpack.c.b16 %v1736, %v1734
    %v2105 = vpack.c.b16 %v1737, %v1735
    %v2106 = vpack.c.b16 %v1740, %v1738
    %v2107 = vpack.c.b16 %v1741, %v1739
    %v2108 = vpack.c.b16 %v1744, %v1742
    %v2109 = vpack.c.b16 %v1745, %v1743
    %v2110 = vpack.c.b16 %v1748, %v1746
    %v2111 = vpack.c.b16 %v1749, %v1747
    %v2112 = vpack.c.b16 %v1752, %v1750
    %v2113 = vpack.c.b16 %v1753, %v1751
    %v2114 = vpack.c.b16 %v1756, %v1754
    %v2115 = vpack.c.b16 %v1757, %v1755
    %v2116 = vpack.c.b16 %v1760, %v1758
    %v2117 = vpack.c.b16 %v1761, %v1759
    %v2118 = vpack.c.b16 %v1764, %v1762
    %v2119 = vpack.c.b16 %v1765, %v1763
    %v2120 = vpack.c.b16 %v1768, %v1766
    %v2121 = vpack.c.b16 %v1769, %v1767
    %v2122 = vpack.c.b16 %v1772, %v1770
    %v2123 = vpack.c.b16 %v1773, %v1771
    %v2124 = vpack.c.b16 %v1776, %v1774
    %v2125 = vpack.c.b16 %v1777, %v1775
    %v2126 = vpack.c.b16 %v1780, %v1778
    %v2127 = vpack.c.b16 %v1781, %v1779
    %v2128 = vpack.c.b16 %v1784, %v1782
    %v2129 = vpack.c.b16 %v1785, %v1783
    %v2130 = vpack.c.b16 %v1788, %v1786
    %v2131 = vpack.c.b16 %v1789, %v1787
    %v2132 = vpack.c.b16 %v1792, %v1790
    %v2133 = vpack.c.b16 %v1793, %v1791
    %v2134 = vpack.c.b16 %v1796, %v1794
    %v2135 = vpack.c.b16 %v1797, %v1795
    %v2136 = vpack.c.b16 %v1800, %v1798
    %v2137 = vpack.c.b16 %v1801, %v1799
    %v2138 = vpack.c.b16 %v1804, %v1802
    %v2139 = vpack.c.b16 %v1805, %v1803
    %v2140 = vpack.c.b16 %v1808, %v1806
    %v2141 = vpack.c.b16 %v1809, %v1807
    %v2142 = vpack.c.b16 %v1812, %v1810
    %v2143 = vpack.c.b16 %v1813, %v1811
    %v2144 = vpack.c.b16 %v1816, %v1814
    %v2145 = vpack.c.b16 %v1817, %v1815
    %v2146 = vpack.c.b16 %v1820, %v1818
    %v2147 = vpack.c.b16 %v1821, %v1819
    %v2148 = vpack.c.b16 %v1824, %v1822
    %v2149 = vpack.c.b16 %v1825, %v1823
    %v2150 = vpack.c.b16 %v1828, %v1826
    %v2151 = vpack.c.b16 %v1829, %v1827
    %v2152 = vpack.c.b16 %v1832, %v1830
    %v2153 = vpack.c.b16 %v1833, %v1831
    %v2154 = vpack.c.b16 %v1836, %v1834
    %v2155 = vpack.c.b16 %v1837, %v1835
    %v2156 = vpack.c.b16 %v1840, %v1838
    %v2157 = vpack.c.b16 %v1841, %v1839
    %v2158 = vpack.c.b16 %v1844, %v1842
    %v2159 = vpack.c.b16 %v1845, %v1843
    %v2160 = vpack.c.b16 %v1848, %v1846
    %v2161 = vpack.c.b16 %v1849, %v1847
    %v2162 = vpack.c.b16 %v1852, %v1850
    %v2163 = vpack.c.b16 %v1853, %v1851
    %v2164 = vpack.c.b16 %v1856, %v1854
    %v2165 = vpack.c.b16 %v1857, %v1855
    %v2166 = vpack.c.b16 %v1860, %v1858
    %v2167 = vpack.c.b16 %v1861, %v1859
    %v2168 = vpack.c.b16 %v1864, %v1862
    %v2169 = vpack.c.b16 %v1865, %v1863
    %v2170 = vpack.c.b16 %v1868, %v1866
    %v2171 = vpack.c.b16 %v1869, %v1867
    %v2172 = vpack.c.b16 %v1872, %v1870
    %v2173 = vpack.c.b16 %v1873, %v1871
    %v2174 = vpack.c.b16 %v1876, %v1874
    %v2175 = vpack.c.b16 %v1877, %v1875
    %v2176 = vpack.c.b16 %v1880, %v1878
    %v2177 = vpack.c.b16 %v1881, %v1879
    %v2178 = vpack.c.b16 %v1884, %v1882
    %v2179 = vpack.c.b16 %v1885, %v1883
    %v2180 = vpack.c.b16 %v1888, %v1886
    %v2181 = vpack.c.b16 %v1889, %v1887
    %v2182 = vpack.c.b16 %v1892, %v1890
    %v2183 = vpack.c.b16 %v1893, %v1891
    %v2184 = vpack.c.b16 %v1896, %v1894
    %v2185 = vpack.c.b16 %v1897, %v1895
    %v2186 = vpack.c.b16 %v1900, %v1898
    %v2187 = vpack.c.b16 %v1901, %v1899
    %v2188 = vpack.c.b16 %v1904, %v1902
    %v2189 = vpack.c.b16 %v1905, %v1903
    %v2190 = vpack.c.b16 %v1908, %v1906
    %v2191 = vpack.c.b16 %v1909, %v1907
    %v2192 = vpack.c.b16 %v1912, %v1910
    %v2193 = vpack.c.b16 %v1913, %v1911
    %v2194 = vpack.c.b16 %v1916, %v1914
    %v2195 = vpack.c.b16 %v1917, %v1915
    %v2196 = vpack.c.b16 %v1920, %v1918
    %v2197 = vpack.c.b16 %v1921, %v1919
    %v2198 = vpack.c.b16 %v1924, %v1922
    %v2199 = vpack.c.b16 %v1925, %v1923
    %v2200 = vpack.c.b16 %v1928, %v1926
    %v2201 = vpack.c.b16 %v1929, %v1927
    %v2202 = vpack.c.b16 %v1932, %v1930
    %v2203 = vpack.c.b16 %v1933, %v1931
    %v2204 = vpack.c.b16 %v1936, %v1934
    %v2205 = vpack.c.b16 %v1937, %v1935
    %v2206 = vpack.c.b16 %v1940, %v1938
    %v2207 = vpack.c.b16 %v1941, %v1939
    %v2208 = vpack.c.b16 %v1944, %v1942
    %v2209 = vpack.c.b16 %v1945, %v1943
    %v2210 = vpack.c.b16 %v1948, %v1946
    %v2211 = vpack.c.b16 %v1949, %v1947
    %v2212 = vpack.c.b16 %v1952, %v1950
    %v2213 = vpack.c.b16 %v1953, %v1951
    %v2214 = vpack.c.b16 %v1956, %v1954
    %v2215 = vpack.c.b16 %v1957, %v1955
    %v2216 = vpack.c.b16 %v1960, %v1958
    %v2217 = vpack.c.b16 %v1961, %v1959
    %v2218 = vpack.c.b16 %v1964, %v1962
    %v2219 = vpack.c.b16 %v1965, %v1963
    %v2220 = vpack.c.b16 %v1968, %v1966
    %v2221 = vpack.c.b16 %v1969, %v1967
    %v2222 = vpack.c.b16 %v1972, %v1970
    %v2223 = vpack.c.b16 %v1973, %v1971
    %v2224 = vpack.c.b16 %v1976, %v1974
    %v2225 = vpack.c.b16 %v1977, %v1975
    %v2226 = vpack.c.b16 %v1980, %v1978
    %v2227 = vpack.c.b16 %v1981, %v1979
    %v2228 = vpack.c.b16 %v1984, %v1982
    %v2229 = vpack.c.b16 %v1985, %v1983
    %v2230 = vpack.c.b16 %v1988, %v1986
    %v2231 = vpack.c.b16 %v1989, %v1987
    %v2232 = vpack.c.b16 %v1992, %v1990
    %v2233 = vpack.c.b16 %v1993, %v1991
    %v2234 = vpack.c.b16 %v1996, %v1994
    %v2235 = vpack.c.b16 %v1997, %v1995
    %v2236 = vpack.c.b16 %v2000, %v1998
    %v2237 = vpack.c.b16 %v2001, %v1999
    %v2238 = vpack.c.b16 %v2004, %v2002
    %v2239 = vpack.c.b16 %v2005, %v2003
    %v2240 = vpack.c.b16 %v2008, %v2006
    %v2241 = vpack.c.b16 %v2009, %v2007
    %v2242 = vpack.c.b16 %v2012, %v2010
    %v2243 = vpack.c.b16 %v2013, %v2011
    %v2244 = vpack.c.b16 %v2016, %v2014
    %v2245 = vpack.c.b16 %v2017, %v2015
    %v2246 = vpack.c.b16 %v2020, %v2018
    %v2247 = vpack.c.b16 %v2021, %v2019
    %v2248 = vpack.c.b16 %v2024, %v2022
    %v2249 = vpack.c.b16 %v2025, %v2023
    %v2250 = vpack.c.b16 %v2028, %v2026
    %v2251 = vpack.c.b16 %v2029, %v2027
    %v2252 = vpack.c.b16 %v2032, %v2030
    %v2253 = vpack.c.b16 %v2033, %v2031
    %v2254 = vpack.c.b16 %v2036, %v2034
    %v2255 = vpack.c.b16 %v2037, %v2035
    %v2256 = vpack.c.b16 %v2040, %v2038
    %v2257 = vpack.c.b16 %v2041, %v2039
    %v2258 = vpack.c.b16 %v2044, %v2042
    %v2259 = vpack.c.b16 %v2045, %v2043
    %v2260 = vpack.c.b16 %v2048, %v2046
    %v2261 = vpack.c.b16 %v2049, %v2047
    %v2262 = vpack.c.b16 %v2052, %v2050
    %v2263 = vpack.c.b16 %v2053, %v2051
    %v2264 = vpack.c.b16 %v2056, %v2054
    %v2265 = vpack.c.b16 %v2057, %v2055
    %v2266 = vpack.c.b16 %v2060, %v2058
    %v2267 = vpack.c.b16 %v2061, %v2059
    %v2268 = vpack.c.b16 %v2064, %v2062
    %v2269 = vpack.c.b16 %v2065, %v2063
    %v2270 = vpack.c.b16 %v2068, %v2066
    %v2271 = vpack.c.b16 %v2069, %v2067
    %v2272 = vpack.c.b16 %v2072, %v2070
    %v2273 = vpack.c.b16 %v2073, %v2071
    %v2274 = vpack.c.b16 %v2076, %v2074
    %v2275 = vpack.c.b16 %v2077, %v2075
    %v2276 = vpack.c.b16 %v2080, %v2078
    %v2277 = vpack.c.b16 %v2081, %v2079
    %v2278 = vpack.c.b16 %v2084, %v2082
    %v2279 = vpack.c.b16 %v2085, %v2083
    %v2280 = vpack.c.b16 %v2088, %v2086
    %v2281 = vpack.c.b16 %v2089, %v2087
    %2474 = vmatprep.subr.bf16.mxu0 %v2105
    %2475 = vmatpush1.bf16.msra.mxu0 %v2104
    %2476 = vmatprep.subr.bf16.mxu0 %v2103
    %2477 = vmatpush1.bf16.msra.mxu0 %v2102
    %2478 = vmatprep.subr.bf16.mxu0 %v2101
    %2479 = vmatpush1.bf16.msra.mxu0 %v2100
    %2480 = vmatprep.subr.bf16.mxu0 %v2099
    %2481 = vmatpush1.bf16.msra.mxu0 %v2098
    %2482 = vmatprep.subr.bf16.mxu0 %v2097
    %2483 = vmatpush1.bf16.msra.mxu0 %v2096
    %2484 = vmatprep.subr.bf16.mxu0 %v2095
    %2485 = vmatpush1.bf16.msra.mxu0 %v2094
    %2486 = vmatprep.subr.bf16.mxu0 %v2093
    %2487 = vmatpush1.bf16.msra.mxu0 %v2092
    %2488 = vmatprep.subr.bf16.mxu0 %v2091
    %2489 = vmatpush1.bf16.msra.mxu0 %v2090
    %2490 = vmatprep.subr.bf16.mxu0 %v2121
    %2491 = vmatpush2.bf16.msra.mxu0 %v2120
    %2492 = vmatprep.subr.bf16.mxu0 %v2119
    %2493 = vmatpush2.bf16.msra.mxu0 %v2118
    %2494 = vmatprep.subr.bf16.mxu0 %v2117
    %2495 = vmatpush2.bf16.msra.mxu0 %v2116
    %2496 = vmatprep.subr.bf16.mxu0 %v2115
    %2497 = vmatpush2.bf16.msra.mxu0 %v2114
    %2498 = vmatprep.subr.bf16.mxu0 %v2113
    %2499 = vmatpush2.bf16.msra.mxu0 %v2112
    %2500 = vmatprep.subr.bf16.mxu0 %v2111
    %2501 = vmatpush2.bf16.msra.mxu0 %v2110
    %2502 = vmatprep.subr.bf16.mxu0 %v2109
    %2503 = vmatpush2.bf16.msra.mxu0 %v2108
    %2504 = vmatprep.subr.bf16.mxu0 %v2107
    %2505 = vmatpush2.bf16.msra.mxu0 %v2106
    %2506 = vmatprep.mubr.bf16.mxu0 %v1492
    %2507 = vmatmul.mubr.bf16.gmra.mxu0 %v1491
    %v2508 = vpop.f32.mrf.mxu0
    %v2509 = vadd.f32 %v1507, %v2508
    %v2510 = vpop.f32.mrf.mxu0
    %v2511 = vadd.f32 %v1511, %v2510
    %v2512 = vpop.f32.mrf.mxu0
    %v2513 = vadd.f32 %v1507, %v2512
    %v2514 = vpop.f32.mrf.mxu0
    %v2515 = vadd.f32 %v1511, %v2514
    %2516 = vdwg.mxu0
    %2517 = vmatprep.subr.bf16.mxu0 %v2137
    %2518 = vmatpush1.bf16.msra.mxu0 %v2136
    %2519 = vmatprep.subr.bf16.mxu0 %v2135
    %2520 = vmatpush1.bf16.msra.mxu0 %v2134
    %2521 = vmatprep.subr.bf16.mxu0 %v2133
    %2522 = vmatpush1.bf16.msra.mxu0 %v2132
    %2523 = vmatprep.subr.bf16.mxu0 %v2131
    %2524 = vmatpush1.bf16.msra.mxu0 %v2130
    %2525 = vmatprep.subr.bf16.mxu0 %v2129
    %2526 = vmatpush1.bf16.msra.mxu0 %v2128
    %2527 = vmatprep.subr.bf16.mxu0 %v2127
    %2528 = vmatpush1.bf16.msra.mxu0 %v2126
    %2529 = vmatprep.subr.bf16.mxu0 %v2125
    %2530 = vmatpush1.bf16.msra.mxu0 %v2124
    %2531 = vmatprep.subr.bf16.mxu0 %v2123
    %2532 = vmatpush1.bf16.msra.mxu0 %v2122
    %2533 = vmatprep.subr.bf16.mxu0 %v2153
    %2534 = vmatpush2.bf16.msra.mxu0 %v2152
    %2535 = vmatprep.subr.bf16.mxu0 %v2151
    %2536 = vmatpush2.bf16.msra.mxu0 %v2150
    %2537 = vmatprep.subr.bf16.mxu0 %v2149
    %2538 = vmatpush2.bf16.msra.mxu0 %v2148
    %2539 = vmatprep.subr.bf16.mxu0 %v2147
    %2540 = vmatpush2.bf16.msra.mxu0 %v2146
    %2541 = vmatprep.subr.bf16.mxu0 %v2145
    %2542 = vmatpush2.bf16.msra.mxu0 %v2144
    %2543 = vmatprep.subr.bf16.mxu0 %v2143
    %2544 = vmatpush2.bf16.msra.mxu0 %v2142
    %2545 = vmatprep.subr.bf16.mxu0 %v2141
    %2546 = vmatpush2.bf16.msra.mxu0 %v2140
    %2547 = vmatprep.subr.bf16.mxu0 %v2139
    %2548 = vmatpush2.bf16.msra.mxu0 %v2138
    %2549 = vmatprep.mubr.bf16.mxu0 %v1494
    %2550 = vmatmul.mubr.bf16.gmra.mxu0 %v1493
    %v2551 = vpop.f32.mrf.mxu0
    %v2552 = vadd.f32 %v2509, %v2551
    %v2553 = vpop.f32.mrf.mxu0
    %v2554 = vadd.f32 %v2511, %v2553
    %v2555 = vpop.f32.mrf.mxu0
    %v2556 = vadd.f32 %v2513, %v2555
    %v2557 = vpop.f32.mrf.mxu0
    %v2558 = vadd.f32 %v2515, %v2557
    %2559 = vdwg.mxu0
    %2560 = vmatprep.subr.bf16.mxu0 %v2169
    %2561 = vmatpush1.bf16.msra.mxu0 %v2168
    %2562 = vmatprep.subr.bf16.mxu0 %v2167
    %2563 = vmatpush1.bf16.msra.mxu0 %v2166
    %2564 = vmatprep.subr.bf16.mxu0 %v2165
    %2565 = vmatpush1.bf16.msra.mxu0 %v2164
    %2566 = vmatprep.subr.bf16.mxu0 %v2163
    %2567 = vmatpush1.bf16.msra.mxu0 %v2162
    %2568 = vmatprep.subr.bf16.mxu0 %v2161
    %2569 = vmatpush1.bf16.msra.mxu0 %v2160
    %2570 = vmatprep.subr.bf16.mxu0 %v2159
    %2571 = vmatpush1.bf16.msra.mxu0 %v2158
    %2572 = vmatprep.subr.bf16.mxu0 %v2157
    %2573 = vmatpush1.bf16.msra.mxu0 %v2156
    %2574 = vmatprep.subr.bf16.mxu0 %v2155
    %2575 = vmatpush1.bf16.msra.mxu0 %v2154
    %2576 = vmatprep.subr.bf16.mxu0 %v2185
    %2577 = vmatpush2.bf16.msra.mxu0 %v2184
    %2578 = vmatprep.subr.bf16.mxu0 %v2183
    %2579 = vmatpush2.bf16.msra.mxu0 %v2182
    %2580 = vmatprep.subr.bf16.mxu0 %v2181
    %2581 = vmatpush2.bf16.msra.mxu0 %v2180
    %2582 = vmatprep.subr.bf16.mxu0 %v2179
    %2583 = vmatpush2.bf16.msra.mxu0 %v2178
    %2584 = vmatprep.subr.bf16.mxu0 %v2177
    %2585 = vmatpush2.bf16.msra.mxu0 %v2176
    %2586 = vmatprep.subr.bf16.mxu0 %v2175
    %2587 = vmatpush2.bf16.msra.mxu0 %v2174
    %2588 = vmatprep.subr.bf16.mxu0 %v2173
    %2589 = vmatpush2.bf16.msra.mxu0 %v2172
    %2590 = vmatprep.subr.bf16.mxu0 %v2171
    %2591 = vmatpush2.bf16.msra.mxu0 %v2170
    %2592 = vmatprep.mubr.bf16.mxu0 %v1496
    %2593 = vmatmul.mubr.bf16.gmra.mxu0 %v1495
    %v2594 = vpop.f32.mrf.mxu0
    %v2595 = vadd.f32 %v2552, %v2594
    %v2596 = vpop.f32.mrf.mxu0
    %v2597 = vadd.f32 %v2554, %v2596
    %v2598 = vpop.f32.mrf.mxu0
    %v2599 = vadd.f32 %v2556, %v2598
    %v2600 = vpop.f32.mrf.mxu0
    %v2601 = vadd.f32 %v2558, %v2600
    %2602 = vdwg.mxu0
    %2603 = vmatprep.subr.bf16.mxu0 %v2201
    %2604 = vmatpush1.bf16.msra.mxu0 %v2200
    %2605 = vmatprep.subr.bf16.mxu0 %v2199
    %2606 = vmatpush1.bf16.msra.mxu0 %v2198
    %2607 = vmatprep.subr.bf16.mxu0 %v2197
    %2608 = vmatpush1.bf16.msra.mxu0 %v2196
    %2609 = vmatprep.subr.bf16.mxu0 %v2195
    %2610 = vmatpush1.bf16.msra.mxu0 %v2194
    %2611 = vmatprep.subr.bf16.mxu0 %v2193
    %2612 = vmatpush1.bf16.msra.mxu0 %v2192
    %2613 = vmatprep.subr.bf16.mxu0 %v2191
    %2614 = vmatpush1.bf16.msra.mxu0 %v2190
    %2615 = vmatprep.subr.bf16.mxu0 %v2189
    %2616 = vmatpush1.bf16.msra.mxu0 %v2188
    %2617 = vmatprep.subr.bf16.mxu0 %v2187
    %2618 = vmatpush1.bf16.msra.mxu0 %v2186
    %2619 = vmatprep.subr.bf16.mxu0 %v2217
    %2620 = vmatpush2.bf16.msra.mxu0 %v2216
    %2621 = vmatprep.subr.bf16.mxu0 %v2215
    %2622 = vmatpush2.bf16.msra.mxu0 %v2214
    %2623 = vmatprep.subr.bf16.mxu0 %v2213
    %2624 = vmatpush2.bf16.msra.mxu0 %v2212
    %2625 = vmatprep.subr.bf16.mxu0 %v2211
    %2626 = vmatpush2.bf16.msra.mxu0 %v2210
    %2627 = vmatprep.subr.bf16.mxu0 %v2209
    %2628 = vmatpush2.bf16.msra.mxu0 %v2208
    %2629 = vmatprep.subr.bf16.mxu0 %v2207
    %2630 = vmatpush2.bf16.msra.mxu0 %v2206
    %2631 = vmatprep.subr.bf16.mxu0 %v2205
    %2632 = vmatpush2.bf16.msra.mxu0 %v2204
    %2633 = vmatprep.subr.bf16.mxu0 %v2203
    %2634 = vmatpush2.bf16.msra.mxu0 %v2202
    %2635 = vmatprep.mubr.bf16.mxu0 %v1498
    %2636 = vmatmul.mubr.bf16.gmra.mxu0 %v1497
    %v2637 = vpop.f32.mrf.mxu0
    %v2638 = vadd.f32 %v2595, %v2637
    %v2639 = vpop.f32.mrf.mxu0
    %v2640 = vadd.f32 %v2597, %v2639
    %v2641 = vpop.f32.mrf.mxu0
    %v2642 = vadd.f32 %v2599, %v2641
    %v2643 = vpop.f32.mrf.mxu0
    %v2644 = vadd.f32 %v2601, %v2643
    %2645 = vdwg.mxu0
    %2646 = vmatprep.subr.bf16.mxu0 %v2233
    %2647 = vmatpush1.bf16.msra.mxu0 %v2232
    %2648 = vmatprep.subr.bf16.mxu0 %v2231
    %2649 = vmatpush1.bf16.msra.mxu0 %v2230
    %2650 = vmatprep.subr.bf16.mxu0 %v2229
    %2651 = vmatpush1.bf16.msra.mxu0 %v2228
    %2652 = vmatprep.subr.bf16.mxu0 %v2227
    %2653 = vmatpush1.bf16.msra.mxu0 %v2226
    %2654 = vmatprep.subr.bf16.mxu0 %v2225
    %2655 = vmatpush1.bf16.msra.mxu0 %v2224
    %2656 = vmatprep.subr.bf16.mxu0 %v2223
    %2657 = vmatpush1.bf16.msra.mxu0 %v2222
    %2658 = vmatprep.subr.bf16.mxu0 %v2221
    %2659 = vmatpush1.bf16.msra.mxu0 %v2220
    %2660 = vmatprep.subr.bf16.mxu0 %v2219
    %2661 = vmatpush1.bf16.msra.mxu0 %v2218
    %2662 = vmatprep.subr.bf16.mxu0 %v2249
    %2663 = vmatpush2.bf16.msra.mxu0 %v2248
    %2664 = vmatprep.subr.bf16.mxu0 %v2247
    %2665 = vmatpush2.bf16.msra.mxu0 %v2246
    %2666 = vmatprep.subr.bf16.mxu0 %v2245
    %2667 = vmatpush2.bf16.msra.mxu0 %v2244
    %2668 = vmatprep.subr.bf16.mxu0 %v2243
    %2669 = vmatpush2.bf16.msra.mxu0 %v2242
    %2670 = vmatprep.subr.bf16.mxu0 %v2241
    %2671 = vmatpush2.bf16.msra.mxu0 %v2240
    %2672 = vmatprep.subr.bf16.mxu0 %v2239
    %2673 = vmatpush2.bf16.msra.mxu0 %v2238
    %2674 = vmatprep.subr.bf16.mxu0 %v2237
    %2675 = vmatpush2.bf16.msra.mxu0 %v2236
    %2676 = vmatprep.subr.bf16.mxu0 %v2235
    %2677 = vmatpush2.bf16.msra.mxu0 %v2234
    %2678 = vmatprep.mubr.bf16.mxu0 %v1500
    %2679 = vmatmul.mubr.bf16.gmra.mxu0 %v1499
    %v2680 = vpop.f32.mrf.mxu0
    %v2681 = vadd.f32 %v2638, %v2680
    %v2682 = vpop.f32.mrf.mxu0
    %v2683 = vadd.f32 %v2640, %v2682
    %v2684 = vpop.f32.mrf.mxu0
    %v2685 = vadd.f32 %v2642, %v2684
    %v2686 = vpop.f32.mrf.mxu0
    %v2687 = vadd.f32 %v2644, %v2686
    %2688 = vdwg.mxu0
    %2689 = vmatprep.subr.bf16.mxu0 %v2265
    %2690 = vmatpush1.bf16.msra.mxu0 %v2264
    %2691 = vmatprep.subr.bf16.mxu0 %v2263
    %2692 = vmatpush1.bf16.msra.mxu0 %v2262
    %2693 = vmatprep.subr.bf16.mxu0 %v2261
    %2694 = vmatpush1.bf16.msra.mxu0 %v2260
    %2695 = vmatprep.subr.bf16.mxu0 %v2259
    %2696 = vmatpush1.bf16.msra.mxu0 %v2258
    %2697 = vmatprep.subr.bf16.mxu0 %v2257
    %2698 = vmatpush1.bf16.msra.mxu0 %v2256
    %2699 = vmatprep.subr.bf16.mxu0 %v2255
    %2700 = vmatpush1.bf16.msra.mxu0 %v2254
    %2701 = vmatprep.subr.bf16.mxu0 %v2253
    %2702 = vmatpush1.bf16.msra.mxu0 %v2252
    %2703 = vmatprep.subr.bf16.mxu0 %v2251
    %2704 = vmatpush1.bf16.msra.mxu0 %v2250
    %2705 = vmatprep.subr.bf16.mxu0 %v2281
    %2706 = vmatpush2.bf16.msra.mxu0 %v2280
    %2707 = vmatprep.subr.bf16.mxu0 %v2279
    %2708 = vmatpush2.bf16.msra.mxu0 %v2278
    %2709 = vmatprep.subr.bf16.mxu0 %v2277
    %2710 = vmatpush2.bf16.msra.mxu0 %v2276
    %2711 = vmatprep.subr.bf16.mxu0 %v2275
    %2712 = vmatpush2.bf16.msra.mxu0 %v2274
    %2713 = vmatprep.subr.bf16.mxu0 %v2273
    %2714 = vmatpush2.bf16.msra.mxu0 %v2272
    %2715 = vmatprep.subr.bf16.mxu0 %v2271
    %2716 = vmatpush2.bf16.msra.mxu0 %v2270
    %2717 = vmatprep.subr.bf16.mxu0 %v2269
    %2718 = vmatpush2.bf16.msra.mxu0 %v2268
    %2719 = vmatprep.subr.bf16.mxu0 %v2267
    %2720 = vmatpush2.bf16.msra.mxu0 %v2266
    %2721 = vmatprep.mubr.bf16.mxu0 %v1502
    %2722 = vmatmul.mubr.bf16.gmra.mxu0 %v1501
    %v2723 = vpop.f32.mrf.mxu0
    %v2724 = vadd.f32 %v2681, %v2723
    %v2725 = vpop.f32.mrf.mxu0
    %v2726 = vadd.f32 %v2683, %v2725
    %v2727 = vpop.f32.mrf.mxu0
    %v2728 = vadd.f32 %v2685, %v2727
    %v2729 = vpop.f32.mrf.mxu0
    %v2730 = vadd.f32 %v2687, %v2729
    %2731 = vdwg.mxu0
    %v2732 = vmax.f32 %v2724, 0.0
    %v2733 = vmax.f32 %v2726, 0.0
    %v2734 = vmax.f32 %v2728, 0.0
    %v2735 = vmax.f32 %v2730, 0.0
    %v2736 = vld [vmem:[#allocation9 + $0xa00] sm:$0xff]
    %v2737 = vld [vmem:[#allocation9 + $0xa08] sm:$0xff]
    %v2738 = vld [vmem:[#allocation9 + $0xa10] sm:$0xff]
    %v2739 = vld [vmem:[#allocation9 + $0xa18] sm:$0xff]
    %v2740 = vld [vmem:[#allocation9 + $0xa20] sm:$0xff]
    %v2741 = vld [vmem:[#allocation9 + $0xa28] sm:$0xff]
    %v2742 = vld [vmem:[#allocation9 + $0xa30] sm:$0xff]
    %v2743 = vld [vmem:[#allocation9 + $0xa38] sm:$0xff]
    %v2744 = vld [vmem:[#allocation9 + $0xa40] sm:$0xff]
    %v2745 = vld [vmem:[#allocation9 + $0xa48] sm:$0xff]
    %v2746 = vld [vmem:[#allocation9 + $0xa50] sm:$0xff]
    %v2747 = vld [vmem:[#allocation9 + $0xa58] sm:$0xff]
    %v2748 = vld [vmem:[#allocation9 + $0xa60] sm:$0xff]
    %v2749 = vld [vmem:[#allocation9 + $0xa68] sm:$0xff]
    %v2750 = vld [vmem:[#allocation9 + $0xa70] sm:$0xff]
    %v2751 = vld [vmem:[#allocation9 + $0xa78] sm:$0xff]
    %v2752 = vld [vmem:[#allocation9 + $0xa80] sm:$0xff]
    %v2753 = vld [vmem:[#allocation9 + $0xa88] sm:$0xff]
    %v2754 = vld [vmem:[#allocation9 + $0xa90] sm:$0xff]
    %v2755 = vld [vmem:[#allocation9 + $0xa98] sm:$0xff]
    %v2756 = vld [vmem:[#allocation9 + $0xaa0] sm:$0xff]
    %v2757 = vld [vmem:[#allocation9 + $0xaa8] sm:$0xff]
    %v2758 = vld [vmem:[#allocation9 + $0xab0] sm:$0xff]
    %v2759 = vld [vmem:[#allocation9 + $0xab8] sm:$0xff]
    %v2760 = vld [vmem:[#allocation9 + $0xac0] sm:$0xff]
    %v2761 = vld [vmem:[#allocation9 + $0xac8] sm:$0xff]
    %v2762 = vld [vmem:[#allocation9 + $0xad0] sm:$0xff]
    %v2763 = vld [vmem:[#allocation9 + $0xad8] sm:$0xff]
    %v2764 = vld [vmem:[#allocation9 + $0xae0] sm:$0xff]
    %v2765 = vld [vmem:[#allocation9 + $0xae8] sm:$0xff]
    %v2766 = vld [vmem:[#allocation9 + $0xaf0] sm:$0xff]
    %v2767 = vld [vmem:[#allocation9 + $0xaf8] sm:$0xff]
    %v2768 = vld [vmem:[#allocation9 + $0xb00] sm:$0xff]
    %v2769 = vld [vmem:[#allocation9 + $0xb08] sm:$0xff]
    %v2770 = vld [vmem:[#allocation9 + $0xb10] sm:$0xff]
    %v2771 = vld [vmem:[#allocation9 + $0xb18] sm:$0xff]
    %v2772 = vld [vmem:[#allocation9 + $0xb20] sm:$0xff]
    %v2773 = vld [vmem:[#allocation9 + $0xb28] sm:$0xff]
    %v2774 = vld [vmem:[#allocation9 + $0xb30] sm:$0xff]
    %v2775 = vld [vmem:[#allocation9 + $0xb38] sm:$0xff]
    %v2776 = vld [vmem:[#allocation9 + $0xb40] sm:$0xff]
    %v2777 = vld [vmem:[#allocation9 + $0xb48] sm:$0xff]
    %v2778 = vld [vmem:[#allocation9 + $0xb50] sm:$0xff]
    %v2779 = vld [vmem:[#allocation9 + $0xb58] sm:$0xff]
    %v2780 = vld [vmem:[#allocation9 + $0xb60] sm:$0xff]
    %v2781 = vld [vmem:[#allocation9 + $0xb68] sm:$0xff]
    %v2782 = vld [vmem:[#allocation9 + $0xb70] sm:$0xff]
    %v2783 = vld [vmem:[#allocation9 + $0xb78] sm:$0xff]
    %v2784 = vld [vmem:[#allocation9 + $0xb80] sm:$0xff]
    %v2785 = vld [vmem:[#allocation9 + $0xb88] sm:$0xff]
    %v2786 = vld [vmem:[#allocation9 + $0xb90] sm:$0xff]
    %v2787 = vld [vmem:[#allocation9 + $0xb98] sm:$0xff]
    %v2788 = vld [vmem:[#allocation9 + $0xba0] sm:$0xff]
    %v2789 = vld [vmem:[#allocation9 + $0xba8] sm:$0xff]
    %v2790 = vld [vmem:[#allocation9 + $0xbb0] sm:$0xff]
    %v2791 = vld [vmem:[#allocation9 + $0xbb8] sm:$0xff]
    %v2792 = vld [vmem:[#allocation9 + $0xbc0] sm:$0xff]
    %v2793 = vld [vmem:[#allocation9 + $0xbc8] sm:$0xff]
    %v2794 = vld [vmem:[#allocation9 + $0xbd0] sm:$0xff]
    %v2795 = vld [vmem:[#allocation9 + $0xbd8] sm:$0xff]
    %v2796 = vld [vmem:[#allocation9 + $0xbe0] sm:$0xff]
    %v2797 = vld [vmem:[#allocation9 + $0xbe8] sm:$0xff]
    %v2798 = vld [vmem:[#allocation9 + $0xbf0] sm:$0xff]
    %v2799 = vld [vmem:[#allocation9 + $0xbf8] sm:$0xff]
    %v2800 = vld [vmem:[#allocation9 + $0xc00] sm:$0xff]
    %v2801 = vld [vmem:[#allocation9 + $0xc08] sm:$0xff]
    %v2802 = vld [vmem:[#allocation9 + $0xc10] sm:$0xff]
    %v2803 = vld [vmem:[#allocation9 + $0xc18] sm:$0xff]
    %v2804 = vld [vmem:[#allocation9 + $0xc20] sm:$0xff]
    %v2805 = vld [vmem:[#allocation9 + $0xc28] sm:$0xff]
    %v2806 = vld [vmem:[#allocation9 + $0xc30] sm:$0xff]
    %v2807 = vld [vmem:[#allocation9 + $0xc38] sm:$0xff]
    %v2808 = vld [vmem:[#allocation9 + $0xc40] sm:$0xff]
    %v2809 = vld [vmem:[#allocation9 + $0xc48] sm:$0xff]
    %v2810 = vld [vmem:[#allocation9 + $0xc50] sm:$0xff]
    %v2811 = vld [vmem:[#allocation9 + $0xc58] sm:$0xff]
    %v2812 = vld [vmem:[#allocation9 + $0xc60] sm:$0xff]
    %v2813 = vld [vmem:[#allocation9 + $0xc68] sm:$0xff]
    %v2814 = vld [vmem:[#allocation9 + $0xc70] sm:$0xff]
    %v2815 = vld [vmem:[#allocation9 + $0xc78] sm:$0xff]
    %v2816 = vld [vmem:[#allocation9 + $0xc80] sm:$0xff]
    %v2817 = vld [vmem:[#allocation9 + $0xc88] sm:$0xff]
    %v2818 = vld [vmem:[#allocation9 + $0xc90] sm:$0xff]
    %v2819 = vld [vmem:[#allocation9 + $0xc98] sm:$0xff]
    %v2820 = vld [vmem:[#allocation9 + $0xca0] sm:$0xff]
    %v2821 = vld [vmem:[#allocation9 + $0xca8] sm:$0xff]
    %v2822 = vld [vmem:[#allocation9 + $0xcb0] sm:$0xff]
    %v2823 = vld [vmem:[#allocation9 + $0xcb8] sm:$0xff]
    %v2824 = vld [vmem:[#allocation9 + $0xcc0] sm:$0xff]
    %v2825 = vld [vmem:[#allocation9 + $0xcc8] sm:$0xff]
    %v2826 = vld [vmem:[#allocation9 + $0xcd0] sm:$0xff]
    %v2827 = vld [vmem:[#allocation9 + $0xcd8] sm:$0xff]
    %v2828 = vld [vmem:[#allocation9 + $0xce0] sm:$0xff]
    %v2829 = vld [vmem:[#allocation9 + $0xce8] sm:$0xff]
    %v2830 = vld [vmem:[#allocation9 + $0xcf0] sm:$0xff]
    %v2831 = vld [vmem:[#allocation9 + $0xcf8] sm:$0xff]
    %s2832 = scalar_lea.vmem [#allocation10], 2
    %v2833 = vld [vmem:[%s2832] ss:$8 sm:$0x3]
    %v2838 = vrot.slane %v2732, 7
    %v2839 = vrot.slane %v2733, 7
    %v2840 = vrot.slane %v2734, 7
    %v2841 = vsel %vm1411, %v2838, %v2840
    %v2842 = vrot.slane %v2735, 7
    %v2843 = vsel %vm1411, %v2839, %v2842
    %v2848 = vsel %vm1411, 0.0, %v2838
    %v2849 = vsel %vm1411, 0.0, %v2839
    %v2850 = vrot.slane %v2732, 1
    %v2851 = vrot.slane %v2734, 1
    %v2852 = vsel %vm1436, %v2850, %v2851
    %v2853 = vrot.slane %v2733, 1
    %v2854 = vrot.slane %v2735, 1
    %v2855 = vsel %vm1436, %v2853, %v2854
    %v2860 = vsel %vm1436, %v2851, 0.0
    %v2861 = vsel %vm1436, %v2854, 0.0
    %v2862 = vsel %vm1467, 0.0, %v2848
    %v2863 = vsel %vm1467, 0.0, %v2849
    %v2864 = vsel %vm1468, 0.0, %v2841
    %v2865 = vsel %vm1468, 0.0, %v2843
    %v2866 = vsel %vm1481, 0.0, %v2852
    %v2867 = vsel %vm1481, 0.0, %v2855
    %v2868 = vsel %vm1482, 0.0, %v2860
    %v2869 = vsel %vm1482, 0.0, %v2861
    %v2870 = vpack.c.bf16 %v2864, %v2862
    %v2871 = vpack.c.bf16 %v2865, %v2863
    %v2872 = vpack.c.bf16 %v2734, %v2732
    %v2873 = vpack.c.bf16 %v2735, %v2733
    %v2874 = vpack.c.bf16 %v2868, %v2866
    %v2875 = vpack.c.bf16 %v2869, %v2867
    %v2877 = vlaneseq
    %v2878 = vshrl.u32 %v2877, 7
    %v2879 = vsub.s32 0, %v2878
    %v2880 = vrot.slane %v2833, %v2879
    %v2881 = vlaneseq
    %v2882 = vshrl.u32 %v2881, 7
    %v2883 = vsub.s32 1, %v2882
    %v2884 = vrot.slane %v2833, %v2883
    %v2983 = vunpack.c.l.b16 %v2736
    %v2984 = vunpack.c.h.b16 %v2736
    %v2985 = vunpack.c.l.b16 %v2737
    %v2986 = vunpack.c.h.b16 %v2737
    %v2987 = vunpack.c.l.b16 %v2738
    %v2988 = vunpack.c.h.b16 %v2738
    %v2989 = vunpack.c.l.b16 %v2739
    %v2990 = vunpack.c.h.b16 %v2739
    %v2991 = vunpack.c.l.b16 %v2740
    %v2992 = vunpack.c.h.b16 %v2740
    %v2993 = vunpack.c.l.b16 %v2741
    %v2994 = vunpack.c.h.b16 %v2741
    %v2995 = vunpack.c.l.b16 %v2742
    %v2996 = vunpack.c.h.b16 %v2742
    %v2997 = vunpack.c.l.b16 %v2743
    %v2998 = vunpack.c.h.b16 %v2743
    %v2999 = vunpack.c.l.b16 %v2744
    %v3000 = vunpack.c.h.b16 %v2744
    %v3001 = vunpack.c.l.b16 %v2745
    %v3002 = vunpack.c.h.b16 %v2745
    %v3003 = vunpack.c.l.b16 %v2746
    %v3004 = vunpack.c.h.b16 %v2746
    %v3005 = vunpack.c.l.b16 %v2747
    %v3006 = vunpack.c.h.b16 %v2747
    %v3007 = vunpack.c.l.b16 %v2748
    %v3008 = vunpack.c.h.b16 %v2748
    %v3009 = vunpack.c.l.b16 %v2749
    %v3010 = vunpack.c.h.b16 %v2749
    %v3011 = vunpack.c.l.b16 %v2750
    %v3012 = vunpack.c.h.b16 %v2750
    %v3013 = vunpack.c.l.b16 %v2751
    %v3014 = vunpack.c.h.b16 %v2751
    %v3015 = vunpack.c.l.b16 %v2752
    %v3016 = vunpack.c.h.b16 %v2752
    %v3017 = vunpack.c.l.b16 %v2753
    %v3018 = vunpack.c.h.b16 %v2753
    %v3019 = vunpack.c.l.b16 %v2754
    %v3020 = vunpack.c.h.b16 %v2754
    %v3021 = vunpack.c.l.b16 %v2755
    %v3022 = vunpack.c.h.b16 %v2755
    %v3023 = vunpack.c.l.b16 %v2756
    %v3024 = vunpack.c.h.b16 %v2756
    %v3025 = vunpack.c.l.b16 %v2757
    %v3026 = vunpack.c.h.b16 %v2757
    %v3027 = vunpack.c.l.b16 %v2758
    %v3028 = vunpack.c.h.b16 %v2758
    %v3029 = vunpack.c.l.b16 %v2759
    %v3030 = vunpack.c.h.b16 %v2759
    %v3031 = vunpack.c.l.b16 %v2760
    %v3032 = vunpack.c.h.b16 %v2760
    %v3033 = vunpack.c.l.b16 %v2761
    %v3034 = vunpack.c.h.b16 %v2761
    %v3035 = vunpack.c.l.b16 %v2762
    %v3036 = vunpack.c.h.b16 %v2762
    %v3037 = vunpack.c.l.b16 %v2763
    %v3038 = vunpack.c.h.b16 %v2763
    %v3039 = vunpack.c.l.b16 %v2764
    %v3040 = vunpack.c.h.b16 %v2764
    %v3041 = vunpack.c.l.b16 %v2765
    %v3042 = vunpack.c.h.b16 %v2765
    %v3043 = vunpack.c.l.b16 %v2766
    %v3044 = vunpack.c.h.b16 %v2766
    %v3045 = vunpack.c.l.b16 %v2767
    %v3046 = vunpack.c.h.b16 %v2767
    %v3047 = vunpack.c.l.b16 %v2768
    %v3048 = vunpack.c.h.b16 %v2768
    %v3049 = vunpack.c.l.b16 %v2769
    %v3050 = vunpack.c.h.b16 %v2769
    %v3051 = vunpack.c.l.b16 %v2770
    %v3052 = vunpack.c.h.b16 %v2770
    %v3053 = vunpack.c.l.b16 %v2771
    %v3054 = vunpack.c.h.b16 %v2771
    %v3055 = vunpack.c.l.b16 %v2772
    %v3056 = vunpack.c.h.b16 %v2772
    %v3057 = vunpack.c.l.b16 %v2773
    %v3058 = vunpack.c.h.b16 %v2773
    %v3059 = vunpack.c.l.b16 %v2774
    %v3060 = vunpack.c.h.b16 %v2774
    %v3061 = vunpack.c.l.b16 %v2775
    %v3062 = vunpack.c.h.b16 %v2775
    %v3063 = vunpack.c.l.b16 %v2776
    %v3064 = vunpack.c.h.b16 %v2776
    %v3065 = vunpack.c.l.b16 %v2777
    %v3066 = vunpack.c.h.b16 %v2777
    %v3067 = vunpack.c.l.b16 %v2778
    %v3068 = vunpack.c.h.b16 %v2778
    %v3069 = vunpack.c.l.b16 %v2779
    %v3070 = vunpack.c.h.b16 %v2779
    %v3071 = vunpack.c.l.b16 %v2780
    %v3072 = vunpack.c.h.b16 %v2780
    %v3073 = vunpack.c.l.b16 %v2781
    %v3074 = vunpack.c.h.b16 %v2781
    %v3075 = vunpack.c.l.b16 %v2782
    %v3076 = vunpack.c.h.b16 %v2782
    %v3077 = vunpack.c.l.b16 %v2783
    %v3078 = vunpack.c.h.b16 %v2783
    %v3079 = vunpack.c.l.b16 %v2784
    %v3080 = vunpack.c.h.b16 %v2784
    %v3081 = vunpack.c.l.b16 %v2785
    %v3082 = vunpack.c.h.b16 %v2785
    %v3083 = vunpack.c.l.b16 %v2786
    %v3084 = vunpack.c.h.b16 %v2786
    %v3085 = vunpack.c.l.b16 %v2787
    %v3086 = vunpack.c.h.b16 %v2787
    %v3087 = vunpack.c.l.b16 %v2788
    %v3088 = vunpack.c.h.b16 %v2788
    %v3089 = vunpack.c.l.b16 %v2789
    %v3090 = vunpack.c.h.b16 %v2789
    %v3091 = vunpack.c.l.b16 %v2790
    %v3092 = vunpack.c.h.b16 %v2790
    %v3093 = vunpack.c.l.b16 %v2791
    %v3094 = vunpack.c.h.b16 %v2791
    %v3095 = vunpack.c.l.b16 %v2792
    %v3096 = vunpack.c.h.b16 %v2792
    %v3097 = vunpack.c.l.b16 %v2793
    %v3098 = vunpack.c.h.b16 %v2793
    %v3099 = vunpack.c.l.b16 %v2794
    %v3100 = vunpack.c.h.b16 %v2794
    %v3101 = vunpack.c.l.b16 %v2795
    %v3102 = vunpack.c.h.b16 %v2795
    %v3103 = vunpack.c.l.b16 %v2796
    %v3104 = vunpack.c.h.b16 %v2796
    %v3105 = vunpack.c.l.b16 %v2797
    %v3106 = vunpack.c.h.b16 %v2797
    %v3107 = vunpack.c.l.b16 %v2798
    %v3108 = vunpack.c.h.b16 %v2798
    %v3109 = vunpack.c.l.b16 %v2799
    %v3110 = vunpack.c.h.b16 %v2799
    %v3111 = vunpack.c.l.b16 %v2800
    %v3112 = vunpack.c.h.b16 %v2800
    %v3113 = vunpack.c.l.b16 %v2801
    %v3114 = vunpack.c.h.b16 %v2801
    %v3115 = vunpack.c.l.b16 %v2802
    %v3116 = vunpack.c.h.b16 %v2802
    %v3117 = vunpack.c.l.b16 %v2803
    %v3118 = vunpack.c.h.b16 %v2803
    %v3119 = vunpack.c.l.b16 %v2804
    %v3120 = vunpack.c.h.b16 %v2804
    %v3121 = vunpack.c.l.b16 %v2805
    %v3122 = vunpack.c.h.b16 %v2805
    %v3123 = vunpack.c.l.b16 %v2806
    %v3124 = vunpack.c.h.b16 %v2806
    %v3125 = vunpack.c.l.b16 %v2807
    %v3126 = vunpack.c.h.b16 %v2807
    %v3127 = vunpack.c.l.b16 %v2808
    %v3128 = vunpack.c.h.b16 %v2808
    %v3129 = vunpack.c.l.b16 %v2809
    %v3130 = vunpack.c.h.b16 %v2809
    %v3131 = vunpack.c.l.b16 %v2810
    %v3132 = vunpack.c.h.b16 %v2810
    %v3133 = vunpack.c.l.b16 %v2811
    %v3134 = vunpack.c.h.b16 %v2811
    %v3135 = vunpack.c.l.b16 %v2812
    %v3136 = vunpack.c.h.b16 %v2812
    %v3137 = vunpack.c.l.b16 %v2813
    %v3138 = vunpack.c.h.b16 %v2813
    %v3139 = vunpack.c.l.b16 %v2814
    %v3140 = vunpack.c.h.b16 %v2814
    %v3141 = vunpack.c.l.b16 %v2815
    %v3142 = vunpack.c.h.b16 %v2815
    %v3143 = vunpack.c.l.b16 %v2816
    %v3144 = vunpack.c.h.b16 %v2816
    %v3145 = vunpack.c.l.b16 %v2817
    %v3146 = vunpack.c.h.b16 %v2817
    %v3147 = vunpack.c.l.b16 %v2818
    %v3148 = vunpack.c.h.b16 %v2818
    %v3149 = vunpack.c.l.b16 %v2819
    %v3150 = vunpack.c.h.b16 %v2819
    %v3151 = vunpack.c.l.b16 %v2820
    %v3152 = vunpack.c.h.b16 %v2820
    %v3153 = vunpack.c.l.b16 %v2821
    %v3154 = vunpack.c.h.b16 %v2821
    %v3155 = vunpack.c.l.b16 %v2822
    %v3156 = vunpack.c.h.b16 %v2822
    %v3157 = vunpack.c.l.b16 %v2823
    %v3158 = vunpack.c.h.b16 %v2823
    %v3159 = vunpack.c.l.b16 %v2824
    %v3160 = vunpack.c.h.b16 %v2824
    %v3161 = vunpack.c.l.b16 %v2825
    %v3162 = vunpack.c.h.b16 %v2825
    %v3163 = vunpack.c.l.b16 %v2826
    %v3164 = vunpack.c.h.b16 %v2826
    %v3165 = vunpack.c.l.b16 %v2827
    %v3166 = vunpack.c.h.b16 %v2827
    %v3167 = vunpack.c.l.b16 %v2828
    %v3168 = vunpack.c.h.b16 %v2828
    %v3169 = vunpack.c.l.b16 %v2829
    %v3170 = vunpack.c.h.b16 %v2829
    %v3171 = vunpack.c.l.b16 %v2830
    %v3172 = vunpack.c.h.b16 %v2830
    %v3173 = vunpack.c.l.b16 %v2831
    %v3174 = vunpack.c.h.b16 %v2831
    %v3175 = vpack.c.b16 %v2985, %v2983
    %v3176 = vpack.c.b16 %v2986, %v2984
    %v3177 = vpack.c.b16 %v2989, %v2987
    %v3178 = vpack.c.b16 %v2990, %v2988
    %v3179 = vpack.c.b16 %v2993, %v2991
    %v3180 = vpack.c.b16 %v2994, %v2992
    %v3181 = vpack.c.b16 %v2997, %v2995
    %v3182 = vpack.c.b16 %v2998, %v2996
    %v3183 = vpack.c.b16 %v3001, %v2999
    %v3184 = vpack.c.b16 %v3002, %v3000
    %v3185 = vpack.c.b16 %v3005, %v3003
    %v3186 = vpack.c.b16 %v3006, %v3004
    %v3187 = vpack.c.b16 %v3009, %v3007
    %v3188 = vpack.c.b16 %v3010, %v3008
    %v3189 = vpack.c.b16 %v3013, %v3011
    %v3190 = vpack.c.b16 %v3014, %v3012
    %v3191 = vpack.c.b16 %v3017, %v3015
    %v3192 = vpack.c.b16 %v3018, %v3016
    %v3193 = vpack.c.b16 %v3021, %v3019
    %v3194 = vpack.c.b16 %v3022, %v3020
    %v3195 = vpack.c.b16 %v3025, %v3023
    %v3196 = vpack.c.b16 %v3026, %v3024
    %v3197 = vpack.c.b16 %v3029, %v3027
    %v3198 = vpack.c.b16 %v3030, %v3028
    %v3199 = vpack.c.b16 %v3033, %v3031
    %v3200 = vpack.c.b16 %v3034, %v3032
    %v3201 = vpack.c.b16 %v3037, %v3035
    %v3202 = vpack.c.b16 %v3038, %v3036
    %v3203 = vpack.c.b16 %v3041, %v3039
    %v3204 = vpack.c.b16 %v3042, %v3040
    %v3205 = vpack.c.b16 %v3045, %v3043
    %v3206 = vpack.c.b16 %v3046, %v3044
    %v3207 = vpack.c.b16 %v3049, %v3047
    %v3208 = vpack.c.b16 %v3050, %v3048
    %v3209 = vpack.c.b16 %v3053, %v3051
    %v3210 = vpack.c.b16 %v3054, %v3052
    %v3211 = vpack.c.b16 %v3057, %v3055
    %v3212 = vpack.c.b16 %v3058, %v3056
    %v3213 = vpack.c.b16 %v3061, %v3059
    %v3214 = vpack.c.b16 %v3062, %v3060
    %v3215 = vpack.c.b16 %v3065, %v3063
    %v3216 = vpack.c.b16 %v3066, %v3064
    %v3217 = vpack.c.b16 %v3069, %v3067
    %v3218 = vpack.c.b16 %v3070, %v3068
    %v3219 = vpack.c.b16 %v3073, %v3071
    %v3220 = vpack.c.b16 %v3074, %v3072
    %v3221 = vpack.c.b16 %v3077, %v3075
    %v3222 = vpack.c.b16 %v3078, %v3076
    %v3223 = vpack.c.b16 %v3081, %v3079
    %v3224 = vpack.c.b16 %v3082, %v3080
    %v3225 = vpack.c.b16 %v3085, %v3083
    %v3226 = vpack.c.b16 %v3086, %v3084
    %v3227 = vpack.c.b16 %v3089, %v3087
    %v3228 = vpack.c.b16 %v3090, %v3088
    %v3229 = vpack.c.b16 %v3093, %v3091
    %v3230 = vpack.c.b16 %v3094, %v3092
    %v3231 = vpack.c.b16 %v3097, %v3095
    %v3232 = vpack.c.b16 %v3098, %v3096
    %v3233 = vpack.c.b16 %v3101, %v3099
    %v3234 = vpack.c.b16 %v3102, %v3100
    %v3235 = vpack.c.b16 %v3105, %v3103
    %v3236 = vpack.c.b16 %v3106, %v3104
    %v3237 = vpack.c.b16 %v3109, %v3107
    %v3238 = vpack.c.b16 %v3110, %v3108
    %v3239 = vpack.c.b16 %v3113, %v3111
    %v3240 = vpack.c.b16 %v3114, %v3112
    %v3241 = vpack.c.b16 %v3117, %v3115
    %v3242 = vpack.c.b16 %v3118, %v3116
    %v3243 = vpack.c.b16 %v3121, %v3119
    %v3244 = vpack.c.b16 %v3122, %v3120
    %v3245 = vpack.c.b16 %v3125, %v3123
    %v3246 = vpack.c.b16 %v3126, %v3124
    %v3247 = vpack.c.b16 %v3129, %v3127
    %v3248 = vpack.c.b16 %v3130, %v3128
    %v3249 = vpack.c.b16 %v3133, %v3131
    %v3250 = vpack.c.b16 %v3134, %v3132
    %v3251 = vpack.c.b16 %v3137, %v3135
    %v3252 = vpack.c.b16 %v3138, %v3136
    %v3253 = vpack.c.b16 %v3141, %v3139
    %v3254 = vpack.c.b16 %v3142, %v3140
    %v3255 = vpack.c.b16 %v3145, %v3143
    %v3256 = vpack.c.b16 %v3146, %v3144
    %v3257 = vpack.c.b16 %v3149, %v3147
    %v3258 = vpack.c.b16 %v3150, %v3148
    %v3259 = vpack.c.b16 %v3153, %v3151
    %v3260 = vpack.c.b16 %v3154, %v3152
    %v3261 = vpack.c.b16 %v3157, %v3155
    %v3262 = vpack.c.b16 %v3158, %v3156
    %v3263 = vpack.c.b16 %v3161, %v3159
    %v3264 = vpack.c.b16 %v3162, %v3160
    %v3265 = vpack.c.b16 %v3165, %v3163
    %v3266 = vpack.c.b16 %v3166, %v3164
    %v3267 = vpack.c.b16 %v3169, %v3167
    %v3268 = vpack.c.b16 %v3170, %v3168
    %v3269 = vpack.c.b16 %v3173, %v3171
    %v3270 = vpack.c.b16 %v3174, %v3172
    %3367 = vmatprep.subr.bf16.mxu0 %v3190
    %3368 = vmatpush1.bf16.msra.mxu0 %v3189
    %3369 = vmatprep.subr.bf16.mxu0 %v3188
    %3370 = vmatpush1.bf16.msra.mxu0 %v3187
    %3371 = vmatprep.subr.bf16.mxu0 %v3186
    %3372 = vmatpush1.bf16.msra.mxu0 %v3185
    %3373 = vmatprep.subr.bf16.mxu0 %v3184
    %3374 = vmatpush1.bf16.msra.mxu0 %v3183
    %3375 = vmatprep.subr.bf16.mxu0 %v3182
    %3376 = vmatpush1.bf16.msra.mxu0 %v3181
    %3377 = vmatprep.subr.bf16.mxu0 %v3180
    %3378 = vmatpush1.bf16.msra.mxu0 %v3179
    %3379 = vmatprep.subr.bf16.mxu0 %v3178
    %3380 = vmatpush1.bf16.msra.mxu0 %v3177
    %3381 = vmatprep.subr.bf16.mxu0 %v3176
    %3382 = vmatpush1.bf16.msra.mxu0 %v3175
    %3383 = vmatprep.subr.bf16.mxu0 %v3206
    %3384 = vmatpush2.bf16.msra.mxu0 %v3205
    %3385 = vmatprep.subr.bf16.mxu0 %v3204
    %3386 = vmatpush2.bf16.msra.mxu0 %v3203
    %3387 = vmatprep.subr.bf16.mxu0 %v3202
    %3388 = vmatpush2.bf16.msra.mxu0 %v3201
    %3389 = vmatprep.subr.bf16.mxu0 %v3200
    %3390 = vmatpush2.bf16.msra.mxu0 %v3199
    %3391 = vmatprep.subr.bf16.mxu0 %v3198
    %3392 = vmatpush2.bf16.msra.mxu0 %v3197
    %3393 = vmatprep.subr.bf16.mxu0 %v3196
    %3394 = vmatpush2.bf16.msra.mxu0 %v3195
    %3395 = vmatprep.subr.bf16.mxu0 %v3194
    %3396 = vmatpush2.bf16.msra.mxu0 %v3193
    %3397 = vmatprep.subr.bf16.mxu0 %v3192
    %3398 = vmatpush2.bf16.msra.mxu0 %v3191
    %3399 = vmatprep.mubr.bf16.mxu0 %v2871
    %3400 = vmatmul.mubr.bf16.gmra.mxu0 %v2870
    %v3401 = vpop.f32.mrf.mxu0
    %v3402 = vadd.f32 %v2880, %v3401
    %v3403 = vpop.f32.mrf.mxu0
    %v3404 = vadd.f32 %v2884, %v3403
    %v3405 = vpop.f32.mrf.mxu0
    %v3406 = vadd.f32 %v2880, %v3405
    %v3407 = vpop.f32.mrf.mxu0
    %v3408 = vadd.f32 %v2884, %v3407
    %3409 = vdwg.mxu0
    %3410 = vmatprep.subr.bf16.mxu0 %v3222
    %3411 = vmatpush1.bf16.msra.mxu0 %v3221
    %3412 = vmatprep.subr.bf16.mxu0 %v3220
    %3413 = vmatpush1.bf16.msra.mxu0 %v3219
    %3414 = vmatprep.subr.bf16.mxu0 %v3218
    %3415 = vmatpush1.bf16.msra.mxu0 %v3217
    %3416 = vmatprep.subr.bf16.mxu0 %v3216
    %3417 = vmatpush1.bf16.msra.mxu0 %v3215
    %3418 = vmatprep.subr.bf16.mxu0 %v3214
    %3419 = vmatpush1.bf16.msra.mxu0 %v3213
    %3420 = vmatprep.subr.bf16.mxu0 %v3212
    %3421 = vmatpush1.bf16.msra.mxu0 %v3211
    %3422 = vmatprep.subr.bf16.mxu0 %v3210
    %3423 = vmatpush1.bf16.msra.mxu0 %v3209
    %3424 = vmatprep.subr.bf16.mxu0 %v3208
    %3425 = vmatpush1.bf16.msra.mxu0 %v3207
    %3426 = vmatprep.subr.bf16.mxu0 %v3238
    %3427 = vmatpush2.bf16.msra.mxu0 %v3237
    %3428 = vmatprep.subr.bf16.mxu0 %v3236
    %3429 = vmatpush2.bf16.msra.mxu0 %v3235
    %3430 = vmatprep.subr.bf16.mxu0 %v3234
    %3431 = vmatpush2.bf16.msra.mxu0 %v3233
    %3432 = vmatprep.subr.bf16.mxu0 %v3232
    %3433 = vmatpush2.bf16.msra.mxu0 %v3231
    %3434 = vmatprep.subr.bf16.mxu0 %v3230
    %3435 = vmatpush2.bf16.msra.mxu0 %v3229
    %3436 = vmatprep.subr.bf16.mxu0 %v3228
    %3437 = vmatpush2.bf16.msra.mxu0 %v3227
    %3438 = vmatprep.subr.bf16.mxu0 %v3226
    %3439 = vmatpush2.bf16.msra.mxu0 %v3225
    %3440 = vmatprep.subr.bf16.mxu0 %v3224
    %3441 = vmatpush2.bf16.msra.mxu0 %v3223
    %3442 = vmatprep.mubr.bf16.mxu0 %v2873
    %3443 = vmatmul.mubr.bf16.gmra.mxu0 %v2872
    %v3444 = vpop.f32.mrf.mxu0
    %v3445 = vadd.f32 %v3402, %v3444
    %v3446 = vpop.f32.mrf.mxu0
    %v3447 = vadd.f32 %v3404, %v3446
    %v3448 = vpop.f32.mrf.mxu0
    %v3449 = vadd.f32 %v3406, %v3448
    %v3450 = vpop.f32.mrf.mxu0
    %v3451 = vadd.f32 %v3408, %v3450
    %3452 = vdwg.mxu0
    %3453 = vmatprep.subr.bf16.mxu0 %v3254
    %3454 = vmatpush1.bf16.msra.mxu0 %v3253
    %3455 = vmatprep.subr.bf16.mxu0 %v3252
    %3456 = vmatpush1.bf16.msra.mxu0 %v3251
    %3457 = vmatprep.subr.bf16.mxu0 %v3250
    %3458 = vmatpush1.bf16.msra.mxu0 %v3249
    %3459 = vmatprep.subr.bf16.mxu0 %v3248
    %3460 = vmatpush1.bf16.msra.mxu0 %v3247
    %3461 = vmatprep.subr.bf16.mxu0 %v3246
    %3462 = vmatpush1.bf16.msra.mxu0 %v3245
    %3463 = vmatprep.subr.bf16.mxu0 %v3244
    %3464 = vmatpush1.bf16.msra.mxu0 %v3243
    %3465 = vmatprep.subr.bf16.mxu0 %v3242
    %3466 = vmatpush1.bf16.msra.mxu0 %v3241
    %3467 = vmatprep.subr.bf16.mxu0 %v3240
    %3468 = vmatpush1.bf16.msra.mxu0 %v3239
    %3469 = vmatprep.subr.bf16.mxu0 %v3270
    %3470 = vmatpush2.bf16.msra.mxu0 %v3269
    %3471 = vmatprep.subr.bf16.mxu0 %v3268
    %3472 = vmatpush2.bf16.msra.mxu0 %v3267
    %3473 = vmatprep.subr.bf16.mxu0 %v3266
    %3474 = vmatpush2.bf16.msra.mxu0 %v3265
    %3475 = vmatprep.subr.bf16.mxu0 %v3264
    %3476 = vmatpush2.bf16.msra.mxu0 %v3263
    %3477 = vmatprep.subr.bf16.mxu0 %v3262
    %3478 = vmatpush2.bf16.msra.mxu0 %v3261
    %3479 = vmatprep.subr.bf16.mxu0 %v3260
    %3480 = vmatpush2.bf16.msra.mxu0 %v3259
    %3481 = vmatprep.subr.bf16.mxu0 %v3258
    %3482 = vmatpush2.bf16.msra.mxu0 %v3257
    %3483 = vmatprep.subr.bf16.mxu0 %v3256
    %3484 = vmatpush2.bf16.msra.mxu0 %v3255
    %3485 = vmatprep.mubr.bf16.mxu0 %v2875
    %3486 = vmatmul.mubr.bf16.gmra.mxu0 %v2874
    %v3487 = vpop.f32.mrf.mxu0
    %v3488 = vadd.f32 %v3445, %v3487
    %v3489 = vpop.f32.mrf.mxu0
    %v3490 = vadd.f32 %v3447, %v3489
    %v3491 = vpop.f32.mrf.mxu0
    %v3492 = vadd.f32 %v3449, %v3491
    %v3493 = vpop.f32.mrf.mxu0
    %v3494 = vadd.f32 %v3451, %v3493
    %3495 = vdwg.mxu0
    %v3496 = vmax.f32 %v3488, 0.0
    %v3497 = vmax.f32 %v3490, 0.0
    %v3498 = vmax.f32 %v3492, 0.0
    %v3499 = vmax.f32 %v3494, 0.0
    %v3500 = vld [vmem:[#allocation9 + $0xd00] sm:$0xf]
    %v3501 = vld [vmem:[#allocation9 + $0xd08] sm:$0xf]
    %v3502 = vld [vmem:[#allocation9 + $0xd10] sm:$0xf]
    %v3503 = vld [vmem:[#allocation9 + $0xd18] sm:$0xf]
    %v3504 = vld [vmem:[#allocation9 + $0xd20] sm:$0xf]
    %v3505 = vld [vmem:[#allocation9 + $0xd28] sm:$0xf]
    %v3506 = vld [vmem:[#allocation9 + $0xd30] sm:$0xf]
    %v3507 = vld [vmem:[#allocation9 + $0xd38] sm:$0xf]
    %v3508 = vld [vmem:[#allocation9 + $0xd40] sm:$0xf]
    %v3509 = vld [vmem:[#allocation9 + $0xd48] sm:$0xf]
    %v3510 = vld [vmem:[#allocation9 + $0xd50] sm:$0xf]
    %v3511 = vld [vmem:[#allocation9 + $0xd58] sm:$0xf]
    %v3512 = vld [vmem:[#allocation9 + $0xd60] sm:$0xf]
    %v3513 = vld [vmem:[#allocation9 + $0xd68] sm:$0xf]
    %v3514 = vld [vmem:[#allocation9 + $0xd70] sm:$0xf]
    %v3515 = vld [vmem:[#allocation9 + $0xd78] sm:$0xf]
    %v3516 = vld [vmem:[#allocation9 + $0xd80] sm:$0xf]
    %v3517 = vld [vmem:[#allocation9 + $0xd88] sm:$0xf]
    %v3518 = vld [vmem:[#allocation9 + $0xd90] sm:$0xf]
    %v3519 = vld [vmem:[#allocation9 + $0xd98] sm:$0xf]
    %v3520 = vld [vmem:[#allocation9 + $0xda0] sm:$0xf]
    %v3521 = vld [vmem:[#allocation9 + $0xda8] sm:$0xf]
    %v3522 = vld [vmem:[#allocation9 + $0xdb0] sm:$0xf]
    %v3523 = vld [vmem:[#allocation9 + $0xdb8] sm:$0xf]
    %v3524 = vld [vmem:[#allocation9 + $0xdc0] sm:$0xf]
    %v3525 = vld [vmem:[#allocation9 + $0xdc8] sm:$0xf]
    %v3526 = vld [vmem:[#allocation9 + $0xdd0] sm:$0xf]
    %v3527 = vld [vmem:[#allocation9 + $0xdd8] sm:$0xf]
    %v3528 = vld [vmem:[#allocation9 + $0xde0] sm:$0xf]
    %v3529 = vld [vmem:[#allocation9 + $0xde8] sm:$0xf]
    %v3530 = vld [vmem:[#allocation9 + $0xdf0] sm:$0xf]
    %v3531 = vld [vmem:[#allocation9 + $0xdf8] sm:$0xf]
    %v3532 = vld [vmem:[#allocation9 + $0xe00] sm:$0xf]
    %v3533 = vld [vmem:[#allocation9 + $0xe08] sm:$0xf]
    %v3534 = vld [vmem:[#allocation9 + $0xe10] sm:$0xf]
    %v3535 = vld [vmem:[#allocation9 + $0xe18] sm:$0xf]
    %v3536 = vld [vmem:[#allocation9 + $0xe20] sm:$0xf]
    %v3537 = vld [vmem:[#allocation9 + $0xe28] sm:$0xf]
    %v3538 = vld [vmem:[#allocation9 + $0xe30] sm:$0xf]
    %v3539 = vld [vmem:[#allocation9 + $0xe38] sm:$0xf]
    %v3540 = vld [vmem:[#allocation9 + $0xe40] sm:$0xf]
    %v3541 = vld [vmem:[#allocation9 + $0xe48] sm:$0xf]
    %v3542 = vld [vmem:[#allocation9 + $0xe50] sm:$0xf]
    %v3543 = vld [vmem:[#allocation9 + $0xe58] sm:$0xf]
    %v3544 = vld [vmem:[#allocation9 + $0xe60] sm:$0xf]
    %v3545 = vld [vmem:[#allocation9 + $0xe68] sm:$0xf]
    %v3546 = vld [vmem:[#allocation9 + $0xe70] sm:$0xf]
    %v3547 = vld [vmem:[#allocation9 + $0xe78] sm:$0xf]
    %v3548 = vld [vmem:[#allocation9 + $0xe80] sm:$0xf]
    %v3549 = vld [vmem:[#allocation9 + $0xe88] sm:$0xf]
    %v3550 = vld [vmem:[#allocation9 + $0xe90] sm:$0xf]
    %v3551 = vld [vmem:[#allocation9 + $0xe98] sm:$0xf]
    %v3552 = vld [vmem:[#allocation9 + $0xea0] sm:$0xf]
    %v3553 = vld [vmem:[#allocation9 + $0xea8] sm:$0xf]
    %v3554 = vld [vmem:[#allocation9 + $0xeb0] sm:$0xf]
    %v3555 = vld [vmem:[#allocation9 + $0xeb8] sm:$0xf]
    %v3556 = vld [vmem:[#allocation9 + $0xec0] sm:$0xf]
    %v3557 = vld [vmem:[#allocation9 + $0xec8] sm:$0xf]
    %v3558 = vld [vmem:[#allocation9 + $0xed0] sm:$0xf]
    %v3559 = vld [vmem:[#allocation9 + $0xed8] sm:$0xf]
    %v3560 = vld [vmem:[#allocation9 + $0xee0] sm:$0xf]
    %v3561 = vld [vmem:[#allocation9 + $0xee8] sm:$0xf]
    %v3562 = vld [vmem:[#allocation9 + $0xef0] sm:$0xf]
    %v3563 = vld [vmem:[#allocation9 + $0xef8] sm:$0xf]
    %v3564 = vld [vmem:[#allocation10 + $0x3] ss:$0 sm:$0xff]
    %v3565 = vadd.s32 %v238, 16
    %v3566 = vadd.s32 %v238, 24
    %vm3567 = vcmp.eq.s32.totalorder %v3565, %v242
    %vm3568 = vcmp.eq.s32.totalorder %v3566, %v242
    %vm3569 = vcmp.eq.s32.totalorder %v3565, %v245
    %vm3570 = vcmp.eq.s32.totalorder %v3566, %v245
    %vm3571 = vmor %vm3567, %vm3569
    %vm3572 = vmor %vm3568, %vm3570
    %v3573 = vsel %vm3571, 1, 0
    %v3574 = vsel %vm3572, 1, 0
    %v3575 = vcvt.s32.f32 %v3573
    %v3576 = vcvt.s32.f32 %v3574
    %v3577 = vpack.c.bf16 %v3576, %v3575
    %v3578 = vpack.c.bf16 %v3498, %v3496
    %v3579 = vpack.c.bf16 %v3499, %v3497
    %vm3580 = vcmask 130048
    %v3581 = vsel %vm3580, %v254, 0
    %v3584 = vsel %vm3580, %v3577, 0
    %3586 = vmatprep.subr.bf16.mxu0 0
    %3587 = vmatpush1.bf16.msra.mxu0 0
    %3588 = vmatprep.subr.bf16.mxu0 0
    %3589 = vmatpush1.bf16.msra.mxu0 0
    %3590 = vmatprep.subr.bf16.mxu0 0
    %3591 = vmatpush1.bf16.msra.mxu0 0
    %3592 = vmatprep.subr.bf16.mxu0 0
    %3593 = vmatpush1.bf16.msra.mxu0 0
    %3594 = vmatprep.subr.bf16.mxu0 0
    %3595 = vmatpush1.bf16.msra.mxu0 0
    %3596 = vmatprep.subr.bf16.mxu0 0
    %3597 = vmatpush1.bf16.msra.mxu0 0
    %3598 = vmatprep.subr.bf16.mxu0 0
    %3599 = vmatpush1.bf16.msra.mxu0 0
    %3600 = vmatprep.subr.bf16.mxu0 %v3579
    %3601 = vmatpush1.bf16.msra.mxu0 %v3578
    %3602 = vmatprep.subr.bf16.mxu0 0
    %3603 = vmatpush2.bf16.msra.mxu0 0
    %3604 = vmatprep.subr.bf16.mxu0 0
    %3605 = vmatpush2.bf16.msra.mxu0 0
    %3606 = vmatprep.subr.bf16.mxu0 0
    %3607 = vmatpush2.bf16.msra.mxu0 0
    %3608 = vmatprep.subr.bf16.mxu0 0
    %3609 = vmatpush2.bf16.msra.mxu0 0
    %3610 = vmatprep.subr.bf16.mxu0 0
    %3611 = vmatpush2.bf16.msra.mxu0 0
    %3612 = vmatprep.subr.bf16.mxu0 0
    %3613 = vmatpush2.bf16.msra.mxu0 0
    %3614 = vmatprep.subr.bf16.mxu0 0
    %3615 = vmatpush2.bf16.msra.mxu0 0
    %3616 = vmatprep.subr.bf16.mxu0 0
    %3617 = vmatpush2.bf16.msra.mxu0 0
    %3618 = vmatprep.mubr.bf16.mxu0 0
    %3619 = vmatmul.mubr.bf16.gmra.mxu0 %v3581
    %v3620 = vpop.f32.mrf.mxu0
    %v3621 = vadd.f32 0.0, %v3620
    %v3622 = vpop.f32.mrf.mxu0
    %v3623 = vadd.f32 0.0, %v3622
    %v3624 = vpop.f32.mrf.mxu0
    %v3625 = vadd.f32 0.0, %v3624
    %v3626 = vpop.f32.mrf.mxu0
    %v3627 = vadd.f32 0.0, %v3626
    %3628 = vmatprep.mubr.bf16.mxu0 0
    %3629 = vmatmul.mubr.bf16.gmra.mxu0 %v3584
    %v3630 = vpop.f32.mrf.mxu0
    %v3631 = vadd.f32 0.0, %v3630
    %v3632 = vpop.f32.mrf.mxu0
    %v3633 = vadd.f32 0.0, %v3632
    %v3634 = vpop.f32.mrf.mxu0
    %v3635 = vadd.f32 0.0, %v3634
    %v3636 = vpop.f32.mrf.mxu0
    %v3637 = vadd.f32 0.0, %v3636
    %3638 = vdwg.mxu0
    %v3639 = vpack.c.bf16 %v3625, %v3621
    %v3640 = vpack.c.bf16 %v3627, %v3623
    %v3641 = vpack.c.bf16 %v3635, %v3631
    %v3642 = vpack.c.bf16 %v3637, %v3633
    %v3675 = vunpack.c.l.b16 %v3500
    %v3676 = vunpack.c.l.b16 %v3501
    %v3677 = vunpack.c.l.b16 %v3502
    %v3678 = vunpack.c.l.b16 %v3503
    %v3679 = vunpack.c.l.b16 %v3504
    %v3680 = vunpack.c.l.b16 %v3505
    %v3681 = vunpack.c.l.b16 %v3506
    %v3682 = vunpack.c.l.b16 %v3507
    %v3683 = vunpack.c.l.b16 %v3508
    %v3684 = vunpack.c.l.b16 %v3509
    %v3685 = vunpack.c.l.b16 %v3510
    %v3686 = vunpack.c.l.b16 %v3511
    %v3687 = vunpack.c.l.b16 %v3512
    %v3688 = vunpack.c.l.b16 %v3513
    %v3689 = vunpack.c.l.b16 %v3514
    %v3690 = vunpack.c.l.b16 %v3515
    %v3691 = vunpack.c.l.b16 %v3516
    %v3692 = vunpack.c.l.b16 %v3517
    %v3693 = vunpack.c.l.b16 %v3518
    %v3694 = vunpack.c.l.b16 %v3519
    %v3695 = vunpack.c.l.b16 %v3520
    %v3696 = vunpack.c.l.b16 %v3521
    %v3697 = vunpack.c.l.b16 %v3522
    %v3698 = vunpack.c.l.b16 %v3523
    %v3699 = vunpack.c.l.b16 %v3524
    %v3700 = vunpack.c.l.b16 %v3525
    %v3701 = vunpack.c.l.b16 %v3526
    %v3702 = vunpack.c.l.b16 %v3527
    %v3703 = vunpack.c.l.b16 %v3528
    %v3704 = vunpack.c.l.b16 %v3529
    %v3705 = vunpack.c.l.b16 %v3530
    %v3706 = vunpack.c.l.b16 %v3531
    %v3707 = vpack.c.b16 %v3676, %v3675
    %v3708 = vpack.c.b16 %v3678, %v3677
    %v3709 = vpack.c.b16 %v3680, %v3679
    %v3710 = vpack.c.b16 %v3682, %v3681
    %v3711 = vpack.c.b16 %v3684, %v3683
    %v3712 = vpack.c.b16 %v3686, %v3685
    %v3713 = vpack.c.b16 %v3688, %v3687
    %v3714 = vpack.c.b16 %v3690, %v3689
    %v3715 = vpack.c.b16 %v3692, %v3691
    %v3716 = vpack.c.b16 %v3694, %v3693
    %v3717 = vpack.c.b16 %v3696, %v3695
    %v3718 = vpack.c.b16 %v3698, %v3697
    %v3719 = vpack.c.b16 %v3700, %v3699
    %v3720 = vpack.c.b16 %v3702, %v3701
    %v3721 = vpack.c.b16 %v3704, %v3703
    %v3722 = vpack.c.b16 %v3706, %v3705
    %3739 = vmatprep.subr.bf16.mxu0 0
    %3740 = vmatpush1.bf16.msra.mxu0 %v3714
    %3741 = vmatprep.subr.bf16.mxu0 0
    %3742 = vmatpush1.bf16.msra.mxu0 %v3713
    %3743 = vmatprep.subr.bf16.mxu0 0
    %3744 = vmatpush1.bf16.msra.mxu0 %v3712
    %3745 = vmatprep.subr.bf16.mxu0 0
    %3746 = vmatpush1.bf16.msra.mxu0 %v3711
    %3747 = vmatprep.subr.bf16.mxu0 0
    %3748 = vmatpush1.bf16.msra.mxu0 %v3710
    %3749 = vmatprep.subr.bf16.mxu0 0
    %3750 = vmatpush1.bf16.msra.mxu0 %v3709
    %3751 = vmatprep.subr.bf16.mxu0 0
    %3752 = vmatpush1.bf16.msra.mxu0 %v3708
    %3753 = vmatprep.subr.bf16.mxu0 0
    %3754 = vmatpush1.bf16.msra.mxu0 %v3707
    %3755 = vmatprep.subr.bf16.mxu0 0
    %3756 = vmatpush2.bf16.msra.mxu0 %v3722
    %3757 = vmatprep.subr.bf16.mxu0 0
    %3758 = vmatpush2.bf16.msra.mxu0 %v3721
    %3759 = vmatprep.subr.bf16.mxu0 0
    %3760 = vmatpush2.bf16.msra.mxu0 %v3720
    %3761 = vmatprep.subr.bf16.mxu0 0
    %3762 = vmatpush2.bf16.msra.mxu0 %v3719
    %3763 = vmatprep.subr.bf16.mxu0 0
    %3764 = vmatpush2.bf16.msra.mxu0 %v3718
    %3765 = vmatprep.subr.bf16.mxu0 0
    %3766 = vmatpush2.bf16.msra.mxu0 %v3717
    %3767 = vmatprep.subr.bf16.mxu0 0
    %3768 = vmatpush2.bf16.msra.mxu0 %v3716
    %3769 = vmatprep.subr.bf16.mxu0 0
    %3770 = vmatpush2.bf16.msra.mxu0 %v3715
    %3771 = vmatprep.mubr.bf16.mxu0 %v3640
    %3772 = vmatmul.mubr.bf16.gmra.mxu0 %v3639
    %v3773 = vpop.f32.mrf.mxu0
    %v3774 = vadd.f32 0.0, %v3773
    %v3775 = vpop.f32.mrf.mxu0
    %v3776 = vpop.f32.mrf.mxu0
    %v3777 = vadd.f32 0.0, %v3776
    %v3778 = vpop.f32.mrf.mxu0
    %3779 = vmatprep.mubr.bf16.mxu0 %v3642
    %3780 = vmatmul.mubr.bf16.gmra.mxu0 %v3641
    %v3781 = vpop.f32.mrf.mxu0
    %v3782 = vadd.f32 0.0, %v3781
    %v3783 = vpop.f32.mrf.mxu0
    %v3784 = vpop.f32.mrf.mxu0
    %v3785 = vadd.f32 0.0, %v3784
    %v3786 = vpop.f32.mrf.mxu0
    %3787 = vdwg.mxu0
    %v3820 = vunpack.c.l.b16 %v3532
    %v3821 = vunpack.c.l.b16 %v3533
    %v3822 = vunpack.c.l.b16 %v3534
    %v3823 = vunpack.c.l.b16 %v3535
    %v3824 = vunpack.c.l.b16 %v3536
    %v3825 = vunpack.c.l.b16 %v3537
    %v3826 = vunpack.c.l.b16 %v3538
    %v3827 = vunpack.c.l.b16 %v3539
    %v3828 = vunpack.c.l.b16 %v3540
    %v3829 = vunpack.c.l.b16 %v3541
    %v3830 = vunpack.c.l.b16 %v3542
    %v3831 = vunpack.c.l.b16 %v3543
    %v3832 = vunpack.c.l.b16 %v3544
    %v3833 = vunpack.c.l.b16 %v3545
    %v3834 = vunpack.c.l.b16 %v3546
    %v3835 = vunpack.c.l.b16 %v3547
    %v3836 = vunpack.c.l.b16 %v3548
    %v3837 = vunpack.c.l.b16 %v3549
    %v3838 = vunpack.c.l.b16 %v3550
    %v3839 = vunpack.c.l.b16 %v3551
    %v3840 = vunpack.c.l.b16 %v3552
    %v3841 = vunpack.c.l.b16 %v3553
    %v3842 = vunpack.c.l.b16 %v3554
    %v3843 = vunpack.c.l.b16 %v3555
    %v3844 = vunpack.c.l.b16 %v3556
    %v3845 = vunpack.c.l.b16 %v3557
    %v3846 = vunpack.c.l.b16 %v3558
    %v3847 = vunpack.c.l.b16 %v3559
    %v3848 = vunpack.c.l.b16 %v3560
    %v3849 = vunpack.c.l.b16 %v3561
    %v3850 = vunpack.c.l.b16 %v3562
    %v3851 = vunpack.c.l.b16 %v3563
    %v3852 = vpack.c.b16 %v3821, %v3820
    %v3853 = vpack.c.b16 %v3823, %v3822
    %v3854 = vpack.c.b16 %v3825, %v3824
    %v3855 = vpack.c.b16 %v3827, %v3826
    %v3856 = vpack.c.b16 %v3829, %v3828
    %v3857 = vpack.c.b16 %v3831, %v3830
    %v3858 = vpack.c.b16 %v3833, %v3832
    %v3859 = vpack.c.b16 %v3835, %v3834
    %v3860 = vpack.c.b16 %v3837, %v3836
    %v3861 = vpack.c.b16 %v3839, %v3838
    %v3862 = vpack.c.b16 %v3841, %v3840
    %v3863 = vpack.c.b16 %v3843, %v3842
    %v3864 = vpack.c.b16 %v3845, %v3844
    %v3865 = vpack.c.b16 %v3847, %v3846
    %v3866 = vpack.c.b16 %v3849, %v3848
    %v3867 = vpack.c.b16 %v3851, %v3850
    %3884 = vmatprep.subr.bf16.mxu0 0
    %3885 = vmatpush1.bf16.msra.mxu0 %v3859
    %3886 = vmatprep.subr.bf16.mxu0 0
    %3887 = vmatpush1.bf16.msra.mxu0 %v3858
    %3888 = vmatprep.subr.bf16.mxu0 0
    %3889 = vmatpush1.bf16.msra.mxu0 %v3857
    %3890 = vmatprep.subr.bf16.mxu0 0
    %3891 = vmatpush1.bf16.msra.mxu0 %v3856
    %3892 = vmatprep.subr.bf16.mxu0 0
    %3893 = vmatpush1.bf16.msra.mxu0 %v3855
    %3894 = vmatprep.subr.bf16.mxu0 0
    %3895 = vmatpush1.bf16.msra.mxu0 %v3854
    %3896 = vmatprep.subr.bf16.mxu0 0
    %3897 = vmatpush1.bf16.msra.mxu0 %v3853
    %3898 = vmatprep.subr.bf16.mxu0 0
    %3899 = vmatpush1.bf16.msra.mxu0 %v3852
    %3900 = vmatprep.subr.bf16.mxu0 0
    %3901 = vmatpush2.bf16.msra.mxu0 %v3867
    %3902 = vmatprep.subr.bf16.mxu0 0
    %3903 = vmatpush2.bf16.msra.mxu0 %v3866
    %3904 = vmatprep.subr.bf16.mxu0 0
    %3905 = vmatpush2.bf16.msra.mxu0 %v3865
    %3906 = vmatprep.subr.bf16.mxu0 0
    %3907 = vmatpush2.bf16.msra.mxu0 %v3864
    %3908 = vmatprep.subr.bf16.mxu0 0
    %3909 = vmatpush2.bf16.msra.mxu0 %v3863
    %3910 = vmatprep.subr.bf16.mxu0 0
    %3911 = vmatpush2.bf16.msra.mxu0 %v3862
    %3912 = vmatprep.subr.bf16.mxu0 0
    %3913 = vmatpush2.bf16.msra.mxu0 %v3861
    %3914 = vmatprep.subr.bf16.mxu0 0
    %3915 = vmatpush2.bf16.msra.mxu0 %v3860
    %3916 = vmatprep.mubr.bf16.mxu0 %v3640
    %3917 = vmatmul.mubr.bf16.gmra.mxu0 %v3639
    %v3918 = vpop.f32.mrf.mxu0
    %v3919 = vadd.f32 0.0, %v3918
    %v3920 = vpop.f32.mrf.mxu0
    %v3921 = vpop.f32.mrf.mxu0
    %v3922 = vadd.f32 0.0, %v3921
    %v3923 = vpop.f32.mrf.mxu0
    %3924 = vmatprep.mubr.bf16.mxu0 %v3642
    %3925 = vmatmul.mubr.bf16.gmra.mxu0 %v3641
    %v3926 = vpop.f32.mrf.mxu0
    %v3927 = vadd.f32 0.0, %v3926
    %v3928 = vpop.f32.mrf.mxu0
    %v3929 = vpop.f32.mrf.mxu0
    %v3930 = vadd.f32 0.0, %v3929
    %v3931 = vpop.f32.mrf.mxu0
    %3932 = vdwg.mxu0
    %v3933 = vand.u32 %v3565, 1
    %v3934 = vand.u32 %v3566, 1
    %vm3935 = vcmp.eq.s32.totalorder %v3933, 0
    %vm3936 = vcmp.eq.s32.totalorder %v3934, 0
    %v3937 = vsel %vm3935, 1, 0
    %v3938 = vsel %vm3936, 1, 0
    %vm3939 = vcmp.eq.s32.totalorder %v3937, 1
    %vm3940 = vcmp.eq.s32.totalorder %v3938, 1
    %v3941 = vsel %vm1184, %v3774, %v3919
    %v3942 = vsel %vm1185, %v3777, %v3922
    %v3943 = vsel %vm3939, %v3782, %v3927
    %v3944 = vsel %vm3940, %v3785, %v3930
    %v3945 = vadd.f32 %v3941, %v3564
    %v3946 = vadd.f32 %v3942, %v3564
    %v3947 = vadd.f32 %v3943, %v3564
    %v3948 = vadd.f32 %v3944, %v3564
    %v3949 = vld [vmem:[#allocation6] sm:$0xff]
    %v3950 = vld [vmem:[#allocation6 + $0x8] sm:$0xff]
    %v3951 = vld [vmem:[#allocation6 + $0x10] sm:$0xff]
    %v3952 = vld [vmem:[#allocation6 + $0x18] sm:$0xff]
    %v3953 = vld [vmem:[#allocation9 + $0xf00] sm:$0xf]
    %v3954 = vld [vmem:[#allocation9 + $0xf08] sm:$0xf]
    %v3955 = vld [vmem:[#allocation9 + $0xf10] sm:$0xf]
    %v3956 = vld [vmem:[#allocation9 + $0xf18] sm:$0xf]
    %v3957 = vld [vmem:[#allocation9 + $0xf20] sm:$0xf]
    %v3958 = vld [vmem:[#allocation9 + $0xf28] sm:$0xf]
    %v3959 = vld [vmem:[#allocation9 + $0xf30] sm:$0xf]
    %v3960 = vld [vmem:[#allocation9 + $0xf38] sm:$0xf]
    %v3961 = vld [vmem:[#allocation9 + $0xf40] sm:$0xf]
    %v3962 = vld [vmem:[#allocation9 + $0xf48] sm:$0xf]
    %v3963 = vld [vmem:[#allocation9 + $0xf50] sm:$0xf]
    %v3964 = vld [vmem:[#allocation9 + $0xf58] sm:$0xf]
    %v3965 = vld [vmem:[#allocation9 + $0xf60] sm:$0xf]
    %v3966 = vld [vmem:[#allocation9 + $0xf68] sm:$0xf]
    %v3967 = vld [vmem:[#allocation9 + $0xf70] sm:$0xf]
    %v3968 = vld [vmem:[#allocation9 + $0xf78] sm:$0xf]
    %v3969 = vld [vmem:[#allocation9 + $0xf80] sm:$0xf]
    %v3970 = vld [vmem:[#allocation9 + $0xf88] sm:$0xf]
    %v3971 = vld [vmem:[#allocation9 + $0xf90] sm:$0xf]
    %v3972 = vld [vmem:[#allocation9 + $0xf98] sm:$0xf]
    %v3973 = vld [vmem:[#allocation9 + $0xfa0] sm:$0xf]
    %v3974 = vld [vmem:[#allocation9 + $0xfa8] sm:$0xf]
    %v3975 = vld [vmem:[#allocation9 + $0xfb0] sm:$0xf]
    %v3976 = vld [vmem:[#allocation9 + $0xfb8] sm:$0xf]
    %v3977 = vld [vmem:[#allocation9 + $0xfc0] sm:$0xf]
    %v3978 = vld [vmem:[#allocation9 + $0xfc8] sm:$0xf]
    %v3979 = vld [vmem:[#allocation9 + $0xfd0] sm:$0xf]
    %v3980 = vld [vmem:[#allocation9 + $0xfd8] sm:$0xf]
    %v3981 = vld [vmem:[#allocation9 + $0xfe0] sm:$0xf]
    %v3982 = vld [vmem:[#allocation9 + $0xfe8] sm:$0xf]
    %v3983 = vld [vmem:[#allocation9 + $0xff0] sm:$0xf]
    %v3984 = vld [vmem:[#allocation9 + $0xff8] sm:$0xf]
    %v3985 = vld [vmem:[#allocation9 + $0x1000] sm:$0xf]
    %v3986 = vld [vmem:[#allocation9 + $0x1008] sm:$0xf]
    %v3987 = vld [vmem:[#allocation9 + $0x1010] sm:$0xf]
    %v3988 = vld [vmem:[#allocation9 + $0x1018] sm:$0xf]
    %v3989 = vld [vmem:[#allocation9 + $0x1020] sm:$0xf]
    %v3990 = vld [vmem:[#allocation9 + $0x1028] sm:$0xf]
    %v3991 = vld [vmem:[#allocation9 + $0x1030] sm:$0xf]
    %v3992 = vld [vmem:[#allocation9 + $0x1038] sm:$0xf]
    %v3993 = vld [vmem:[#allocation9 + $0x1040] sm:$0xf]
    %v3994 = vld [vmem:[#allocation9 + $0x1048] sm:$0xf]
    %v3995 = vld [vmem:[#allocation9 + $0x1050] sm:$0xf]
    %v3996 = vld [vmem:[#allocation9 + $0x1058] sm:$0xf]
    %v3997 = vld [vmem:[#allocation9 + $0x1060] sm:$0xf]
    %v3998 = vld [vmem:[#allocation9 + $0x1068] sm:$0xf]
    %v3999 = vld [vmem:[#allocation9 + $0x1070] sm:$0xf]
    %v4000 = vld [vmem:[#allocation9 + $0x1078] sm:$0xf]
    %v4001 = vld [vmem:[#allocation9 + $0x1080] sm:$0xf]
    %v4002 = vld [vmem:[#allocation9 + $0x1088] sm:$0xf]
    %v4003 = vld [vmem:[#allocation9 + $0x1090] sm:$0xf]
    %v4004 = vld [vmem:[#allocation9 + $0x1098] sm:$0xf]
    %v4005 = vld [vmem:[#allocation9 + $0x10a0] sm:$0xf]
    %v4006 = vld [vmem:[#allocation9 + $0x10a8] sm:$0xf]
    %v4007 = vld [vmem:[#allocation9 + $0x10b0] sm:$0xf]
    %v4008 = vld [vmem:[#allocation9 + $0x10b8] sm:$0xf]
    %v4009 = vld [vmem:[#allocation9 + $0x10c0] sm:$0xf]
    %v4010 = vld [vmem:[#allocation9 + $0x10c8] sm:$0xf]
    %v4011 = vld [vmem:[#allocation9 + $0x10d0] sm:$0xf]
    %v4012 = vld [vmem:[#allocation9 + $0x10d8] sm:$0xf]
    %v4013 = vld [vmem:[#allocation9 + $0x10e0] sm:$0xf]
    %v4014 = vld [vmem:[#allocation9 + $0x10e8] sm:$0xf]
    %v4015 = vld [vmem:[#allocation9 + $0x10f0] sm:$0xf]
    %v4016 = vld [vmem:[#allocation9 + $0x10f8] sm:$0xf]
    %v4017 = vld [vmem:[#allocation9 + $0x1100] sm:$0xf]
    %v4018 = vld [vmem:[#allocation9 + $0x1108] sm:$0xf]
    %v4019 = vld [vmem:[#allocation9 + $0x1110] sm:$0xf]
    %v4020 = vld [vmem:[#allocation9 + $0x1118] sm:$0xf]
    %v4021 = vld [vmem:[#allocation9 + $0x1120] sm:$0xf]
    %v4022 = vld [vmem:[#allocation9 + $0x1128] sm:$0xf]
    %v4023 = vld [vmem:[#allocation9 + $0x1130] sm:$0xf]
    %v4024 = vld [vmem:[#allocation9 + $0x1138] sm:$0xf]
    %v4025 = vld [vmem:[#allocation9 + $0x1140] sm:$0xf]
    %v4026 = vld [vmem:[#allocation9 + $0x1148] sm:$0xf]
    %v4027 = vld [vmem:[#allocation9 + $0x1150] sm:$0xf]
    %v4028 = vld [vmem:[#allocation9 + $0x1158] sm:$0xf]
    %v4029 = vld [vmem:[#allocation9 + $0x1160] sm:$0xf]
    %v4030 = vld [vmem:[#allocation9 + $0x1168] sm:$0xf]
    %v4031 = vld [vmem:[#allocation9 + $0x1170] sm:$0xf]
    %v4032 = vld [vmem:[#allocation9 + $0x1178] sm:$0xf]
    %v4033 = vld [vmem:[#allocation9 + $0x1180] sm:$0xf]
    %v4034 = vld [vmem:[#allocation9 + $0x1188] sm:$0xf]
    %v4035 = vld [vmem:[#allocation9 + $0x1190] sm:$0xf]
    %v4036 = vld [vmem:[#allocation9 + $0x1198] sm:$0xf]
    %v4037 = vld [vmem:[#allocation9 + $0x11a0] sm:$0xf]
    %v4038 = vld [vmem:[#allocation9 + $0x11a8] sm:$0xf]
    %v4039 = vld [vmem:[#allocation9 + $0x11b0] sm:$0xf]
    %v4040 = vld [vmem:[#allocation9 + $0x11b8] sm:$0xf]
    %v4041 = vld [vmem:[#allocation9 + $0x11c0] sm:$0xf]
    %v4042 = vld [vmem:[#allocation9 + $0x11c8] sm:$0xf]
    %v4043 = vld [vmem:[#allocation9 + $0x11d0] sm:$0xf]
    %v4044 = vld [vmem:[#allocation9 + $0x11d8] sm:$0xf]
    %v4045 = vld [vmem:[#allocation9 + $0x11e0] sm:$0xf]
    %v4046 = vld [vmem:[#allocation9 + $0x11e8] sm:$0xf]
    %v4047 = vld [vmem:[#allocation9 + $0x11f0] sm:$0xf]
    %v4048 = vld [vmem:[#allocation9 + $0x11f8] sm:$0xf]
    %v4049 = vld [vmem:[#allocation10 + $0x4] ss:$0 sm:$0xff]
    %v4058 = vrot.slane %v3945, 7
    %v4059 = vrot.slane %v3949, 7
    %v4060 = vrot.slane %v3946, 7
    %v4061 = vsel %vm1411, %v4058, %v4060
    %v4062 = vrot.slane %v3950, 7
    %v4063 = vsel %vm1411, %v4059, %v4062
    %v4064 = vrot.slane %v3947, 7
    %v4065 = vsel %vm1411, %v4060, %v4064
    %v4066 = vrot.slane %v3951, 7
    %v4067 = vsel %vm1411, %v4062, %v4066
    %v4068 = vrot.slane %v3948, 7
    %v4069 = vsel %vm1411, %v4064, %v4068
    %v4070 = vrot.slane %v3952, 7
    %v4071 = vsel %vm1411, %v4066, %v4070
    %v4080 = vsel %vm1411, 0.0, %v4058
    %v4081 = vsel %vm1411, 0.0, %v4059
    %v4082 = vrot.slane %v3945, 1
    %v4083 = vrot.slane %v3946, 1
    %v4084 = vsel %vm1436, %v4082, %v4083
    %v4085 = vrot.slane %v3949, 1
    %v4086 = vrot.slane %v3950, 1
    %v4087 = vsel %vm1436, %v4085, %v4086
    %v4088 = vrot.slane %v3947, 1
    %v4089 = vsel %vm1436, %v4083, %v4088
    %v4090 = vrot.slane %v3951, 1
    %v4091 = vsel %vm1436, %v4086, %v4090
    %v4092 = vrot.slane %v3948, 1
    %v4093 = vsel %vm1436, %v4088, %v4092
    %v4094 = vrot.slane %v3952, 1
    %v4095 = vsel %vm1436, %v4090, %v4094
    %v4104 = vsel %vm1436, %v4092, 0.0
    %v4105 = vsel %vm1436, %v4094, 0.0
    %v4106 = vand.u32 %v238, 15
    %v4107 = vand.u32 %v239, 15
    %v4108 = vand.u32 %v3565, 15
    %v4109 = vand.u32 %v3566, 15
    %vm4110 = vcmp.eq.s32.totalorder %v4106, 0
    %vm4111 = vcmp.eq.s32.totalorder %v4107, 0
    %vm4112 = vcmp.eq.s32.totalorder %v4108, 0
    %vm4113 = vcmp.eq.s32.totalorder %v4109, 0
    %v4114 = vsel %vm4110, 1, 0
    %v4115 = vsel %vm4111, 1, 0
    %v4116 = vsel %vm4112, 1, 0
    %v4117 = vsel %vm4113, 1, 0
    %vm4118 = vcmp.eq.s32.totalorder %v4114, 1
    %vm4119 = vcmp.eq.s32.totalorder %v4115, 1
    %vm4120 = vcmp.eq.s32.totalorder %v4116, 1
    %vm4121 = vcmp.eq.s32.totalorder %v4117, 1
    %v4122 = vsel %vm4118, 0.0, %v4080
    %v4123 = vsel %vm4118, 0.0, %v4081
    %v4124 = vsel %vm4119, 0.0, %v4061
    %v4125 = vsel %vm4119, 0.0, %v4063
    %v4126 = vsel %vm4120, 0.0, %v4065
    %v4127 = vsel %vm4120, 0.0, %v4067
    %v4128 = vsel %vm4121, 0.0, %v4069
    %v4129 = vsel %vm4121, 0.0, %v4071
    %vm4130 = vcmp.eq.s32.totalorder %v4106, 15
    %vm4131 = vcmp.eq.s32.totalorder %v4107, 15
    %vm4132 = vcmp.eq.s32.totalorder %v4108, 15
    %vm4133 = vcmp.eq.s32.totalorder %v4109, 15
    %v4134 = vsel %vm4130, 1, 0
    %v4135 = vsel %vm4131, 1, 0
    %v4136 = vsel %vm4132, 1, 0
    %v4137 = vsel %vm4133, 1, 0
    %vm4138 = vcmp.eq.s32.totalorder %v4134, 1
    %vm4139 = vcmp.eq.s32.totalorder %v4135, 1
    %vm4140 = vcmp.eq.s32.totalorder %v4136, 1
    %vm4141 = vcmp.eq.s32.totalorder %v4137, 1
    %v4142 = vsel %vm4138, 0.0, %v4084
    %v4143 = vsel %vm4138, 0.0, %v4087
    %v4144 = vsel %vm4139, 0.0, %v4089
    %v4145 = vsel %vm4139, 0.0, %v4091
    %v4146 = vsel %vm4140, 0.0, %v4093
    %v4147 = vsel %vm4140, 0.0, %v4095
    %v4148 = vsel %vm4141, 0.0, %v4104
    %v4149 = vsel %vm4141, 0.0, %v4105
    %v4150 = vpack.c.bf16 %v4124, %v4122
    %v4151 = vpack.c.bf16 %v4125, %v4123
    %v4152 = vpack.c.bf16 %v3946, %v3945
    %v4153 = vpack.c.bf16 %v3950, %v3949
    %v4154 = vpack.c.bf16 %v4144, %v4142
    %v4155 = vpack.c.bf16 %v4145, %v4143
    %v4156 = vpack.c.bf16 %v4128, %v4126
    %v4157 = vpack.c.bf16 %v4129, %v4127
    %v4158 = vpack.c.bf16 %v3948, %v3947
    %v4159 = vpack.c.bf16 %v3952, %v3951
    %v4160 = vpack.c.bf16 %v4148, %v4146
    %v4161 = vpack.c.bf16 %v4149, %v4147
    %v4258 = vunpack.c.l.b16 %v3953
    %v4259 = vunpack.c.l.b16 %v3954
    %v4260 = vunpack.c.l.b16 %v3955
    %v4261 = vunpack.c.l.b16 %v3956
    %v4262 = vunpack.c.l.b16 %v3957
    %v4263 = vunpack.c.l.b16 %v3958
    %v4264 = vunpack.c.l.b16 %v3959
    %v4265 = vunpack.c.l.b16 %v3960
    %v4266 = vunpack.c.l.b16 %v3961
    %v4267 = vunpack.c.l.b16 %v3962
    %v4268 = vunpack.c.l.b16 %v3963
    %v4269 = vunpack.c.l.b16 %v3964
    %v4270 = vunpack.c.l.b16 %v3965
    %v4271 = vunpack.c.l.b16 %v3966
    %v4272 = vunpack.c.l.b16 %v3967
    %v4273 = vunpack.c.l.b16 %v3968
    %v4274 = vunpack.c.l.b16 %v3969
    %v4275 = vunpack.c.l.b16 %v3970
    %v4276 = vunpack.c.l.b16 %v3971
    %v4277 = vunpack.c.l.b16 %v3972
    %v4278 = vunpack.c.l.b16 %v3973
    %v4279 = vunpack.c.l.b16 %v3974
    %v4280 = vunpack.c.l.b16 %v3975
    %v4281 = vunpack.c.l.b16 %v3976
    %v4282 = vunpack.c.l.b16 %v3977
    %v4283 = vunpack.c.l.b16 %v3978
    %v4284 = vunpack.c.l.b16 %v3979
    %v4285 = vunpack.c.l.b16 %v3980
    %v4286 = vunpack.c.l.b16 %v3981
    %v4287 = vunpack.c.l.b16 %v3982
    %v4288 = vunpack.c.l.b16 %v3983
    %v4289 = vunpack.c.l.b16 %v3984
    %v4290 = vunpack.c.l.b16 %v3985
    %v4291 = vunpack.c.l.b16 %v3986
    %v4292 = vunpack.c.l.b16 %v3987
    %v4293 = vunpack.c.l.b16 %v3988
    %v4294 = vunpack.c.l.b16 %v3989
    %v4295 = vunpack.c.l.b16 %v3990
    %v4296 = vunpack.c.l.b16 %v3991
    %v4297 = vunpack.c.l.b16 %v3992
    %v4298 = vunpack.c.l.b16 %v3993
    %v4299 = vunpack.c.l.b16 %v3994
    %v4300 = vunpack.c.l.b16 %v3995
    %v4301 = vunpack.c.l.b16 %v3996
    %v4302 = vunpack.c.l.b16 %v3997
    %v4303 = vunpack.c.l.b16 %v3998
    %v4304 = vunpack.c.l.b16 %v3999
    %v4305 = vunpack.c.l.b16 %v4000
    %v4306 = vunpack.c.l.b16 %v4001
    %v4307 = vunpack.c.l.b16 %v4002
    %v4308 = vunpack.c.l.b16 %v4003
    %v4309 = vunpack.c.l.b16 %v4004
    %v4310 = vunpack.c.l.b16 %v4005
    %v4311 = vunpack.c.l.b16 %v4006
    %v4312 = vunpack.c.l.b16 %v4007
    %v4313 = vunpack.c.l.b16 %v4008
    %v4314 = vunpack.c.l.b16 %v4009
    %v4315 = vunpack.c.l.b16 %v4010
    %v4316 = vunpack.c.l.b16 %v4011
    %v4317 = vunpack.c.l.b16 %v4012
    %v4318 = vunpack.c.l.b16 %v4013
    %v4319 = vunpack.c.l.b16 %v4014
    %v4320 = vunpack.c.l.b16 %v4015
    %v4321 = vunpack.c.l.b16 %v4016
    %v4322 = vunpack.c.l.b16 %v4017
    %v4323 = vunpack.c.l.b16 %v4018
    %v4324 = vunpack.c.l.b16 %v4019
    %v4325 = vunpack.c.l.b16 %v4020
    %v4326 = vunpack.c.l.b16 %v4021
    %v4327 = vunpack.c.l.b16 %v4022
    %v4328 = vunpack.c.l.b16 %v4023
    %v4329 = vunpack.c.l.b16 %v4024
    %v4330 = vunpack.c.l.b16 %v4025
    %v4331 = vunpack.c.l.b16 %v4026
    %v4332 = vunpack.c.l.b16 %v4027
    %v4333 = vunpack.c.l.b16 %v4028
    %v4334 = vunpack.c.l.b16 %v4029
    %v4335 = vunpack.c.l.b16 %v4030
    %v4336 = vunpack.c.l.b16 %v4031
    %v4337 = vunpack.c.l.b16 %v4032
    %v4338 = vunpack.c.l.b16 %v4033
    %v4339 = vunpack.c.l.b16 %v4034
    %v4340 = vunpack.c.l.b16 %v4035
    %v4341 = vunpack.c.l.b16 %v4036
    %v4342 = vunpack.c.l.b16 %v4037
    %v4343 = vunpack.c.l.b16 %v4038
    %v4344 = vunpack.c.l.b16 %v4039
    %v4345 = vunpack.c.l.b16 %v4040
    %v4346 = vunpack.c.l.b16 %v4041
    %v4347 = vunpack.c.l.b16 %v4042
    %v4348 = vunpack.c.l.b16 %v4043
    %v4349 = vunpack.c.l.b16 %v4044
    %v4350 = vunpack.c.l.b16 %v4045
    %v4351 = vunpack.c.l.b16 %v4046
    %v4352 = vunpack.c.l.b16 %v4047
    %v4353 = vunpack.c.l.b16 %v4048
    %v4354 = vpack.c.b16 %v4259, %v4258
    %v4355 = vpack.c.b16 %v4261, %v4260
    %v4356 = vpack.c.b16 %v4263, %v4262
    %v4357 = vpack.c.b16 %v4265, %v4264
    %v4358 = vpack.c.b16 %v4267, %v4266
    %v4359 = vpack.c.b16 %v4269, %v4268
    %v4360 = vpack.c.b16 %v4271, %v4270
    %v4361 = vpack.c.b16 %v4273, %v4272
    %v4362 = vpack.c.b16 %v4275, %v4274
    %v4363 = vpack.c.b16 %v4277, %v4276
    %v4364 = vpack.c.b16 %v4279, %v4278
    %v4365 = vpack.c.b16 %v4281, %v4280
    %v4366 = vpack.c.b16 %v4283, %v4282
    %v4367 = vpack.c.b16 %v4285, %v4284
    %v4368 = vpack.c.b16 %v4287, %v4286
    %v4369 = vpack.c.b16 %v4289, %v4288
    %v4370 = vpack.c.b16 %v4291, %v4290
    %v4371 = vpack.c.b16 %v4293, %v4292
    %v4372 = vpack.c.b16 %v4295, %v4294
    %v4373 = vpack.c.b16 %v4297, %v4296
    %v4374 = vpack.c.b16 %v4299, %v4298
    %v4375 = vpack.c.b16 %v4301, %v4300
    %v4376 = vpack.c.b16 %v4303, %v4302
    %v4377 = vpack.c.b16 %v4305, %v4304
    %v4378 = vpack.c.b16 %v4307, %v4306
    %v4379 = vpack.c.b16 %v4309, %v4308
    %v4380 = vpack.c.b16 %v4311, %v4310
    %v4381 = vpack.c.b16 %v4313, %v4312
    %v4382 = vpack.c.b16 %v4315, %v4314
    %v4383 = vpack.c.b16 %v4317, %v4316
    %v4384 = vpack.c.b16 %v4319, %v4318
    %v4385 = vpack.c.b16 %v4321, %v4320
    %v4386 = vpack.c.b16 %v4323, %v4322
    %v4387 = vpack.c.b16 %v4325, %v4324
    %v4388 = vpack.c.b16 %v4327, %v4326
    %v4389 = vpack.c.b16 %v4329, %v4328
    %v4390 = vpack.c.b16 %v4331, %v4330
    %v4391 = vpack.c.b16 %v4333, %v4332
    %v4392 = vpack.c.b16 %v4335, %v4334
    %v4393 = vpack.c.b16 %v4337, %v4336
    %v4394 = vpack.c.b16 %v4339, %v4338
    %v4395 = vpack.c.b16 %v4341, %v4340
    %v4396 = vpack.c.b16 %v4343, %v4342
    %v4397 = vpack.c.b16 %v4345, %v4344
    %v4398 = vpack.c.b16 %v4347, %v4346
    %v4399 = vpack.c.b16 %v4349, %v4348
    %v4400 = vpack.c.b16 %v4351, %v4350
    %v4401 = vpack.c.b16 %v4353, %v4352
    %4450 = vmatprep.subr.bf16.mxu0 0
    %4451 = vmatpush1.bf16.msra.mxu0 %v4361
    %4452 = vmatprep.subr.bf16.mxu0 0
    %4453 = vmatpush1.bf16.msra.mxu0 %v4360
    %4454 = vmatprep.subr.bf16.mxu0 0
    %4455 = vmatpush1.bf16.msra.mxu0 %v4359
    %4456 = vmatprep.subr.bf16.mxu0 0
    %4457 = vmatpush1.bf16.msra.mxu0 %v4358
    %4458 = vmatprep.subr.bf16.mxu0 0
    %4459 = vmatpush1.bf16.msra.mxu0 %v4357
    %4460 = vmatprep.subr.bf16.mxu0 0
    %4461 = vmatpush1.bf16.msra.mxu0 %v4356
    %4462 = vmatprep.subr.bf16.mxu0 0
    %4463 = vmatpush1.bf16.msra.mxu0 %v4355
    %4464 = vmatprep.subr.bf16.mxu0 0
    %4465 = vmatpush1.bf16.msra.mxu0 %v4354
    %4466 = vmatprep.subr.bf16.mxu0 0
    %4467 = vmatpush2.bf16.msra.mxu0 %v4369
    %4468 = vmatprep.subr.bf16.mxu0 0
    %4469 = vmatpush2.bf16.msra.mxu0 %v4368
    %4470 = vmatprep.subr.bf16.mxu0 0
    %4471 = vmatpush2.bf16.msra.mxu0 %v4367
    %4472 = vmatprep.subr.bf16.mxu0 0
    %4473 = vmatpush2.bf16.msra.mxu0 %v4366
    %4474 = vmatprep.subr.bf16.mxu0 0
    %4475 = vmatpush2.bf16.msra.mxu0 %v4365
    %4476 = vmatprep.subr.bf16.mxu0 0
    %4477 = vmatpush2.bf16.msra.mxu0 %v4364
    %4478 = vmatprep.subr.bf16.mxu0 0
    %4479 = vmatpush2.bf16.msra.mxu0 %v4363
    %4480 = vmatprep.subr.bf16.mxu0 0
    %4481 = vmatpush2.bf16.msra.mxu0 %v4362
    %4482 = vmatprep.mubr.bf16.mxu0 %v4151
    %4483 = vmatmul.mubr.bf16.gmra.mxu0 %v4150
    %v4484 = vpop.f32.mrf.mxu0
    %v4485 = vadd.f32 %v4049, %v4484
    %v4486 = vpop.f32.mrf.mxu0
    %v4487 = vpop.f32.mrf.mxu0
    %v4488 = vadd.f32 %v4049, %v4487
    %v4489 = vpop.f32.mrf.mxu0
    %4490 = vmatprep.mubr.bf16.mxu0 %v4157
    %4491 = vmatmul.mubr.bf16.gmra.mxu0 %v4156
    %v4492 = vpop.f32.mrf.mxu0
    %v4493 = vadd.f32 %v4049, %v4492
    %v4494 = vpop.f32.mrf.mxu0
    %v4495 = vpop.f32.mrf.mxu0
    %v4496 = vadd.f32 %v4049, %v4495
    %v4497 = vpop.f32.mrf.mxu0
    %4498 = vdwg.mxu0
    %4499 = vmatprep.subr.bf16.mxu0 0
    %4500 = vmatpush1.bf16.msra.mxu0 %v4377
    %4501 = vmatprep.subr.bf16.mxu0 0
    %4502 = vmatpush1.bf16.msra.mxu0 %v4376
    %4503 = vmatprep.subr.bf16.mxu0 0
    %4504 = vmatpush1.bf16.msra.mxu0 %v4375
    %4505 = vmatprep.subr.bf16.mxu0 0
    %4506 = vmatpush1.bf16.msra.mxu0 %v4374
    %4507 = vmatprep.subr.bf16.mxu0 0
    %4508 = vmatpush1.bf16.msra.mxu0 %v4373
    %4509 = vmatprep.subr.bf16.mxu0 0
    %4510 = vmatpush1.bf16.msra.mxu0 %v4372
    %4511 = vmatprep.subr.bf16.mxu0 0
    %4512 = vmatpush1.bf16.msra.mxu0 %v4371
    %4513 = vmatprep.subr.bf16.mxu0 0
    %4514 = vmatpush1.bf16.msra.mxu0 %v4370
    %4515 = vmatprep.subr.bf16.mxu0 0
    %4516 = vmatpush2.bf16.msra.mxu0 %v4385
    %4517 = vmatprep.subr.bf16.mxu0 0
    %4518 = vmatpush2.bf16.msra.mxu0 %v4384
    %4519 = vmatprep.subr.bf16.mxu0 0
    %4520 = vmatpush2.bf16.msra.mxu0 %v4383
    %4521 = vmatprep.subr.bf16.mxu0 0
    %4522 = vmatpush2.bf16.msra.mxu0 %v4382
    %4523 = vmatprep.subr.bf16.mxu0 0
    %4524 = vmatpush2.bf16.msra.mxu0 %v4381
    %4525 = vmatprep.subr.bf16.mxu0 0
    %4526 = vmatpush2.bf16.msra.mxu0 %v4380
    %4527 = vmatprep.subr.bf16.mxu0 0
    %4528 = vmatpush2.bf16.msra.mxu0 %v4379
    %4529 = vmatprep.subr.bf16.mxu0 0
    %4530 = vmatpush2.bf16.msra.mxu0 %v4378
    %4531 = vmatprep.mubr.bf16.mxu0 %v4153
    %4532 = vmatmul.mubr.bf16.gmra.mxu0 %v4152
    %v4533 = vpop.f32.mrf.mxu0
    %v4534 = vadd.f32 %v4485, %v4533
    %v4535 = vpop.f32.mrf.mxu0
    %v4536 = vpop.f32.mrf.mxu0
    %v4537 = vadd.f32 %v4488, %v4536
    %v4538 = vpop.f32.mrf.mxu0
    %4539 = vmatprep.mubr.bf16.mxu0 %v4159
    %4540 = vmatmul.mubr.bf16.gmra.mxu0 %v4158
    %v4541 = vpop.f32.mrf.mxu0
    %v4542 = vadd.f32 %v4493, %v4541
    %v4543 = vpop.f32.mrf.mxu0
    %v4544 = vpop.f32.mrf.mxu0
    %v4545 = vadd.f32 %v4496, %v4544
    %v4546 = vpop.f32.mrf.mxu0
    %4547 = vdwg.mxu0
    %4548 = vmatprep.subr.bf16.mxu0 0
    %4549 = vmatpush1.bf16.msra.mxu0 %v4393
    %4550 = vmatprep.subr.bf16.mxu0 0
    %4551 = vmatpush1.bf16.msra.mxu0 %v4392
    %4552 = vmatprep.subr.bf16.mxu0 0
    %4553 = vmatpush1.bf16.msra.mxu0 %v4391
    %4554 = vmatprep.subr.bf16.mxu0 0
    %4555 = vmatpush1.bf16.msra.mxu0 %v4390
    %4556 = vmatprep.subr.bf16.mxu0 0
    %4557 = vmatpush1.bf16.msra.mxu0 %v4389
    %4558 = vmatprep.subr.bf16.mxu0 0
    %4559 = vmatpush1.bf16.msra.mxu0 %v4388
    %4560 = vmatprep.subr.bf16.mxu0 0
    %4561 = vmatpush1.bf16.msra.mxu0 %v4387
    %4562 = vmatprep.subr.bf16.mxu0 0
    %4563 = vmatpush1.bf16.msra.mxu0 %v4386
    %4564 = vmatprep.subr.bf16.mxu0 0
    %4565 = vmatpush2.bf16.msra.mxu0 %v4401
    %4566 = vmatprep.subr.bf16.mxu0 0
    %4567 = vmatpush2.bf16.msra.mxu0 %v4400
    %4568 = vmatprep.subr.bf16.mxu0 0
    %4569 = vmatpush2.bf16.msra.mxu0 %v4399
    %4570 = vmatprep.subr.bf16.mxu0 0
    %4571 = vmatpush2.bf16.msra.mxu0 %v4398
    %4572 = vmatprep.subr.bf16.mxu0 0
    %4573 = vmatpush2.bf16.msra.mxu0 %v4397
    %4574 = vmatprep.subr.bf16.mxu0 0
    %4575 = vmatpush2.bf16.msra.mxu0 %v4396
    %4576 = vmatprep.subr.bf16.mxu0 0
    %4577 = vmatpush2.bf16.msra.mxu0 %v4395
    %4578 = vmatprep.subr.bf16.mxu0 0
    %4579 = vmatpush2.bf16.msra.mxu0 %v4394
    %4580 = vmatprep.mubr.bf16.mxu0 %v4155
    %4581 = vmatmul.mubr.bf16.gmra.mxu0 %v4154
    %v4582 = vpop.f32.mrf.mxu0
    %v4583 = vadd.f32 %v4534, %v4582
    %v4584 = vpop.f32.mrf.mxu0
    %v4585 = vpop.f32.mrf.mxu0
    %v4586 = vadd.f32 %v4537, %v4585
    %v4587 = vpop.f32.mrf.mxu0
    %4588 = vmatprep.mubr.bf16.mxu0 %v4161
    %4589 = vmatmul.mubr.bf16.gmra.mxu0 %v4160
    %v4590 = vpop.f32.mrf.mxu0
    %v4591 = vadd.f32 %v4542, %v4590
    %v4592 = vpop.f32.mrf.mxu0
    %v4593 = vpop.f32.mrf.mxu0
    %v4594 = vadd.f32 %v4545, %v4593
    %v4595 = vpop.f32.mrf.mxu0
    %4596 = vdwg.mxu0
    %v4597 = vmax.f32 %v4583, 0.0
    %v4598 = vmax.f32 %v4586, 0.0
    %v4599 = vmax.f32 %v4591, 0.0
    %v4600 = vmax.f32 %v4594, 0.0
    %v4601 = vld [vmem:[#allocation9 + $0x1200] sm:$0xf]
    %v4602 = vld [vmem:[#allocation9 + $0x1208] sm:$0xf]
    %v4603 = vld [vmem:[#allocation9 + $0x1210] sm:$0xf]
    %v4604 = vld [vmem:[#allocation9 + $0x1218] sm:$0xf]
    %v4605 = vld [vmem:[#allocation9 + $0x1220] sm:$0xf]
    %v4606 = vld [vmem:[#allocation9 + $0x1228] sm:$0xf]
    %v4607 = vld [vmem:[#allocation9 + $0x1230] sm:$0xf]
    %v4608 = vld [vmem:[#allocation9 + $0x1238] sm:$0xf]
    %v4609 = vld [vmem:[#allocation9 + $0x1240] sm:$0xf]
    %v4610 = vld [vmem:[#allocation9 + $0x1248] sm:$0xf]
    %v4611 = vld [vmem:[#allocation9 + $0x1250] sm:$0xf]
    %v4612 = vld [vmem:[#allocation9 + $0x1258] sm:$0xf]
    %v4613 = vld [vmem:[#allocation9 + $0x1260] sm:$0xf]
    %v4614 = vld [vmem:[#allocation9 + $0x1268] sm:$0xf]
    %v4615 = vld [vmem:[#allocation9 + $0x1270] sm:$0xf]
    %v4616 = vld [vmem:[#allocation9 + $0x1278] sm:$0xf]
    %v4617 = vld [vmem:[#allocation9 + $0x1280] sm:$0xf]
    %v4618 = vld [vmem:[#allocation9 + $0x1288] sm:$0xf]
    %v4619 = vld [vmem:[#allocation9 + $0x1290] sm:$0xf]
    %v4620 = vld [vmem:[#allocation9 + $0x1298] sm:$0xf]
    %v4621 = vld [vmem:[#allocation9 + $0x12a0] sm:$0xf]
    %v4622 = vld [vmem:[#allocation9 + $0x12a8] sm:$0xf]
    %v4623 = vld [vmem:[#allocation9 + $0x12b0] sm:$0xf]
    %v4624 = vld [vmem:[#allocation9 + $0x12b8] sm:$0xf]
    %v4625 = vld [vmem:[#allocation9 + $0x12c0] sm:$0xf]
    %v4626 = vld [vmem:[#allocation9 + $0x12c8] sm:$0xf]
    %v4627 = vld [vmem:[#allocation9 + $0x12d0] sm:$0xf]
    %v4628 = vld [vmem:[#allocation9 + $0x12d8] sm:$0xf]
    %v4629 = vld [vmem:[#allocation9 + $0x12e0] sm:$0xf]
    %v4630 = vld [vmem:[#allocation9 + $0x12e8] sm:$0xf]
    %v4631 = vld [vmem:[#allocation9 + $0x12f0] sm:$0xf]
    %v4632 = vld [vmem:[#allocation9 + $0x12f8] sm:$0xf]
    %v4633 = vld [vmem:[#allocation9 + $0x1300] sm:$0xf]
    %v4634 = vld [vmem:[#allocation9 + $0x1308] sm:$0xf]
    %v4635 = vld [vmem:[#allocation9 + $0x1310] sm:$0xf]
    %v4636 = vld [vmem:[#allocation9 + $0x1318] sm:$0xf]
    %v4637 = vld [vmem:[#allocation9 + $0x1320] sm:$0xf]
    %v4638 = vld [vmem:[#allocation9 + $0x1328] sm:$0xf]
    %v4639 = vld [vmem:[#allocation9 + $0x1330] sm:$0xf]
    %v4640 = vld [vmem:[#allocation9 + $0x1338] sm:$0xf]
    %v4641 = vld [vmem:[#allocation9 + $0x1340] sm:$0xf]
    %v4642 = vld [vmem:[#allocation9 + $0x1348] sm:$0xf]
    %v4643 = vld [vmem:[#allocation9 + $0x1350] sm:$0xf]
    %v4644 = vld [vmem:[#allocation9 + $0x1358] sm:$0xf]
    %v4645 = vld [vmem:[#allocation9 + $0x1360] sm:$0xf]
    %v4646 = vld [vmem:[#allocation9 + $0x1368] sm:$0xf]
    %v4647 = vld [vmem:[#allocation9 + $0x1370] sm:$0xf]
    %v4648 = vld [vmem:[#allocation9 + $0x1378] sm:$0xf]
    %v4649 = vld [vmem:[#allocation10 + $0x5] ss:$0 sm:$0xff]
    %v4654 = vrot.slane %v4597, 7
    %v4655 = vrot.slane %v4598, 7
    %v4656 = vsel %vm1411, %v4654, %v4655
    %v4657 = vrot.slane %v4599, 7
    %v4658 = vsel %vm1411, %v4655, %v4657
    %v4659 = vrot.slane %v4600, 7
    %v4660 = vsel %vm1411, %v4657, %v4659
    %v4665 = vsel %vm1411, 0.0, %v4654
    %v4666 = vrot.slane %v4597, 1
    %v4667 = vrot.slane %v4598, 1
    %v4668 = vsel %vm1436, %v4666, %v4667
    %v4669 = vrot.slane %v4599, 1
    %v4670 = vsel %vm1436, %v4667, %v4669
    %v4671 = vrot.slane %v4600, 1
    %v4672 = vsel %vm1436, %v4669, %v4671
    %v4677 = vsel %vm1436, %v4671, 0.0
    %v4678 = vsel %vm4118, 0.0, %v4665
    %v4679 = vsel %vm4119, 0.0, %v4656
    %v4680 = vsel %vm4120, 0.0, %v4658
    %v4681 = vsel %vm4121, 0.0, %v4660
    %v4682 = vsel %vm4138, 0.0, %v4668
    %v4683 = vsel %vm4139, 0.0, %v4670
    %v4684 = vsel %vm4140, 0.0, %v4672
    %v4685 = vsel %vm4141, 0.0, %v4677
    %v4686 = vpack.c.bf16 %v4679, %v4678
    %v4687 = vpack.c.bf16 %v4598, %v4597
    %v4688 = vpack.c.bf16 %v4683, %v4682
    %v4689 = vpack.c.bf16 %v4681, %v4680
    %v4690 = vpack.c.bf16 %v4600, %v4599
    %v4691 = vpack.c.bf16 %v4685, %v4684
    %v4740 = vunpack.c.l.b16 %v4601
    %v4741 = vunpack.c.l.b16 %v4602
    %v4742 = vunpack.c.l.b16 %v4603
    %v4743 = vunpack.c.l.b16 %v4604
    %v4744 = vunpack.c.l.b16 %v4605
    %v4745 = vunpack.c.l.b16 %v4606
    %v4746 = vunpack.c.l.b16 %v4607
    %v4747 = vunpack.c.l.b16 %v4608
    %v4748 = vunpack.c.l.b16 %v4609
    %v4749 = vunpack.c.l.b16 %v4610
    %v4750 = vunpack.c.l.b16 %v4611
    %v4751 = vunpack.c.l.b16 %v4612
    %v4752 = vunpack.c.l.b16 %v4613
    %v4753 = vunpack.c.l.b16 %v4614
    %v4754 = vunpack.c.l.b16 %v4615
    %v4755 = vunpack.c.l.b16 %v4616
    %v4756 = vunpack.c.l.b16 %v4617
    %v4757 = vunpack.c.l.b16 %v4618
    %v4758 = vunpack.c.l.b16 %v4619
    %v4759 = vunpack.c.l.b16 %v4620
    %v4760 = vunpack.c.l.b16 %v4621
    %v4761 = vunpack.c.l.b16 %v4622
    %v4762 = vunpack.c.l.b16 %v4623
    %v4763 = vunpack.c.l.b16 %v4624
    %v4764 = vunpack.c.l.b16 %v4625
    %v4765 = vunpack.c.l.b16 %v4626
    %v4766 = vunpack.c.l.b16 %v4627
    %v4767 = vunpack.c.l.b16 %v4628
    %v4768 = vunpack.c.l.b16 %v4629
    %v4769 = vunpack.c.l.b16 %v4630
    %v4770 = vunpack.c.l.b16 %v4631
    %v4771 = vunpack.c.l.b16 %v4632
    %v4772 = vunpack.c.l.b16 %v4633
    %v4773 = vunpack.c.l.b16 %v4634
    %v4774 = vunpack.c.l.b16 %v4635
    %v4775 = vunpack.c.l.b16 %v4636
    %v4776 = vunpack.c.l.b16 %v4637
    %v4777 = vunpack.c.l.b16 %v4638
    %v4778 = vunpack.c.l.b16 %v4639
    %v4779 = vunpack.c.l.b16 %v4640
    %v4780 = vunpack.c.l.b16 %v4641
    %v4781 = vunpack.c.l.b16 %v4642
    %v4782 = vunpack.c.l.b16 %v4643
    %v4783 = vunpack.c.l.b16 %v4644
    %v4784 = vunpack.c.l.b16 %v4645
    %v4785 = vunpack.c.l.b16 %v4646
    %v4786 = vunpack.c.l.b16 %v4647
    %v4787 = vunpack.c.l.b16 %v4648
    %v4788 = vpack.c.b16 %v4741, %v4740
    %v4789 = vpack.c.b16 %v4743, %v4742
    %v4790 = vpack.c.b16 %v4745, %v4744
    %v4791 = vpack.c.b16 %v4747, %v4746
    %v4792 = vpack.c.b16 %v4749, %v4748
    %v4793 = vpack.c.b16 %v4751, %v4750
    %v4794 = vpack.c.b16 %v4753, %v4752
    %v4795 = vpack.c.b16 %v4755, %v4754
    %v4796 = vpack.c.b16 %v4757, %v4756
    %v4797 = vpack.c.b16 %v4759, %v4758
    %v4798 = vpack.c.b16 %v4761, %v4760
    %v4799 = vpack.c.b16 %v4763, %v4762
    %v4800 = vpack.c.b16 %v4765, %v4764
    %v4801 = vpack.c.b16 %v4767, %v4766
    %v4802 = vpack.c.b16 %v4769, %v4768
    %v4803 = vpack.c.b16 %v4771, %v4770
    %v4804 = vpack.c.b16 %v4773, %v4772
    %v4805 = vpack.c.b16 %v4775, %v4774
    %v4806 = vpack.c.b16 %v4777, %v4776
    %v4807 = vpack.c.b16 %v4779, %v4778
    %v4808 = vpack.c.b16 %v4781, %v4780
    %v4809 = vpack.c.b16 %v4783, %v4782
    %v4810 = vpack.c.b16 %v4785, %v4784
    %v4811 = vpack.c.b16 %v4787, %v4786
    %4836 = vmatprep.subr.bf16.mxu0 0
    %4837 = vmatpush1.bf16.msra.mxu0 %v4795
    %4838 = vmatprep.subr.bf16.mxu0 0
    %4839 = vmatpush1.bf16.msra.mxu0 %v4794
    %4840 = vmatprep.subr.bf16.mxu0 0
    %4841 = vmatpush1.bf16.msra.mxu0 %v4793
    %4842 = vmatprep.subr.bf16.mxu0 0
    %4843 = vmatpush1.bf16.msra.mxu0 %v4792
    %4844 = vmatprep.subr.bf16.mxu0 0
    %4845 = vmatpush1.bf16.msra.mxu0 %v4791
    %4846 = vmatprep.subr.bf16.mxu0 0
    %4847 = vmatpush1.bf16.msra.mxu0 %v4790
    %4848 = vmatprep.subr.bf16.mxu0 0
    %4849 = vmatpush1.bf16.msra.mxu0 %v4789
    %4850 = vmatprep.subr.bf16.mxu0 0
    %4851 = vmatpush1.bf16.msra.mxu0 %v4788
    %4852 = vmatprep.subr.bf16.mxu0 0
    %4853 = vmatpush2.bf16.msra.mxu0 %v4803
    %4854 = vmatprep.subr.bf16.mxu0 0
    %4855 = vmatpush2.bf16.msra.mxu0 %v4802
    %4856 = vmatprep.subr.bf16.mxu0 0
    %4857 = vmatpush2.bf16.msra.mxu0 %v4801
    %4858 = vmatprep.subr.bf16.mxu0 0
    %4859 = vmatpush2.bf16.msra.mxu0 %v4800
    %4860 = vmatprep.subr.bf16.mxu0 0
    %4861 = vmatpush2.bf16.msra.mxu0 %v4799
    %4862 = vmatprep.subr.bf16.mxu0 0
    %4863 = vmatpush2.bf16.msra.mxu0 %v4798
    %4864 = vmatprep.subr.bf16.mxu0 0
    %4865 = vmatpush2.bf16.msra.mxu0 %v4797
    %4866 = vmatprep.subr.bf16.mxu0 0
    %4867 = vmatpush2.bf16.msra.mxu0 %v4796
    %4868 = vmatprep.mubr.bf16.mxu0 %v4687
    %4869 = vmatmul.mubr.bf16.gmra.mxu0 %v4686
    %v4870 = vpop.f32.mrf.mxu0
    %v4871 = vadd.f32 %v4649, %v4870
    %v4872 = vpop.f32.mrf.mxu0
    %v4873 = vpop.f32.mrf.mxu0
    %v4874 = vadd.f32 %v4649, %v4873
    %v4875 = vpop.f32.mrf.mxu0
    %4876 = vmatprep.mubr.bf16.mxu0 %v4690
    %4877 = vmatmul.mubr.bf16.gmra.mxu0 %v4689
    %v4878 = vpop.f32.mrf.mxu0
    %v4879 = vadd.f32 %v4649, %v4878
    %v4880 = vpop.f32.mrf.mxu0
    %v4881 = vpop.f32.mrf.mxu0
    %v4882 = vadd.f32 %v4649, %v4881
    %v4883 = vpop.f32.mrf.mxu0
    %4884 = vdwg.mxu0
    %4885 = vmatprep.subr.bf16.mxu0 0
    %4886 = vmatpush1.bf16.msra.mxu0 %v4811
    %4887 = vmatprep.subr.bf16.mxu0 0
    %4888 = vmatpush1.bf16.msra.mxu0 %v4810
    %4889 = vmatprep.subr.bf16.mxu0 0
    %4890 = vmatpush1.bf16.msra.mxu0 %v4809
    %4891 = vmatprep.subr.bf16.mxu0 0
    %4892 = vmatpush1.bf16.msra.mxu0 %v4808
    %4893 = vmatprep.subr.bf16.mxu0 0
    %4894 = vmatpush1.bf16.msra.mxu0 %v4807
    %4895 = vmatprep.subr.bf16.mxu0 0
    %4896 = vmatpush1.bf16.msra.mxu0 %v4806
    %4897 = vmatprep.subr.bf16.mxu0 0
    %4898 = vmatpush1.bf16.msra.mxu0 %v4805
    %4899 = vmatprep.subr.bf16.mxu0 0
    %4900 = vmatpush1.bf16.msra.mxu0 %v4804
    %4901 = vmatprep.subr.bf16.mxu0 0
    %4902 = vmatpush2.bf16.msra.mxu0 0
    %4903 = vmatprep.subr.bf16.mxu0 0
    %4904 = vmatpush2.bf16.msra.mxu0 0
    %4905 = vmatprep.subr.bf16.mxu0 0
    %4906 = vmatpush2.bf16.msra.mxu0 0
    %4907 = vmatprep.subr.bf16.mxu0 0
    %4908 = vmatpush2.bf16.msra.mxu0 0
    %4909 = vmatprep.subr.bf16.mxu0 0
    %4910 = vmatpush2.bf16.msra.mxu0 0
    %4911 = vmatprep.subr.bf16.mxu0 0
    %4912 = vmatpush2.bf16.msra.mxu0 0
    %4913 = vmatprep.subr.bf16.mxu0 0
    %4914 = vmatpush2.bf16.msra.mxu0 0
    %4915 = vmatprep.subr.bf16.mxu0 0
    %4916 = vmatpush2.bf16.msra.mxu0 0
    %4917 = vmatprep.mubr.bf16.mxu0 0
    %4918 = vmatmul.mubr.bf16.gmra.mxu0 %v4688
    %v4919 = vpop.f32.mrf.mxu0
    %v4920 = vadd.f32 %v4871, %v4919
    %v4921 = vpop.f32.mrf.mxu0
    %v4922 = vpop.f32.mrf.mxu0
    %v4923 = vadd.f32 %v4874, %v4922
    %v4924 = vpop.f32.mrf.mxu0
    %4925 = vmatprep.mubr.bf16.mxu0 0
    %4926 = vmatmul.mubr.bf16.gmra.mxu0 %v4691
    %v4927 = vpop.f32.mrf.mxu0
    %v4928 = vadd.f32 %v4879, %v4927
    %v4929 = vpop.f32.mrf.mxu0
    %v4930 = vpop.f32.mrf.mxu0
    %v4931 = vadd.f32 %v4882, %v4930
    %v4932 = vpop.f32.mrf.mxu0
    %4933 = vdwg.mxu0
    %v4934 = vmax.f32 %v4920, 0.0
    %v4935 = vmax.f32 %v4923, 0.0
    %v4936 = vmax.f32 %v4928, 0.0
    %v4937 = vmax.f32 %v4931, 0.0
    %v4938 = vld [vmem:[#allocation9 + $0x1380] sm:$0xf]
    %v4939 = vld [vmem:[#allocation9 + $0x1388] sm:$0xf]
    %v4940 = vld [vmem:[#allocation9 + $0x1390] sm:$0xf]
    %v4941 = vld [vmem:[#allocation9 + $0x1398] sm:$0xf]
    %v4942 = vld [vmem:[#allocation9 + $0x13a0] sm:$0xf]
    %v4943 = vld [vmem:[#allocation9 + $0x13a8] sm:$0xf]
    %v4944 = vld [vmem:[#allocation9 + $0x13b0] sm:$0xf]
    %v4945 = vld [vmem:[#allocation9 + $0x13b8] sm:$0xf]
    %v4946 = vld [vmem:[#allocation9 + $0x13c0] sm:$0xf]
    %v4947 = vld [vmem:[#allocation9 + $0x13c8] sm:$0xf]
    %v4948 = vld [vmem:[#allocation9 + $0x13d0] sm:$0xf]
    %v4949 = vld [vmem:[#allocation9 + $0x13d8] sm:$0xf]
    %v4950 = vld [vmem:[#allocation9 + $0x13e0] sm:$0xf]
    %v4951 = vld [vmem:[#allocation9 + $0x13e8] sm:$0xf]
    %v4952 = vld [vmem:[#allocation9 + $0x13f0] sm:$0xf]
    %v4953 = vld [vmem:[#allocation9 + $0x13f8] sm:$0xf]
    %v4954 = vld [vmem:[#allocation9 + $0x1400] sm:$0xf]
    %v4955 = vld [vmem:[#allocation9 + $0x1408] sm:$0xf]
    %v4956 = vld [vmem:[#allocation9 + $0x1410] sm:$0xf]
    %v4957 = vld [vmem:[#allocation9 + $0x1418] sm:$0xf]
    %v4958 = vld [vmem:[#allocation9 + $0x1420] sm:$0xf]
    %v4959 = vld [vmem:[#allocation9 + $0x1428] sm:$0xf]
    %v4960 = vld [vmem:[#allocation9 + $0x1430] sm:$0xf]
    %v4961 = vld [vmem:[#allocation9 + $0x1438] sm:$0xf]
    %v4962 = vld [vmem:[#allocation9 + $0x1440] sm:$0xf]
    %v4963 = vld [vmem:[#allocation9 + $0x1448] sm:$0xf]
    %v4964 = vld [vmem:[#allocation9 + $0x1450] sm:$0xf]
    %v4965 = vld [vmem:[#allocation9 + $0x1458] sm:$0xf]
    %v4966 = vld [vmem:[#allocation9 + $0x1460] sm:$0xf]
    %v4967 = vld [vmem:[#allocation9 + $0x1468] sm:$0xf]
    %v4968 = vld [vmem:[#allocation9 + $0x1470] sm:$0xf]
    %v4969 = vld [vmem:[#allocation9 + $0x1478] sm:$0xf]
    %v4970 = vld [vmem:[#allocation10 + $0x6] ss:$0 sm:$0xff]
    %v4971 = vadd.s32 %v238, 32
    %v4972 = vadd.s32 %v238, 40
    %v4973 = vadd.s32 %v238, 48
    %v4974 = vadd.s32 %v238, 56
    %vm4975 = vcmp.eq.s32.totalorder %v4971, %v242
    %vm4976 = vcmp.eq.s32.totalorder %v4972, %v242
    %vm4977 = vcmp.eq.s32.totalorder %v4973, %v242
    %vm4978 = vcmp.eq.s32.totalorder %v4974, %v242
    %vm4979 = vcmp.eq.s32.totalorder %v4971, %v245
    %vm4980 = vcmp.eq.s32.totalorder %v4972, %v245
    %vm4981 = vcmp.eq.s32.totalorder %v4973, %v245
    %vm4982 = vcmp.eq.s32.totalorder %v4974, %v245
    %vm4983 = vmor %vm4975, %vm4979
    %vm4984 = vmor %vm4976, %vm4980
    %vm4985 = vmor %vm4977, %vm4981
    %vm4986 = vmor %vm4978, %vm4982
    %v4987 = vsel %vm4983, 1, 0
    %v4988 = vsel %vm4984, 1, 0
    %v4989 = vsel %vm4985, 1, 0
    %v4990 = vsel %vm4986, 1, 0
    %v4991 = vcvt.s32.f32 %v4987
    %v4992 = vcvt.s32.f32 %v4988
    %v4993 = vcvt.s32.f32 %v4989
    %v4994 = vcvt.s32.f32 %v4990
    %v4995 = vpack.c.bf16 %v4992, %v4991
    %v4996 = vpack.c.bf16 %v4994, %v4993
    %v4997 = vpack.c.bf16 %v4935, %v4934
    %v4998 = vpack.c.bf16 %v4937, %v4936
    %vm4999 = vcmask 261120
    %v5000 = vsel %vm4999, %v254, 0
    %v5002 = vsel %vm4999, %v3577, 0
    %v5005 = vsel %vm4999, %v4995, 0
    %v5008 = vsel %vm4999, %v4996, 0
    %5010 = vmatprep.subr.bf16.mxu0 0
    %5011 = vmatpush1.bf16.msra.mxu0 0
    %5012 = vmatprep.subr.bf16.mxu0 0
    %5013 = vmatpush1.bf16.msra.mxu0 0
    %5014 = vmatprep.subr.bf16.mxu0 0
    %5015 = vmatpush1.bf16.msra.mxu0 0
    %5016 = vmatprep.subr.bf16.mxu0 0
    %5017 = vmatpush1.bf16.msra.mxu0 0
    %5018 = vmatprep.subr.bf16.mxu0 0
    %5019 = vmatpush1.bf16.msra.mxu0 0
    %5020 = vmatprep.subr.bf16.mxu0 0
    %5021 = vmatpush1.bf16.msra.mxu0 0
    %5022 = vmatprep.subr.bf16.mxu0 0
    %5023 = vmatpush1.bf16.msra.mxu0 %v4998
    %5024 = vmatprep.subr.bf16.mxu0 0
    %5025 = vmatpush1.bf16.msra.mxu0 %v4997
    %5026 = vmatprep.subr.bf16.mxu0 0
    %5027 = vmatpush2.bf16.msra.mxu0 0
    %5028 = vmatprep.subr.bf16.mxu0 0
    %5029 = vmatpush2.bf16.msra.mxu0 0
    %5030 = vmatprep.subr.bf16.mxu0 0
    %5031 = vmatpush2.bf16.msra.mxu0 0
    %5032 = vmatprep.subr.bf16.mxu0 0
    %5033 = vmatpush2.bf16.msra.mxu0 0
    %5034 = vmatprep.subr.bf16.mxu0 0
    %5035 = vmatpush2.bf16.msra.mxu0 0
    %5036 = vmatprep.subr.bf16.mxu0 0
    %5037 = vmatpush2.bf16.msra.mxu0 0
    %5038 = vmatprep.subr.bf16.mxu0 0
    %5039 = vmatpush2.bf16.msra.mxu0 0
    %5040 = vmatprep.subr.bf16.mxu0 0
    %5041 = vmatpush2.bf16.msra.mxu0 0
    %5042 = vmatprep.mubr.bf16.mxu0 0
    %5043 = vmatmul.mubr.bf16.gmra.mxu0 %v5000
    %v5044 = vpop.f32.mrf.mxu0
    %v5045 = vadd.f32 0.0, %v5044
    %v5046 = vpop.f32.mrf.mxu0
    %v5047 = vpop.f32.mrf.mxu0
    %v5048 = vadd.f32 0.0, %v5047
    %v5049 = vpop.f32.mrf.mxu0
    %5050 = vmatprep.mubr.bf16.mxu0 0
    %5051 = vmatmul.mubr.bf16.gmra.mxu0 %v5002
    %v5052 = vpop.f32.mrf.mxu0
    %v5053 = vadd.f32 0.0, %v5052
    %v5054 = vpop.f32.mrf.mxu0
    %v5055 = vpop.f32.mrf.mxu0
    %v5056 = vadd.f32 0.0, %v5055
    %v5057 = vpop.f32.mrf.mxu0
    %5058 = vmatprep.mubr.bf16.mxu0 0
    %5059 = vmatmul.mubr.bf16.gmra.mxu0 %v5005
    %v5060 = vpop.f32.mrf.mxu0
    %v5061 = vadd.f32 0.0, %v5060
    %v5062 = vpop.f32.mrf.mxu0
    %v5063 = vpop.f32.mrf.mxu0
    %v5064 = vadd.f32 0.0, %v5063
    %v5065 = vpop.f32.mrf.mxu0
    %5066 = vmatprep.mubr.bf16.mxu0 0
    %5067 = vmatmul.mubr.bf16.gmra.mxu0 %v5008
    %v5068 = vpop.f32.mrf.mxu0
    %v5069 = vadd.f32 0.0, %v5068
    %v5070 = vpop.f32.mrf.mxu0
    %v5071 = vpop.f32.mrf.mxu0
    %v5072 = vadd.f32 0.0, %v5071
    %v5073 = vpop.f32.mrf.mxu0
    %5074 = vdwg.mxu0
    %v5075 = vpack.c.bf16 %v5048, %v5045
    %v5076 = vpack.c.bf16 %v5056, %v5053
    %v5077 = vpack.c.bf16 %v5064, %v5061
    %v5078 = vpack.c.bf16 %v5072, %v5069
    %v5095 = vunpack.c.l.b16 %v4938
    %v5096 = vunpack.c.l.b16 %v4939
    %v5097 = vunpack.c.l.b16 %v4940
    %v5098 = vunpack.c.l.b16 %v4941
    %v5099 = vunpack.c.l.b16 %v4942
    %v5100 = vunpack.c.l.b16 %v4943
    %v5101 = vunpack.c.l.b16 %v4944
    %v5102 = vunpack.c.l.b16 %v4945
    %v5103 = vunpack.c.l.b16 %v4946
    %v5104 = vunpack.c.l.b16 %v4947
    %v5105 = vunpack.c.l.b16 %v4948
    %v5106 = vunpack.c.l.b16 %v4949
    %v5107 = vunpack.c.l.b16 %v4950
    %v5108 = vunpack.c.l.b16 %v4951
    %v5109 = vunpack.c.l.b16 %v4952
    %v5110 = vunpack.c.l.b16 %v4953
    %v5111 = vpack.c.b16 %v5096, %v5095
    %v5112 = vpack.c.b16 %v5098, %v5097
    %v5113 = vpack.c.b16 %v5100, %v5099
    %v5114 = vpack.c.b16 %v5102, %v5101
    %v5115 = vpack.c.b16 %v5104, %v5103
    %v5116 = vpack.c.b16 %v5106, %v5105
    %v5117 = vpack.c.b16 %v5108, %v5107
    %v5118 = vpack.c.b16 %v5110, %v5109
    %5127 = vmatprep.subr.bf16.mxu0 0
    %5128 = vmatpush1.bf16.msra.mxu0 %v5118
    %5129 = vmatprep.subr.bf16.mxu0 0
    %5130 = vmatpush1.bf16.msra.mxu0 %v5117
    %5131 = vmatprep.subr.bf16.mxu0 0
    %5132 = vmatpush1.bf16.msra.mxu0 %v5116
    %5133 = vmatprep.subr.bf16.mxu0 0
    %5134 = vmatpush1.bf16.msra.mxu0 %v5115
    %5135 = vmatprep.subr.bf16.mxu0 0
    %5136 = vmatpush1.bf16.msra.mxu0 %v5114
    %5137 = vmatprep.subr.bf16.mxu0 0
    %5138 = vmatpush1.bf16.msra.mxu0 %v5113
    %5139 = vmatprep.subr.bf16.mxu0 0
    %5140 = vmatpush1.bf16.msra.mxu0 %v5112
    %5141 = vmatprep.subr.bf16.mxu0 0
    %5142 = vmatpush1.bf16.msra.mxu0 %v5111
    %5143 = vmatprep.subr.bf16.mxu0 0
    %5144 = vmatpush2.bf16.msra.mxu0 0
    %5145 = vmatprep.subr.bf16.mxu0 0
    %5146 = vmatpush2.bf16.msra.mxu0 0
    %5147 = vmatprep.subr.bf16.mxu0 0
    %5148 = vmatpush2.bf16.msra.mxu0 0
    %5149 = vmatprep.subr.bf16.mxu0 0
    %5150 = vmatpush2.bf16.msra.mxu0 0
    %5151 = vmatprep.subr.bf16.mxu0 0
    %5152 = vmatpush2.bf16.msra.mxu0 0
    %5153 = vmatprep.subr.bf16.mxu0 0
    %5154 = vmatpush2.bf16.msra.mxu0 0
    %5155 = vmatprep.subr.bf16.mxu0 0
    %5156 = vmatpush2.bf16.msra.mxu0 0
    %5157 = vmatprep.subr.bf16.mxu0 0
    %5158 = vmatpush2.bf16.msra.mxu0 0
    %5159 = vmatprep.mubr.bf16.mxu0 0
    %5160 = vmatmul.mubr.bf16.gmra.mxu0 %v5075
    %v5161 = vpop.f32.mrf.mxu0
    %v5162 = vadd.f32 0.0, %v5161
    %v5163 = vpop.f32.mrf.mxu0
    %v5164 = vpop.f32.mrf.mxu0
    %v5165 = vadd.f32 0.0, %v5164
    %v5166 = vpop.f32.mrf.mxu0
    %5167 = vmatprep.mubr.bf16.mxu0 0
    %5168 = vmatmul.mubr.bf16.gmra.mxu0 %v5076
    %v5169 = vpop.f32.mrf.mxu0
    %v5170 = vadd.f32 0.0, %v5169
    %v5171 = vpop.f32.mrf.mxu0
    %v5172 = vpop.f32.mrf.mxu0
    %v5173 = vadd.f32 0.0, %v5172
    %v5174 = vpop.f32.mrf.mxu0
    %5175 = vmatprep.mubr.bf16.mxu0 0
    %5176 = vmatmul.mubr.bf16.gmra.mxu0 %v5077
    %v5177 = vpop.f32.mrf.mxu0
    %v5178 = vadd.f32 0.0, %v5177
    %v5179 = vpop.f32.mrf.mxu0
    %v5180 = vpop.f32.mrf.mxu0
    %v5181 = vadd.f32 0.0, %v5180
    %v5182 = vpop.f32.mrf.mxu0
    %5183 = vmatprep.mubr.bf16.mxu0 0
    %5184 = vmatmul.mubr.bf16.gmra.mxu0 %v5078
    %v5185 = vpop.f32.mrf.mxu0
    %v5186 = vadd.f32 0.0, %v5185
    %v5187 = vpop.f32.mrf.mxu0
    %v5188 = vpop.f32.mrf.mxu0
    %v5189 = vadd.f32 0.0, %v5188
    %v5190 = vpop.f32.mrf.mxu0
    %5191 = vdwg.mxu0
    %v5208 = vunpack.c.l.b16 %v4954
    %v5209 = vunpack.c.l.b16 %v4955
    %v5210 = vunpack.c.l.b16 %v4956
    %v5211 = vunpack.c.l.b16 %v4957
    %v5212 = vunpack.c.l.b16 %v4958
    %v5213 = vunpack.c.l.b16 %v4959
    %v5214 = vunpack.c.l.b16 %v4960
    %v5215 = vunpack.c.l.b16 %v4961
    %v5216 = vunpack.c.l.b16 %v4962
    %v5217 = vunpack.c.l.b16 %v4963
    %v5218 = vunpack.c.l.b16 %v4964
    %v5219 = vunpack.c.l.b16 %v4965
    %v5220 = vunpack.c.l.b16 %v4966
    %v5221 = vunpack.c.l.b16 %v4967
    %v5222 = vunpack.c.l.b16 %v4968
    %v5223 = vunpack.c.l.b16 %v4969
    %v5224 = vpack.c.b16 %v5209, %v5208
    %v5225 = vpack.c.b16 %v5211, %v5210
    %v5226 = vpack.c.b16 %v5213, %v5212
    %v5227 = vpack.c.b16 %v5215, %v5214
    %v5228 = vpack.c.b16 %v5217, %v5216
    %v5229 = vpack.c.b16 %v5219, %v5218
    %v5230 = vpack.c.b16 %v5221, %v5220
    %v5231 = vpack.c.b16 %v5223, %v5222
    %5240 = vmatprep.subr.bf16.mxu0 0
    %5241 = vmatpush1.bf16.msra.mxu0 %v5231
    %5242 = vmatprep.subr.bf16.mxu0 0
    %5243 = vmatpush1.bf16.msra.mxu0 %v5230
    %5244 = vmatprep.subr.bf16.mxu0 0
    %5245 = vmatpush1.bf16.msra.mxu0 %v5229
    %5246 = vmatprep.subr.bf16.mxu0 0
    %5247 = vmatpush1.bf16.msra.mxu0 %v5228
    %5248 = vmatprep.subr.bf16.mxu0 0
    %5249 = vmatpush1.bf16.msra.mxu0 %v5227
    %5250 = vmatprep.subr.bf16.mxu0 0
    %5251 = vmatpush1.bf16.msra.mxu0 %v5226
    %5252 = vmatprep.subr.bf16.mxu0 0
    %5253 = vmatpush1.bf16.msra.mxu0 %v5225
    %5254 = vmatprep.subr.bf16.mxu0 0
    %5255 = vmatpush1.bf16.msra.mxu0 %v5224
    %5256 = vmatprep.subr.bf16.mxu0 0
    %5257 = vmatpush2.bf16.msra.mxu0 0
    %5258 = vmatprep.subr.bf16.mxu0 0
    %5259 = vmatpush2.bf16.msra.mxu0 0
    %5260 = vmatprep.subr.bf16.mxu0 0
    %5261 = vmatpush2.bf16.msra.mxu0 0
    %5262 = vmatprep.subr.bf16.mxu0 0
    %5263 = vmatpush2.bf16.msra.mxu0 0
    %5264 = vmatprep.subr.bf16.mxu0 0
    %5265 = vmatpush2.bf16.msra.mxu0 0
    %5266 = vmatprep.subr.bf16.mxu0 0
    %5267 = vmatpush2.bf16.msra.mxu0 0
    %5268 = vmatprep.subr.bf16.mxu0 0
    %5269 = vmatpush2.bf16.msra.mxu0 0
    %5270 = vmatprep.subr.bf16.mxu0 0
    %5271 = vmatpush2.bf16.msra.mxu0 0
    %5272 = vmatprep.mubr.bf16.mxu0 0
    %5273 = vmatmul.mubr.bf16.gmra.mxu0 %v5075
    %v5274 = vpop.f32.mrf.mxu0
    %v5275 = vadd.f32 0.0, %v5274
    %v5276 = vpop.f32.mrf.mxu0
    %v5277 = vpop.f32.mrf.mxu0
    %v5278 = vadd.f32 0.0, %v5277
    %v5279 = vpop.f32.mrf.mxu0
    %5280 = vmatprep.mubr.bf16.mxu0 0
    %5281 = vmatmul.mubr.bf16.gmra.mxu0 %v5076
    %v5282 = vpop.f32.mrf.mxu0
    %v5283 = vadd.f32 0.0, %v5282
    %v5284 = vpop.f32.mrf.mxu0
    %v5285 = vpop.f32.mrf.mxu0
    %v5286 = vadd.f32 0.0, %v5285
    %v5287 = vpop.f32.mrf.mxu0
    %5288 = vmatprep.mubr.bf16.mxu0 0
    %5289 = vmatmul.mubr.bf16.gmra.mxu0 %v5077
    %v5290 = vpop.f32.mrf.mxu0
    %v5291 = vadd.f32 0.0, %v5290
    %v5292 = vpop.f32.mrf.mxu0
    %v5293 = vpop.f32.mrf.mxu0
    %v5294 = vadd.f32 0.0, %v5293
    %v5295 = vpop.f32.mrf.mxu0
    %5296 = vmatprep.mubr.bf16.mxu0 0
    %5297 = vmatmul.mubr.bf16.gmra.mxu0 %v5078
    %v5298 = vpop.f32.mrf.mxu0
    %v5299 = vadd.f32 0.0, %v5298
    %v5300 = vpop.f32.mrf.mxu0
    %v5301 = vpop.f32.mrf.mxu0
    %v5302 = vadd.f32 0.0, %v5301
    %v5303 = vpop.f32.mrf.mxu0
    %5304 = vdwg.mxu0
    %v5305 = vand.u32 %v4971, 1
    %v5306 = vand.u32 %v4972, 1
    %v5307 = vand.u32 %v4973, 1
    %v5308 = vand.u32 %v4974, 1
    %vm5309 = vcmp.eq.s32.totalorder %v5305, 0
    %vm5310 = vcmp.eq.s32.totalorder %v5306, 0
    %vm5311 = vcmp.eq.s32.totalorder %v5307, 0
    %vm5312 = vcmp.eq.s32.totalorder %v5308, 0
    %v5313 = vsel %vm5309, 1, 0
    %v5314 = vsel %vm5310, 1, 0
    %v5315 = vsel %vm5311, 1, 0
    %v5316 = vsel %vm5312, 1, 0
    %vm5317 = vcmp.eq.s32.totalorder %v5313, 1
    %vm5318 = vcmp.eq.s32.totalorder %v5314, 1
    %vm5319 = vcmp.eq.s32.totalorder %v5315, 1
    %vm5320 = vcmp.eq.s32.totalorder %v5316, 1
    %v5321 = vsel %vm1184, %v5162, %v5275
    %v5322 = vsel %vm1185, %v5165, %v5278
    %v5323 = vsel %vm3939, %v5170, %v5283
    %v5324 = vsel %vm3940, %v5173, %v5286
    %v5325 = vsel %vm5317, %v5178, %v5291
    %v5326 = vsel %vm5318, %v5181, %v5294
    %v5327 = vsel %vm5319, %v5186, %v5299
    %v5328 = vsel %vm5320, %v5189, %v5302
    %v5329 = vadd.f32 %v5321, %v4970
    %v5330 = vadd.f32 %v5322, %v4970
    %v5331 = vadd.f32 %v5323, %v4970
    %v5332 = vadd.f32 %v5324, %v4970
    %v5333 = vadd.f32 %v5325, %v4970
    %v5334 = vadd.f32 %v5326, %v4970
    %v5335 = vadd.f32 %v5327, %v4970
    %v5336 = vadd.f32 %v5328, %v4970
    %v5337 = vld [vmem:[#allocation7] sm:$0xff]
    %v5338 = vld [vmem:[#allocation7 + $0x8] sm:$0xff]
    %v5339 = vld [vmem:[#allocation7 + $0x10] sm:$0xff]
    %v5340 = vld [vmem:[#allocation7 + $0x18] sm:$0xff]
    %v5341 = vld [vmem:[#allocation7 + $0x20] sm:$0xff]
    %v5342 = vld [vmem:[#allocation7 + $0x28] sm:$0xff]
    %v5343 = vld [vmem:[#allocation7 + $0x30] sm:$0xff]
    %v5344 = vld [vmem:[#allocation7 + $0x38] sm:$0xff]
    %5353 = vrot.lane.b32.xlu0 %v5337, 64
    %v5354 = vpop.permute.xlu0 %5353
    %5355 = vrot.lane.b32.xlu0 %v5338, 64
    %v5356 = vpop.permute.xlu0 %5355
    %5357 = vrot.lane.b32.xlu0 %v5339, 64
    %v5358 = vpop.permute.xlu0 %5357
    %5359 = vrot.lane.b32.xlu0 %v5340, 64
    %v5360 = vpop.permute.xlu0 %5359
    %5361 = vrot.lane.b32.xlu0 %v5341, 64
    %v5362 = vpop.permute.xlu0 %5361
    %5363 = vrot.lane.b32.xlu0 %v5342, 64
    %v5364 = vpop.permute.xlu0 %5363
    %5365 = vrot.lane.b32.xlu0 %v5343, 64
    %v5366 = vpop.permute.xlu0 %5365
    %5367 = vrot.lane.b32.xlu0 %v5344, 64
    %v5368 = vpop.permute.xlu0 %5367
    %vm5377 = vcmask 523264
    %v5378 = vsel %vm5377, %v5329, %v5354
    %v5379 = vsel %vm5377, %v5330, %v5356
    %v5380 = vsel %vm5377, %v5331, %v5358
    %v5381 = vsel %vm5377, %v5332, %v5360
    %v5382 = vsel %vm5377, %v5333, %v5362
    %v5383 = vsel %vm5377, %v5334, %v5364
    %v5384 = vsel %vm5377, %v5335, %v5366
    %v5385 = vsel %vm5377, %v5336, %v5368
    %v5386 = vld [vmem:[#allocation9 + $0x1480] sm:$0xf]
    %v5387 = vld [vmem:[#allocation9 + $0x1488] sm:$0xf]
    %v5388 = vld [vmem:[#allocation9 + $0x1490] sm:$0xf]
    %v5389 = vld [vmem:[#allocation9 + $0x1498] sm:$0xf]
    %v5390 = vld [vmem:[#allocation9 + $0x14a0] sm:$0xf]
    %v5391 = vld [vmem:[#allocation9 + $0x14a8] sm:$0xf]
    %v5392 = vld [vmem:[#allocation9 + $0x14b0] sm:$0xf]
    %v5393 = vld [vmem:[#allocation9 + $0x14b8] sm:$0xf]
    %v5394 = vld [vmem:[#allocation9 + $0x14c0] sm:$0xf]
    %v5395 = vld [vmem:[#allocation9 + $0x14c8] sm:$0xf]
    %v5396 = vld [vmem:[#allocation9 + $0x14d0] sm:$0xf]
    %v5397 = vld [vmem:[#allocation9 + $0x14d8] sm:$0xf]
    %v5398 = vld [vmem:[#allocation9 + $0x14e0] sm:$0xf]
    %v5399 = vld [vmem:[#allocation9 + $0x14e8] sm:$0xf]
    %v5400 = vld [vmem:[#allocation9 + $0x14f0] sm:$0xf]
    %v5401 = vld [vmem:[#allocation9 + $0x14f8] sm:$0xf]
    %v5402 = vld [vmem:[#allocation9 + $0x1500] sm:$0xf]
    %v5403 = vld [vmem:[#allocation9 + $0x1508] sm:$0xf]
    %v5404 = vld [vmem:[#allocation9 + $0x1510] sm:$0xf]
    %v5405 = vld [vmem:[#allocation9 + $0x1518] sm:$0xf]
    %v5406 = vld [vmem:[#allocation9 + $0x1520] sm:$0xf]
    %v5407 = vld [vmem:[#allocation9 + $0x1528] sm:$0xf]
    %v5408 = vld [vmem:[#allocation9 + $0x1530] sm:$0xf]
    %v5409 = vld [vmem:[#allocation9 + $0x1538] sm:$0xf]
    %v5410 = vld [vmem:[#allocation9 + $0x1540] sm:$0xf]
    %v5411 = vld [vmem:[#allocation9 + $0x1548] sm:$0xf]
    %v5412 = vld [vmem:[#allocation9 + $0x1550] sm:$0xf]
    %v5413 = vld [vmem:[#allocation9 + $0x1558] sm:$0xf]
    %v5414 = vld [vmem:[#allocation9 + $0x1560] sm:$0xf]
    %v5415 = vld [vmem:[#allocation9 + $0x1568] sm:$0xf]
    %v5416 = vld [vmem:[#allocation9 + $0x1570] sm:$0xf]
    %v5417 = vld [vmem:[#allocation9 + $0x1578] sm:$0xf]
    %v5418 = vld [vmem:[#allocation9 + $0x1580] sm:$0xf]
    %v5419 = vld [vmem:[#allocation9 + $0x1588] sm:$0xf]
    %v5420 = vld [vmem:[#allocation9 + $0x1590] sm:$0xf]
    %v5421 = vld [vmem:[#allocation9 + $0x1598] sm:$0xf]
    %v5422 = vld [vmem:[#allocation9 + $0x15a0] sm:$0xf]
    %v5423 = vld [vmem:[#allocation9 + $0x15a8] sm:$0xf]
    %v5424 = vld [vmem:[#allocation9 + $0x15b0] sm:$0xf]
    %v5425 = vld [vmem:[#allocation9 + $0x15b8] sm:$0xf]
    %v5426 = vld [vmem:[#allocation9 + $0x15c0] sm:$0xf]
    %v5427 = vld [vmem:[#allocation9 + $0x15c8] sm:$0xf]
    %v5428 = vld [vmem:[#allocation9 + $0x15d0] sm:$0xf]
    %v5429 = vld [vmem:[#allocation9 + $0x15d8] sm:$0xf]
    %v5430 = vld [vmem:[#allocation9 + $0x15e0] sm:$0xf]
    %v5431 = vld [vmem:[#allocation9 + $0x15e8] sm:$0xf]
    %v5432 = vld [vmem:[#allocation9 + $0x15f0] sm:$0xf]
    %v5433 = vld [vmem:[#allocation9 + $0x15f8] sm:$0xf]
    %v5434 = vld [vmem:[#allocation10 + $0x7] ss:$0 sm:$0xff]
    %v5443 = vrot.slane %v5378, 7
    %v5444 = vrot.slane %v5379, 7
    %v5445 = vsel %vm1411, %v5443, %v5444
    %v5446 = vrot.slane %v5380, 7
    %v5447 = vsel %vm1411, %v5444, %v5446
    %v5448 = vrot.slane %v5381, 7
    %v5449 = vsel %vm1411, %v5446, %v5448
    %v5450 = vrot.slane %v5382, 7
    %v5451 = vsel %vm1411, %v5448, %v5450
    %v5452 = vrot.slane %v5383, 7
    %v5453 = vsel %vm1411, %v5450, %v5452
    %v5454 = vrot.slane %v5384, 7
    %v5455 = vsel %vm1411, %v5452, %v5454
    %v5456 = vrot.slane %v5385, 7
    %v5457 = vsel %vm1411, %v5454, %v5456
    %v5466 = vsel %vm1411, 0.0, %v5443
    %v5467 = vrot.slane %v5378, 1
    %v5468 = vrot.slane %v5379, 1
    %v5469 = vsel %vm1436, %v5467, %v5468
    %v5470 = vrot.slane %v5380, 1
    %v5471 = vsel %vm1436, %v5468, %v5470
    %v5472 = vrot.slane %v5381, 1
    %v5473 = vsel %vm1436, %v5470, %v5472
    %v5474 = vrot.slane %v5382, 1
    %v5475 = vsel %vm1436, %v5472, %v5474
    %v5476 = vrot.slane %v5383, 1
    %v5477 = vsel %vm1436, %v5474, %v5476
    %v5478 = vrot.slane %v5384, 1
    %v5479 = vsel %vm1436, %v5476, %v5478
    %v5480 = vrot.slane %v5385, 1
    %v5481 = vsel %vm1436, %v5478, %v5480
    %v5490 = vsel %vm1436, %v5480, 0.0
    %v5491 = vand.u32 %v238, 31
    %v5492 = vand.u32 %v239, 31
    %v5493 = vand.u32 %v3565, 31
    %v5494 = vand.u32 %v3566, 31
    %v5495 = vand.u32 %v4971, 31
    %v5496 = vand.u32 %v4972, 31
    %v5497 = vand.u32 %v4973, 31
    %v5498 = vand.u32 %v4974, 31
    %vm5499 = vcmp.eq.s32.totalorder %v5491, 0
    %vm5500 = vcmp.eq.s32.totalorder %v5492, 0
    %vm5501 = vcmp.eq.s32.totalorder %v5493, 0
    %vm5502 = vcmp.eq.s32.totalorder %v5494, 0
    %vm5503 = vcmp.eq.s32.totalorder %v5495, 0
    %vm5504 = vcmp.eq.s32.totalorder %v5496, 0
    %vm5505 = vcmp.eq.s32.totalorder %v5497, 0
    %vm5506 = vcmp.eq.s32.totalorder %v5498, 0
    %v5507 = vsel %vm5499, 1, 0
    %v5508 = vsel %vm5500, 1, 0
    %v5509 = vsel %vm5501, 1, 0
    %v5510 = vsel %vm5502, 1, 0
    %v5511 = vsel %vm5503, 1, 0
    %v5512 = vsel %vm5504, 1, 0
    %v5513 = vsel %vm5505, 1, 0
    %v5514 = vsel %vm5506, 1, 0
    %vm5515 = vcmp.eq.s32.totalorder %v5507, 1
    %vm5516 = vcmp.eq.s32.totalorder %v5508, 1
    %vm5517 = vcmp.eq.s32.totalorder %v5509, 1
    %vm5518 = vcmp.eq.s32.totalorder %v5510, 1
    %vm5519 = vcmp.eq.s32.totalorder %v5511, 1
    %vm5520 = vcmp.eq.s32.totalorder %v5512, 1
    %vm5521 = vcmp.eq.s32.totalorder %v5513, 1
    %vm5522 = vcmp.eq.s32.totalorder %v5514, 1
    %v5523 = vsel %vm5515, 0.0, %v5466
    %v5524 = vsel %vm5516, 0.0, %v5445
    %v5525 = vsel %vm5517, 0.0, %v5447
    %v5526 = vsel %vm5518, 0.0, %v5449
    %v5527 = vsel %vm5519, 0.0, %v5451
    %v5528 = vsel %vm5520, 0.0, %v5453
    %v5529 = vsel %vm5521, 0.0, %v5455
    %v5530 = vsel %vm5522, 0.0, %v5457
    %vm5531 = vcmp.eq.s32.totalorder %v5491, 31
    %vm5532 = vcmp.eq.s32.totalorder %v5492, 31
    %vm5533 = vcmp.eq.s32.totalorder %v5493, 31
    %vm5534 = vcmp.eq.s32.totalorder %v5494, 31
    %vm5535 = vcmp.eq.s32.totalorder %v5495, 31
    %vm5536 = vcmp.eq.s32.totalorder %v5496, 31
    %vm5537 = vcmp.eq.s32.totalorder %v5497, 31
    %vm5538 = vcmp.eq.s32.totalorder %v5498, 31
    %v5539 = vsel %vm5531, 1, 0
    %v5540 = vsel %vm5532, 1, 0
    %v5541 = vsel %vm5533, 1, 0
    %v5542 = vsel %vm5534, 1, 0
    %v5543 = vsel %vm5535, 1, 0
    %v5544 = vsel %vm5536, 1, 0
    %v5545 = vsel %vm5537, 1, 0
    %v5546 = vsel %vm5538, 1, 0
    %vm5547 = vcmp.eq.s32.totalorder %v5539, 1
    %vm5548 = vcmp.eq.s32.totalorder %v5540, 1
    %vm5549 = vcmp.eq.s32.totalorder %v5541, 1
    %vm5550 = vcmp.eq.s32.totalorder %v5542, 1
    %vm5551 = vcmp.eq.s32.totalorder %v5543, 1
    %vm5552 = vcmp.eq.s32.totalorder %v5544, 1
    %vm5553 = vcmp.eq.s32.totalorder %v5545, 1
    %vm5554 = vcmp.eq.s32.totalorder %v5546, 1
    %v5555 = vsel %vm5547, 0.0, %v5469
    %v5556 = vsel %vm5548, 0.0, %v5471
    %v5557 = vsel %vm5549, 0.0, %v5473
    %v5558 = vsel %vm5550, 0.0, %v5475
    %v5559 = vsel %vm5551, 0.0, %v5477
    %v5560 = vsel %vm5552, 0.0, %v5479
    %v5561 = vsel %vm5553, 0.0, %v5481
    %v5562 = vsel %vm5554, 0.0, %v5490
    %v5563 = vpack.c.bf16 %v5524, %v5523
    %v5564 = vpack.c.bf16 %v5379, %v5378
    %v5565 = vpack.c.bf16 %v5556, %v5555
    %v5566 = vpack.c.bf16 %v5526, %v5525
    %v5567 = vpack.c.bf16 %v5381, %v5380
    %v5568 = vpack.c.bf16 %v5558, %v5557
    %v5569 = vpack.c.bf16 %v5528, %v5527
    %v5570 = vpack.c.bf16 %v5383, %v5382
    %v5571 = vpack.c.bf16 %v5560, %v5559
    %v5572 = vpack.c.bf16 %v5530, %v5529
    %v5573 = vpack.c.bf16 %v5385, %v5384
    %v5574 = vpack.c.bf16 %v5562, %v5561
    %v5623 = vunpack.c.l.b16 %v5386
    %v5624 = vunpack.c.l.b16 %v5387
    %v5625 = vunpack.c.l.b16 %v5388
    %v5626 = vunpack.c.l.b16 %v5389
    %v5627 = vunpack.c.l.b16 %v5390
    %v5628 = vunpack.c.l.b16 %v5391
    %v5629 = vunpack.c.l.b16 %v5392
    %v5630 = vunpack.c.l.b16 %v5393
    %v5631 = vunpack.c.l.b16 %v5394
    %v5632 = vunpack.c.l.b16 %v5395
    %v5633 = vunpack.c.l.b16 %v5396
    %v5634 = vunpack.c.l.b16 %v5397
    %v5635 = vunpack.c.l.b16 %v5398
    %v5636 = vunpack.c.l.b16 %v5399
    %v5637 = vunpack.c.l.b16 %v5400
    %v5638 = vunpack.c.l.b16 %v5401
    %v5639 = vunpack.c.l.b16 %v5402
    %v5640 = vunpack.c.l.b16 %v5403
    %v5641 = vunpack.c.l.b16 %v5404
    %v5642 = vunpack.c.l.b16 %v5405
    %v5643 = vunpack.c.l.b16 %v5406
    %v5644 = vunpack.c.l.b16 %v5407
    %v5645 = vunpack.c.l.b16 %v5408
    %v5646 = vunpack.c.l.b16 %v5409
    %v5647 = vunpack.c.l.b16 %v5410
    %v5648 = vunpack.c.l.b16 %v5411
    %v5649 = vunpack.c.l.b16 %v5412
    %v5650 = vunpack.c.l.b16 %v5413
    %v5651 = vunpack.c.l.b16 %v5414
    %v5652 = vunpack.c.l.b16 %v5415
    %v5653 = vunpack.c.l.b16 %v5416
    %v5654 = vunpack.c.l.b16 %v5417
    %v5655 = vunpack.c.l.b16 %v5418
    %v5656 = vunpack.c.l.b16 %v5419
    %v5657 = vunpack.c.l.b16 %v5420
    %v5658 = vunpack.c.l.b16 %v5421
    %v5659 = vunpack.c.l.b16 %v5422
    %v5660 = vunpack.c.l.b16 %v5423
    %v5661 = vunpack.c.l.b16 %v5424
    %v5662 = vunpack.c.l.b16 %v5425
    %v5663 = vunpack.c.l.b16 %v5426
    %v5664 = vunpack.c.l.b16 %v5427
    %v5665 = vunpack.c.l.b16 %v5428
    %v5666 = vunpack.c.l.b16 %v5429
    %v5667 = vunpack.c.l.b16 %v5430
    %v5668 = vunpack.c.l.b16 %v5431
    %v5669 = vunpack.c.l.b16 %v5432
    %v5670 = vunpack.c.l.b16 %v5433
    %v5671 = vpack.c.b16 %v5624, %v5623
    %v5672 = vpack.c.b16 %v5626, %v5625
    %v5673 = vpack.c.b16 %v5628, %v5627
    %v5674 = vpack.c.b16 %v5630, %v5629
    %v5675 = vpack.c.b16 %v5632, %v5631
    %v5676 = vpack.c.b16 %v5634, %v5633
    %v5677 = vpack.c.b16 %v5636, %v5635
    %v5678 = vpack.c.b16 %v5638, %v5637
    %v5679 = vpack.c.b16 %v5640, %v5639
    %v5680 = vpack.c.b16 %v5642, %v5641
    %v5681 = vpack.c.b16 %v5644, %v5643
    %v5682 = vpack.c.b16 %v5646, %v5645
    %v5683 = vpack.c.b16 %v5648, %v5647
    %v5684 = vpack.c.b16 %v5650, %v5649
    %v5685 = vpack.c.b16 %v5652, %v5651
    %v5686 = vpack.c.b16 %v5654, %v5653
    %v5687 = vpack.c.b16 %v5656, %v5655
    %v5688 = vpack.c.b16 %v5658, %v5657
    %v5689 = vpack.c.b16 %v5660, %v5659
    %v5690 = vpack.c.b16 %v5662, %v5661
    %v5691 = vpack.c.b16 %v5664, %v5663
    %v5692 = vpack.c.b16 %v5666, %v5665
    %v5693 = vpack.c.b16 %v5668, %v5667
    %v5694 = vpack.c.b16 %v5670, %v5669
    %5719 = vmatprep.subr.bf16.mxu0 0
    %5720 = vmatpush1.bf16.msra.mxu0 %v5678
    %5721 = vmatprep.subr.bf16.mxu0 0
    %5722 = vmatpush1.bf16.msra.mxu0 %v5677
    %5723 = vmatprep.subr.bf16.mxu0 0
    %5724 = vmatpush1.bf16.msra.mxu0 %v5676
    %5725 = vmatprep.subr.bf16.mxu0 0
    %5726 = vmatpush1.bf16.msra.mxu0 %v5675
    %5727 = vmatprep.subr.bf16.mxu0 0
    %5728 = vmatpush1.bf16.msra.mxu0 %v5674
    %5729 = vmatprep.subr.bf16.mxu0 0
    %5730 = vmatpush1.bf16.msra.mxu0 %v5673
    %5731 = vmatprep.subr.bf16.mxu0 0
    %5732 = vmatpush1.bf16.msra.mxu0 %v5672
    %5733 = vmatprep.subr.bf16.mxu0 0
    %5734 = vmatpush1.bf16.msra.mxu0 %v5671
    %5735 = vmatprep.subr.bf16.mxu0 0
    %5736 = vmatpush2.bf16.msra.mxu0 %v5686
    %5737 = vmatprep.subr.bf16.mxu0 0
    %5738 = vmatpush2.bf16.msra.mxu0 %v5685
    %5739 = vmatprep.subr.bf16.mxu0 0
    %5740 = vmatpush2.bf16.msra.mxu0 %v5684
    %5741 = vmatprep.subr.bf16.mxu0 0
    %5742 = vmatpush2.bf16.msra.mxu0 %v5683
    %5743 = vmatprep.subr.bf16.mxu0 0
    %5744 = vmatpush2.bf16.msra.mxu0 %v5682
    %5745 = vmatprep.subr.bf16.mxu0 0
    %5746 = vmatpush2.bf16.msra.mxu0 %v5681
    %5747 = vmatprep.subr.bf16.mxu0 0
    %5748 = vmatpush2.bf16.msra.mxu0 %v5680
    %5749 = vmatprep.subr.bf16.mxu0 0
    %5750 = vmatpush2.bf16.msra.mxu0 %v5679
    %5751 = vmatprep.mubr.bf16.mxu0 %v5564
    %5752 = vmatmul.mubr.bf16.gmra.mxu0 %v5563
    %v5753 = vpop.f32.mrf.mxu0
    %v5754 = vadd.f32 %v5434, %v5753
    %v5755 = vpop.f32.mrf.mxu0
    %v5756 = vpop.f32.mrf.mxu0
    %v5757 = vadd.f32 %v5434, %v5756
    %v5758 = vpop.f32.mrf.mxu0
    %5759 = vmatprep.mubr.bf16.mxu0 %v5567
    %5760 = vmatmul.mubr.bf16.gmra.mxu0 %v5566
    %v5761 = vpop.f32.mrf.mxu0
    %v5762 = vadd.f32 %v5434, %v5761
    %v5763 = vpop.f32.mrf.mxu0
    %v5764 = vpop.f32.mrf.mxu0
    %v5765 = vadd.f32 %v5434, %v5764
    %v5766 = vpop.f32.mrf.mxu0
    %5767 = vmatprep.mubr.bf16.mxu0 %v5570
    %5768 = vmatmul.mubr.bf16.gmra.mxu0 %v5569
    %v5769 = vpop.f32.mrf.mxu0
    %v5770 = vadd.f32 %v5434, %v5769
    %v5771 = vpop.f32.mrf.mxu0
    %v5772 = vpop.f32.mrf.mxu0
    %v5773 = vadd.f32 %v5434, %v5772
    %v5774 = vpop.f32.mrf.mxu0
    %5775 = vmatprep.mubr.bf16.mxu0 %v5573
    %5776 = vmatmul.mubr.bf16.gmra.mxu0 %v5572
    %v5777 = vpop.f32.mrf.mxu0
    %v5778 = vadd.f32 %v5434, %v5777
    %v5779 = vpop.f32.mrf.mxu0
    %v5780 = vpop.f32.mrf.mxu0
    %v5781 = vadd.f32 %v5434, %v5780
    %v5782 = vpop.f32.mrf.mxu0
    %5783 = vdwg.mxu0
    %5784 = vmatprep.subr.bf16.mxu0 0
    %5785 = vmatpush1.bf16.msra.mxu0 %v5694
    %5786 = vmatprep.subr.bf16.mxu0 0
    %5787 = vmatpush1.bf16.msra.mxu0 %v5693
    %5788 = vmatprep.subr.bf16.mxu0 0
    %5789 = vmatpush1.bf16.msra.mxu0 %v5692
    %5790 = vmatprep.subr.bf16.mxu0 0
    %5791 = vmatpush1.bf16.msra.mxu0 %v5691
    %5792 = vmatprep.subr.bf16.mxu0 0
    %5793 = vmatpush1.bf16.msra.mxu0 %v5690
    %5794 = vmatprep.subr.bf16.mxu0 0
    %5795 = vmatpush1.bf16.msra.mxu0 %v5689
    %5796 = vmatprep.subr.bf16.mxu0 0
    %5797 = vmatpush1.bf16.msra.mxu0 %v5688
    %5798 = vmatprep.subr.bf16.mxu0 0
    %5799 = vmatpush1.bf16.msra.mxu0 %v5687
    %5800 = vmatprep.subr.bf16.mxu0 0
    %5801 = vmatpush2.bf16.msra.mxu0 0
    %5802 = vmatprep.subr.bf16.mxu0 0
    %5803 = vmatpush2.bf16.msra.mxu0 0
    %5804 = vmatprep.subr.bf16.mxu0 0
    %5805 = vmatpush2.bf16.msra.mxu0 0
    %5806 = vmatprep.subr.bf16.mxu0 0
    %5807 = vmatpush2.bf16.msra.mxu0 0
    %5808 = vmatprep.subr.bf16.mxu0 0
    %5809 = vmatpush2.bf16.msra.mxu0 0
    %5810 = vmatprep.subr.bf16.mxu0 0
    %5811 = vmatpush2.bf16.msra.mxu0 0
    %5812 = vmatprep.subr.bf16.mxu0 0
    %5813 = vmatpush2.bf16.msra.mxu0 0
    %5814 = vmatprep.subr.bf16.mxu0 0
    %5815 = vmatpush2.bf16.msra.mxu0 0
    %5816 = vmatprep.mubr.bf16.mxu0 0
    %5817 = vmatmul.mubr.bf16.gmra.mxu0 %v5565
    %v5818 = vpop.f32.mrf.mxu0
    %v5819 = vadd.f32 %v5754, %v5818
    %v5820 = vpop.f32.mrf.mxu0
    %v5821 = vpop.f32.mrf.mxu0
    %v5822 = vadd.f32 %v5757, %v5821
    %v5823 = vpop.f32.mrf.mxu0
    %5824 = vmatprep.mubr.bf16.mxu0 0
    %5825 = vmatmul.mubr.bf16.gmra.mxu0 %v5568
    %v5826 = vpop.f32.mrf.mxu0
    %v5827 = vadd.f32 %v5762, %v5826
    %v5828 = vpop.f32.mrf.mxu0
    %v5829 = vpop.f32.mrf.mxu0
    %v5830 = vadd.f32 %v5765, %v5829
    %v5831 = vpop.f32.mrf.mxu0
    %5832 = vmatprep.mubr.bf16.mxu0 0
    %5833 = vmatmul.mubr.bf16.gmra.mxu0 %v5571
    %v5834 = vpop.f32.mrf.mxu0
    %v5835 = vadd.f32 %v5770, %v5834
    %v5836 = vpop.f32.mrf.mxu0
    %v5837 = vpop.f32.mrf.mxu0
    %v5838 = vadd.f32 %v5773, %v5837
    %v5839 = vpop.f32.mrf.mxu0
    %5840 = vmatprep.mubr.bf16.mxu0 0
    %5841 = vmatmul.mubr.bf16.gmra.mxu0 %v5574
    %v5842 = vpop.f32.mrf.mxu0
    %v5843 = vadd.f32 %v5778, %v5842
    %v5844 = vpop.f32.mrf.mxu0
    %v5845 = vpop.f32.mrf.mxu0
    %v5846 = vadd.f32 %v5781, %v5845
    %v5847 = vpop.f32.mrf.mxu0
    %5848 = vdwg.mxu0
    %v5849 = vmax.f32 %v5819, 0.0
    %v5850 = vmax.f32 %v5822, 0.0
    %v5851 = vmax.f32 %v5827, 0.0
    %v5852 = vmax.f32 %v5830, 0.0
    %v5853 = vmax.f32 %v5835, 0.0
    %v5854 = vmax.f32 %v5838, 0.0
    %v5855 = vmax.f32 %v5843, 0.0
    %v5856 = vmax.f32 %v5846, 0.0
    %v5857 = vld [vmem:[#allocation9 + $0x1600] sm:$0xf]
    %v5858 = vld [vmem:[#allocation9 + $0x1608] sm:$0xf]
    %v5859 = vld [vmem:[#allocation9 + $0x1610] sm:$0xf]
    %v5860 = vld [vmem:[#allocation9 + $0x1618] sm:$0xf]
    %v5861 = vld [vmem:[#allocation9 + $0x1620] sm:$0xf]
    %v5862 = vld [vmem:[#allocation9 + $0x1628] sm:$0xf]
    %v5863 = vld [vmem:[#allocation9 + $0x1630] sm:$0xf]
    %v5864 = vld [vmem:[#allocation9 + $0x1638] sm:$0xf]
    %v5865 = vld [vmem:[#allocation9 + $0x1640] sm:$0xf]
    %v5866 = vld [vmem:[#allocation9 + $0x1648] sm:$0xf]
    %v5867 = vld [vmem:[#allocation9 + $0x1650] sm:$0xf]
    %v5868 = vld [vmem:[#allocation9 + $0x1658] sm:$0xf]
    %v5869 = vld [vmem:[#allocation9 + $0x1660] sm:$0xf]
    %v5870 = vld [vmem:[#allocation9 + $0x1668] sm:$0xf]
    %v5871 = vld [vmem:[#allocation9 + $0x1670] sm:$0xf]
    %v5872 = vld [vmem:[#allocation9 + $0x1678] sm:$0xf]
    %v5873 = vld [vmem:[#allocation9 + $0x1680] sm:$0xf]
    %v5874 = vld [vmem:[#allocation9 + $0x1688] sm:$0xf]
    %v5875 = vld [vmem:[#allocation9 + $0x1690] sm:$0xf]
    %v5876 = vld [vmem:[#allocation9 + $0x1698] sm:$0xf]
    %v5877 = vld [vmem:[#allocation9 + $0x16a0] sm:$0xf]
    %v5878 = vld [vmem:[#allocation9 + $0x16a8] sm:$0xf]
    %v5879 = vld [vmem:[#allocation9 + $0x16b0] sm:$0xf]
    %v5880 = vld [vmem:[#allocation9 + $0x16b8] sm:$0xf]
    %v5881 = vld [vmem:[#allocation10 + $0x10] ss:$0 sm:$0xff]
    %v5890 = vrot.slane %v5849, 7
    %v5891 = vrot.slane %v5850, 7
    %v5892 = vsel %vm1411, %v5890, %v5891
    %v5893 = vrot.slane %v5851, 7
    %v5894 = vsel %vm1411, %v5891, %v5893
    %v5895 = vrot.slane %v5852, 7
    %v5896 = vsel %vm1411, %v5893, %v5895
    %v5897 = vrot.slane %v5853, 7
    %v5898 = vsel %vm1411, %v5895, %v5897
    %v5899 = vrot.slane %v5854, 7
    %v5900 = vsel %vm1411, %v5897, %v5899
    %v5901 = vrot.slane %v5855, 7
    %v5902 = vsel %vm1411, %v5899, %v5901
    %v5903 = vrot.slane %v5856, 7
    %v5904 = vsel %vm1411, %v5901, %v5903
    %v5913 = vsel %vm1411, 0.0, %v5890
    %v5914 = vrot.slane %v5849, 1
    %v5915 = vrot.slane %v5850, 1
    %v5916 = vsel %vm1436, %v5914, %v5915
    %v5917 = vrot.slane %v5851, 1
    %v5918 = vsel %vm1436, %v5915, %v5917
    %v5919 = vrot.slane %v5852, 1
    %v5920 = vsel %vm1436, %v5917, %v5919
    %v5921 = vrot.slane %v5853, 1
    %v5922 = vsel %vm1436, %v5919, %v5921
    %v5923 = vrot.slane %v5854, 1
    %v5924 = vsel %vm1436, %v5921, %v5923
    %v5925 = vrot.slane %v5855, 1
    %v5926 = vsel %vm1436, %v5923, %v5925
    %v5927 = vrot.slane %v5856, 1
    %v5928 = vsel %vm1436, %v5925, %v5927
    %v5937 = vsel %vm1436, %v5927, 0.0
    %v5938 = vsel %vm5515, 0.0, %v5913
    %v5939 = vsel %vm5516, 0.0, %v5892
    %v5940 = vsel %vm5517, 0.0, %v5894
    %v5941 = vsel %vm5518, 0.0, %v5896
    %v5942 = vsel %vm5519, 0.0, %v5898
    %v5943 = vsel %vm5520, 0.0, %v5900
    %v5944 = vsel %vm5521, 0.0, %v5902
    %v5945 = vsel %vm5522, 0.0, %v5904
    %v5946 = vsel %vm5547, 0.0, %v5916
    %v5947 = vsel %vm5548, 0.0, %v5918
    %v5948 = vsel %vm5549, 0.0, %v5920
    %v5949 = vsel %vm5550, 0.0, %v5922
    %v5950 = vsel %vm5551, 0.0, %v5924
    %v5951 = vsel %vm5552, 0.0, %v5926
    %v5952 = vsel %vm5553, 0.0, %v5928
    %v5953 = vsel %vm5554, 0.0, %v5937
    %5954 = vrot.lane.b32.xlu0 %v5849, 64
    %v5955 = vpop.permute.xlu0 %5954
    %5956 = vrot.lane.b32.xlu0 %v5850, 64
    %v5957 = vpop.permute.xlu0 %5956
    %5958 = vrot.lane.b32.xlu0 %v5851, 64
    %v5959 = vpop.permute.xlu0 %5958
    %5960 = vrot.lane.b32.xlu0 %v5852, 64
    %v5961 = vpop.permute.xlu0 %5960
    %5962 = vrot.lane.b32.xlu0 %v5853, 64
    %v5963 = vpop.permute.xlu0 %5962
    %5964 = vrot.lane.b32.xlu0 %v5854, 64
    %v5965 = vpop.permute.xlu0 %5964
    %5966 = vrot.lane.b32.xlu0 %v5855, 64
    %v5967 = vpop.permute.xlu0 %5966
    %5968 = vrot.lane.b32.xlu0 %v5856, 64
    %v5969 = vpop.permute.xlu0 %5968
    %v5978 = vsel %vm5377, %v5938, %v5955
    %v5979 = vsel %vm5377, %v5939, %v5957
    %v5980 = vsel %vm5377, %v5940, %v5959
    %v5981 = vsel %vm5377, %v5941, %v5961
    %v5982 = vsel %vm5377, %v5942, %v5963
    %v5983 = vsel %vm5377, %v5943, %v5965
    %v5984 = vsel %vm5377, %v5944, %v5967
    %v5985 = vsel %vm5377, %v5945, %v5969
    %v5986 = vpack.c.bf16 %v5979, %v5978
    %v5987 = vpack.c.bf16 %v5947, %v5946
    %v5988 = vpack.c.bf16 %v5981, %v5980
    %v5989 = vpack.c.bf16 %v5949, %v5948
    %v5990 = vpack.c.bf16 %v5983, %v5982
    %v5991 = vpack.c.bf16 %v5951, %v5950
    %v5992 = vpack.c.bf16 %v5985, %v5984
    %v5993 = vpack.c.bf16 %v5953, %v5952
    %v6018 = vunpack.c.l.b16 %v5857
    %v6019 = vunpack.c.l.b16 %v5858
    %v6020 = vunpack.c.l.b16 %v5859
    %v6021 = vunpack.c.l.b16 %v5860
    %v6022 = vunpack.c.l.b16 %v5861
    %v6023 = vunpack.c.l.b16 %v5862
    %v6024 = vunpack.c.l.b16 %v5863
    %v6025 = vunpack.c.l.b16 %v5864
    %v6026 = vunpack.c.l.b16 %v5865
    %v6027 = vunpack.c.l.b16 %v5866
    %v6028 = vunpack.c.l.b16 %v5867
    %v6029 = vunpack.c.l.b16 %v5868
    %v6030 = vunpack.c.l.b16 %v5869
    %v6031 = vunpack.c.l.b16 %v5870
    %v6032 = vunpack.c.l.b16 %v5871
    %v6033 = vunpack.c.l.b16 %v5872
    %v6034 = vunpack.c.l.b16 %v5873
    %v6035 = vunpack.c.l.b16 %v5874
    %v6036 = vunpack.c.l.b16 %v5875
    %v6037 = vunpack.c.l.b16 %v5876
    %v6038 = vunpack.c.l.b16 %v5877
    %v6039 = vunpack.c.l.b16 %v5878
    %v6040 = vunpack.c.l.b16 %v5879
    %v6041 = vunpack.c.l.b16 %v5880
    %v6042 = vpack.c.b16 %v6019, %v6018
    %v6043 = vpack.c.b16 %v6021, %v6020
    %v6044 = vpack.c.b16 %v6023, %v6022
    %v6045 = vpack.c.b16 %v6025, %v6024
    %v6046 = vpack.c.b16 %v6027, %v6026
    %v6047 = vpack.c.b16 %v6029, %v6028
    %v6048 = vpack.c.b16 %v6031, %v6030
    %v6049 = vpack.c.b16 %v6033, %v6032
    %v6050 = vpack.c.b16 %v6035, %v6034
    %v6051 = vpack.c.b16 %v6037, %v6036
    %v6052 = vpack.c.b16 %v6039, %v6038
    %v6053 = vpack.c.b16 %v6041, %v6040
    %v6067 = vsel %vm5377, %v5987, 0
    %v6070 = vsel %vm5377, %v5989, 0
    %v6073 = vsel %vm5377, %v5991, 0
    %v6076 = vsel %vm5377, %v5993, 0
    %6078 = vmatprep.subr.bf16.mxu0 0
    %6079 = vmatpush1.bf16.msra.mxu0 %v6049
    %6080 = vmatprep.subr.bf16.mxu0 0
    %6081 = vmatpush1.bf16.msra.mxu0 %v6048
    %6082 = vmatprep.subr.bf16.mxu0 0
    %6083 = vmatpush1.bf16.msra.mxu0 %v6047
    %6084 = vmatprep.subr.bf16.mxu0 0
    %6085 = vmatpush1.bf16.msra.mxu0 %v6046
    %6086 = vmatprep.subr.bf16.mxu0 0
    %6087 = vmatpush1.bf16.msra.mxu0 %v6045
    %6088 = vmatprep.subr.bf16.mxu0 0
    %6089 = vmatpush1.bf16.msra.mxu0 %v6044
    %6090 = vmatprep.subr.bf16.mxu0 0
    %6091 = vmatpush1.bf16.msra.mxu0 %v6043
    %6092 = vmatprep.subr.bf16.mxu0 0
    %6093 = vmatpush1.bf16.msra.mxu0 %v6042
    %6094 = vmatprep.subr.bf16.mxu0 0
    %6095 = vmatpush2.bf16.msra.mxu0 0
    %6096 = vmatprep.subr.bf16.mxu0 0
    %6097 = vmatpush2.bf16.msra.mxu0 0
    %6098 = vmatprep.subr.bf16.mxu0 0
    %6099 = vmatpush2.bf16.msra.mxu0 0
    %6100 = vmatprep.subr.bf16.mxu0 0
    %6101 = vmatpush2.bf16.msra.mxu0 0
    %6102 = vmatprep.subr.bf16.mxu0 0
    %6103 = vmatpush2.bf16.msra.mxu0 %v6053
    %6104 = vmatprep.subr.bf16.mxu0 0
    %6105 = vmatpush2.bf16.msra.mxu0 %v6052
    %6106 = vmatprep.subr.bf16.mxu0 0
    %6107 = vmatpush2.bf16.msra.mxu0 %v6051
    %6108 = vmatprep.subr.bf16.mxu0 0
    %6109 = vmatpush2.bf16.msra.mxu0 %v6050
    %6110 = vmatprep.mubr.bf16.mxu0 %v6067
    %6111 = vmatmul.mubr.bf16.gmra.mxu0 %v5986
    %v6112 = vpop.f32.mrf.mxu0
    %v6113 = vadd.f32 %v5881, %v6112
    %v6114 = vpop.f32.mrf.mxu0
    %v6115 = vpop.f32.mrf.mxu0
    %v6116 = vadd.f32 %v5881, %v6115
    %v6117 = vpop.f32.mrf.mxu0
    %6118 = vmatprep.mubr.bf16.mxu0 %v6070
    %6119 = vmatmul.mubr.bf16.gmra.mxu0 %v5988
    %v6120 = vpop.f32.mrf.mxu0
    %v6121 = vadd.f32 %v5881, %v6120
    %v6122 = vpop.f32.mrf.mxu0
    %v6123 = vpop.f32.mrf.mxu0
    %v6124 = vadd.f32 %v5881, %v6123
    %v6125 = vpop.f32.mrf.mxu0
    %6126 = vmatprep.mubr.bf16.mxu0 %v6073
    %6127 = vmatmul.mubr.bf16.gmra.mxu0 %v5990
    %v6128 = vpop.f32.mrf.mxu0
    %v6129 = vadd.f32 %v5881, %v6128
    %v6130 = vpop.f32.mrf.mxu0
    %v6131 = vpop.f32.mrf.mxu0
    %v6132 = vadd.f32 %v5881, %v6131
    %v6133 = vpop.f32.mrf.mxu0
    %6134 = vmatprep.mubr.bf16.mxu0 %v6076
    %6135 = vmatmul.mubr.bf16.gmra.mxu0 %v5992
    %v6136 = vpop.f32.mrf.mxu0
    %v6137 = vadd.f32 %v5881, %v6136
    %v6138 = vpop.f32.mrf.mxu0
    %v6139 = vpop.f32.mrf.mxu0
    %v6140 = vadd.f32 %v5881, %v6139
    %v6141 = vpop.f32.mrf.mxu0
    %6142 = vdwg.mxu0
    %v6143 = vmax.f32 %v6113, 0.0
    %v6144 = vmax.f32 %v6116, 0.0
    %v6145 = vmax.f32 %v6121, 0.0
    %v6146 = vmax.f32 %v6124, 0.0
    %v6147 = vmax.f32 %v6129, 0.0
    %v6148 = vmax.f32 %v6132, 0.0
    %v6149 = vmax.f32 %v6137, 0.0
    %v6150 = vmax.f32 %v6140, 0.0
    %v6151 = vld [vmem:[#allocation10 + $0x11] ss:$0 sm:$0xff]
    %v6152 = vld [vmem:[#allocation10 + $0x12] ss:$0 sm:$0xff]
    %v6153 = vmul.f32 %v6143, %v6151
    %v6154 = vmul.f32 %v6144, %v6151
    %v6155 = vmul.f32 %v6145, %v6151
    %v6156 = vmul.f32 %v6146, %v6151
    %v6157 = vmul.f32 %v6147, %v6151
    %v6158 = vmul.f32 %v6148, %v6151
    %v6159 = vmul.f32 %v6149, %v6151
    %v6160 = vmul.f32 %v6150, %v6151
    %v6161 = vsel %vm5377, %v6153, 0.0
    %6162 = vadd.xlane.f32.xlu0 %v6161
    %v6163 = vpop.xlane.xlu0 %6162
    %v6164 = vsel %vm5377, %v6154, 0.0
    %6165 = vadd.xlane.f32.xlu0 %v6164
    %v6166 = vpop.xlane.xlu0 %6165
    %v6167 = vsel %vm5377, %v6155, 0.0
    %6168 = vadd.xlane.f32.xlu0 %v6167
    %v6169 = vpop.xlane.xlu0 %6168
    %v6170 = vsel %vm5377, %v6156, 0.0
    %6171 = vadd.xlane.f32.xlu0 %v6170
    %v6172 = vpop.xlane.xlu0 %6171
    %v6173 = vsel %vm5377, %v6157, 0.0
    %6174 = vadd.xlane.f32.xlu0 %v6173
    %v6175 = vpop.xlane.xlu0 %6174
    %v6176 = vsel %vm5377, %v6158, 0.0
    %6177 = vadd.xlane.f32.xlu0 %v6176
    %v6178 = vpop.xlane.xlu0 %6177
    %v6179 = vsel %vm5377, %v6159, 0.0
    %6180 = vadd.xlane.f32.xlu0 %v6179
    %v6181 = vpop.xlane.xlu0 %6180
    %v6182 = vsel %vm5377, %v6160, 0.0
    %6183 = vadd.xlane.f32.xlu0 %v6182
    %v6184 = vpop.xlane.xlu0 %6183
    %v6185 = vadd.f32 %v6163, %v6152
    %v6186 = vadd.f32 %v6166, %v6152
    %v6187 = vadd.f32 %v6169, %v6152
    %v6188 = vadd.f32 %v6172, %v6152
    %v6189 = vadd.f32 %v6175, %v6152
    %v6190 = vadd.f32 %v6178, %v6152
    %v6191 = vadd.f32 %v6181, %v6152
    %v6192 = vadd.f32 %v6184, %v6152
    %v6193 = vxor.u32 %v6185, 2147483648
    %v6194 = vxor.u32 %v6186, 2147483648
    %v6195 = vxor.u32 %v6187, 2147483648
    %v6196 = vxor.u32 %v6188, 2147483648
    %v6197 = vxor.u32 %v6189, 2147483648
    %v6198 = vxor.u32 %v6190, 2147483648
    %v6199 = vxor.u32 %v6191, 2147483648
    %v6200 = vxor.u32 %v6192, 2147483648
    %v6201 = vmul.f32 %v6193, 1.442695
    %v6202 = vpow.pop %v6201
    %v6203 = vmul.f32 %v6194, 1.442695
    %v6204 = vpow.pop %v6203
    %v6205 = vmul.f32 %v6195, 1.442695
    %v6206 = vpow.pop %v6205
    %v6207 = vmul.f32 %v6196, 1.442695
    %v6208 = vpow.pop %v6207
    %v6209 = vmul.f32 %v6197, 1.442695
    %v6210 = vpow.pop %v6209
    %v6211 = vmul.f32 %v6198, 1.442695
    %v6212 = vpow.pop %v6211
    %v6213 = vmul.f32 %v6199, 1.442695
    %v6214 = vpow.pop %v6213
    %v6215 = vmul.f32 %v6200, 1.442695
    %v6216 = vpow.pop %v6215
    %v6217 = vadd.f32 %v6202, 1.0
    %v6218 = vadd.f32 %v6204, 1.0
    %v6219 = vadd.f32 %v6206, 1.0
    %v6220 = vadd.f32 %v6208, 1.0
    %v6221 = vadd.f32 %v6210, 1.0
    %v6222 = vadd.f32 %v6212, 1.0
    %v6223 = vadd.f32 %v6214, 1.0
    %v6224 = vadd.f32 %v6216, 1.0
    %v6225 = vrcp.pop %v6217
    %v6226 = vmul.f32 1.0, %v6225
    %v6227 = vrcp.pop %v6218
    %v6228 = vmul.f32 1.0, %v6227
    %v6229 = vrcp.pop %v6219
    %v6230 = vmul.f32 1.0, %v6229
    %v6231 = vrcp.pop %v6220
    %v6232 = vmul.f32 1.0, %v6231
    %v6233 = vrcp.pop %v6221
    %v6234 = vmul.f32 1.0, %v6233
    %v6235 = vrcp.pop %v6222
    %v6236 = vmul.f32 1.0, %v6235
    %v6237 = vrcp.pop %v6223
    %v6238 = vmul.f32 1.0, %v6237
    %v6239 = vrcp.pop %v6224
    %v6240 = vmul.f32 1.0, %v6239
    %vm6241 = vcmask 7168
    %6242 = vst.msk [vmem:[%s6] sm:$0xff] %vm6241, %v6226
    %6243 = vst.msk [vmem:[%s6 + $0x8] sm:$0xff] %vm6241, %v6228
    %6244 = vst.msk [vmem:[%s6 + $0x10] sm:$0xff] %vm6241, %v6230
    %6245 = vst.msk [vmem:[%s6 + $0x18] sm:$0xff] %vm6241, %v6232
    %6246 = vst.msk [vmem:[%s6 + $0x20] sm:$0xff] %vm6241, %v6234
    %6247 = vst.msk [vmem:[%s6 + $0x28] sm:$0xff] %vm6241, %v6236
    %6248 = vst.msk [vmem:[%s6 + $0x30] sm:$0xff] %vm6241, %v6238
    %6249 = vst.msk [vmem:[%s6 + $0x38] sm:$0xff] %vm6241, %v6240
    // Predicated region
    $region50: #{tpu_custom_call.1} parent=1 // pred_check
      _
    $region51: #{tpu_custom_call.1} parent=1 // pred_check_branch
      %6251 = sbr.rel (0) target = $region53
    $region52: #{tpu_custom_call.1} parent=1 // pred_region
      _
    $region53: #{tpu_custom_call.1} parent=1 // pred_fallthru
      _
    // Predicated region
    $region54: #{tpu_custom_call.1} parent=1 // pred_check
      _
    $region55: #{tpu_custom_call.1} parent=1 // pred_check_branch
      %6253 = sbr.rel (0) target = $region57
    $region56: #{tpu_custom_call.1} parent=1 // pred_region
      _
    $region57: #{tpu_custom_call.1} parent=1 // pred_fallthru
      _
    %6254 = vsyncpa [#allocation3], 1
    %6255 = vsyncpa [#allocation5], 1
    %6256 = vsyncpa [#allocation8], 1
    %6257 = vsyncpa [#allocation11], 1

</llo_original>
